<compile_context>
chip_gen: v5e
topology: v5e:2x2
jax: 0.10.0
libtpu: 0.0.40
codegen_flags: <defaults>
</compile_context>

<pallas_src>
import math
import functools

import numpy as np
import jax
import jax.numpy as jnp
from jax.experimental import pallas as pl
from jax.experimental.pallas import tpu as pltpu


_CP_PAR1 = pltpu.CompilerParams(dimension_semantics=("parallel",))


# ----------------------------------------------------------------------------
# In-kernel helpers
# ----------------------------------------------------------------------------

def _ln(x, g, b, eps=1e-5):
    # x: (R, D) f32; g/b: (D,) f32.  Population variance (torch LayerNorm), f32 stats.
    mean = jnp.mean(x, axis=-1, keepdims=True)
    var = jnp.mean(jnp.square(x - mean), axis=-1, keepdims=True)
    return (x - mean) * jax.lax.rsqrt(var + eps) * g + b


def _mha(h_q, kv, wq_ref, wk_ref, wv_ref, wo_ref, num_heads):
    # h_q: (Sq, D) f32 (LayerNorm'd query input); kv: (Sk, D) f32.
    # wq/wk/wv refs: (H, D, hd) bf16 (wq pre-scaled by 1/sqrt(hd)); wo ref: (H, hd, D) bf16.
    Sq, D = h_q.shape
    qb = h_q.astype(jnp.bfloat16)
    kvb = kv.astype(jnp.bfloat16)
    out = jnp.zeros((Sq, D), jnp.float32)
    for h in range(num_heads):                      # static, unrolled head loop
        qh = jnp.dot(qb, wq_ref[h], preferred_element_type=jnp.float32)   # (Sq, hd)
        kh = jnp.dot(kvb, wk_ref[h], preferred_element_type=jnp.float32)  # (Sk, hd)
        vh = jnp.dot(kvb, wv_ref[h], preferred_element_type=jnp.float32)  # (Sk, hd)
        # scores = qh @ kh^T (scale already folded into wq); bf16 operands, f32 acc.
        s = jax.lax.dot_general(
            qh.astype(jnp.bfloat16), kh.astype(jnp.bfloat16),
            (((1,), (1,)), ((), ())), preferred_element_type=jnp.float32)  # (Sq, Sk)
        s = s - jnp.max(s, axis=-1, keepdims=True)
        e = jnp.exp(s)
        p = e * pl.reciprocal(jnp.sum(e, axis=-1, keepdims=True), approx=True)
        ctx = jnp.dot(p.astype(jnp.bfloat16), vh.astype(jnp.bfloat16),
                      preferred_element_type=jnp.float32)                  # (Sq, hd)
        # concat(ctx_h) @ Wo  ==  sum_h ctx_h @ Wo[h]
        out = out + jnp.dot(ctx.astype(jnp.bfloat16), wo_ref[h],
                            preferred_element_type=jnp.float32)            # (Sq, D)
    return out


# ----------------------------------------------------------------------------
# Fused kernels
# ----------------------------------------------------------------------------

def _fused_self_attn_kernel(x_ref, g_ref, b_ref, wq_ref, wk_ref, wv_ref, wo_ref,
                            o_ref, *, num_heads):
    # x_ref block: (1, Sq, D) f32
    x = x_ref[0]
    h = _ln(x, g_ref[0], b_ref[0])
    attn = _mha(h, h, wq_ref, wk_ref, wv_ref, wo_ref, num_heads)
    o_ref[0] = (x + attn).astype(o_ref.dtype)       # residual (dropout = identity)


def _fused_cross_attn_kernel(x_ref, kv_ref, g_ref, b_ref, wq_ref, wk_ref, wv_ref,
                             wo_ref, o_ref, *, num_heads):
    # x_ref: (1, Sq, D); kv_ref: (1, Sk, D) = encoder output (used raw, per source).
    x = x_ref[0]
    h = _ln(x, g_ref[0], b_ref[0])
    attn = _mha(h, kv_ref[0], wq_ref, wk_ref, wv_ref, wo_ref, num_heads)
    o_ref[0] = (x + attn).astype(o_ref.dtype)


def _fused_ln_ffn_kernel(x_ref, g_ref, b_ref, w1_ref, b1_ref, w2_ref, b2_ref, o_ref):
    # x_ref block: (TS, D) f32; w1: (D, Dff) bf16; w2: (Dff, D) bf16; biases f32.
    x = x_ref[...]
    h = _ln(x, g_ref[0], b_ref[0]).astype(jnp.bfloat16)
    a = jnp.dot(h, w1_ref[...], preferred_element_type=jnp.float32) + b1_ref[0]
    a = jnp.maximum(a, 0.0).astype(jnp.bfloat16)            # ReLU
    f = jnp.dot(a, w2_ref[...], preferred_element_type=jnp.float32) + b2_ref[0]
    o_ref[...] = (x + f).astype(o_ref.dtype)                # residual


def _ln_kernel(x_ref, g_ref, b_ref, o_ref):
    o_ref[...] = _ln(x_ref[...], g_ref[0], b_ref[0]).astype(o_ref.dtype)


def _fused_ln_proj_kernel(x_ref, g_ref, b_ref, w_ref, bias_ref, o_ref):
    # final decoder LayerNorm fused with the vocab projection
    h = _ln(x_ref[...], g_ref[0], b_ref[0]).astype(jnp.bfloat16)
    o_ref[...] = (jnp.dot(h, w_ref[...], preferred_element_type=jnp.float32)
                  + bias_ref[0]).astype(o_ref.dtype)


# ----------------------------------------------------------------------------
# pallas_call wrappers
# ----------------------------------------------------------------------------

def _pick_row_tile(rows):
    # Prefer big row tiles (MXU M dim + DMA pipelining); fall back to full rows
    # for tiny demo shapes.
    for ts in (256, 128):
        if rows % ts == 0:
            return ts
    return rows


def fused_self_attention(x, ln, attn, num_heads):
    B, S, D = x.shape
    H, _, hd = attn["wq"].shape
    kern = functools.partial(_fused_self_attn_kernel, num_heads=num_heads)
    return pl.pallas_call(
        kern,
        out_shape=jax.ShapeDtypeStruct((B, S, D), jnp.float32),
        grid=(B,),
        in_specs=[pl.BlockSpec((1, S, D), lambda b: (b, 0, 0)),
                  pl.BlockSpec((1, D), lambda b: (0, 0)),
                  pl.BlockSpec((1, D), lambda b: (0, 0)),
                  pl.BlockSpec((H, D, hd), lambda b: (0, 0, 0)),
                  pl.BlockSpec((H, D, hd), lambda b: (0, 0, 0)),
                  pl.BlockSpec((H, D, hd), lambda b: (0, 0, 0)),
                  pl.BlockSpec((H, hd, D), lambda b: (0, 0, 0))],
        out_specs=pl.BlockSpec((1, S, D), lambda b: (b, 0, 0)),
        compiler_params=_CP_PAR1,
    )(x, ln["g"], ln["b"], attn["wq"], attn["wk"], attn["wv"], attn["wo"])


def fused_cross_attention(x, kv, ln, attn, num_heads):
    B, Sq, D = x.shape
    _, Sk, _ = kv.shape
    H, _, hd = attn["wq"].shape
    kern = functools.partial(_fused_cross_attn_kernel, num_heads=num_heads)
    return pl.pallas_call(
        kern,
        out_shape=jax.ShapeDtypeStruct((B, Sq, D), jnp.float32),
        grid=(B,),
        in_specs=[pl.BlockSpec((1, Sq, D), lambda b: (b, 0, 0)),
                  pl.BlockSpec((1, Sk, D), lambda b: (b, 0, 0)),
                  pl.BlockSpec((1, D), lambda b: (0, 0)),
                  pl.BlockSpec((1, D), lambda b: (0, 0)),
                  pl.BlockSpec((H, D, hd), lambda b: (0, 0, 0)),
                  pl.BlockSpec((H, D, hd), lambda b: (0, 0, 0)),
                  pl.BlockSpec((H, D, hd), lambda b: (0, 0, 0)),
                  pl.BlockSpec((H, hd, D), lambda b: (0, 0, 0))],
        out_specs=pl.BlockSpec((1, Sq, D), lambda b: (b, 0, 0)),
        compiler_params=_CP_PAR1,
    )(x, kv, ln["g"], ln["b"], attn["wq"], attn["wk"], attn["wv"], attn["wo"])


def fused_ln_ffn(x, ln, ffn):
    B, S, D = x.shape
    R = B * S
    Dff = ffn["w1"].shape[1]
    TS = _pick_row_tile(R)
    y = pl.pallas_call(
        _fused_ln_ffn_kernel,
        out_shape=jax.ShapeDtypeStruct((R, D), jnp.float32),
        grid=(R // TS,),
        in_specs=[pl.BlockSpec((TS, D), lambda r: (r, 0)),
                  pl.BlockSpec((1, D), lambda r: (0, 0)),
                  pl.BlockSpec((1, D), lambda r: (0, 0)),
                  pl.BlockSpec((D, Dff), lambda r: (0, 0)),
                  pl.BlockSpec((1, Dff), lambda r: (0, 0)),
                  pl.BlockSpec((Dff, D), lambda r: (0, 0)),
                  pl.BlockSpec((1, D), lambda r: (0, 0))],
        out_specs=pl.BlockSpec((TS, D), lambda r: (r, 0)),
        compiler_params=_CP_PAR1,
    )(x.reshape(R, D), ln["g"], ln["b"], ffn["w1"], ffn["b1"], ffn["w2"], ffn["b2"])
    return y.reshape(B, S, D)


def layernorm(x, ln):
    B, S, D = x.shape
    R = B * S
    TS = _pick_row_tile(R)
    y = pl.pallas_call(
        _ln_kernel,
        out_shape=jax.ShapeDtypeStruct((R, D), jnp.float32),
        grid=(R // TS,),
        in_specs=[pl.BlockSpec((TS, D), lambda r: (r, 0)),
                  pl.BlockSpec((1, D), lambda r: (0, 0)),
                  pl.BlockSpec((1, D), lambda r: (0, 0))],
        out_specs=pl.BlockSpec((TS, D), lambda r: (r, 0)),
        compiler_params=_CP_PAR1,
    )(x.reshape(R, D), ln["g"], ln["b"])
    return y.reshape(B, S, D)


def fused_ln_projection(x, ln, w, bias):
    B, S, D = x.shape
    R = B * S
    V = w.shape[1]
    TS = _pick_row_tile(R)
    y = pl.pallas_call(
        _fused_ln_proj_kernel,
        out_shape=jax.ShapeDtypeStruct((R, V), jnp.float32),
        grid=(R // TS,),
        in_specs=[pl.BlockSpec((TS, D), lambda r: (r, 0)),
                  pl.BlockSpec((1, D), lambda r: (0, 0)),
                  pl.BlockSpec((1, D), lambda r: (0, 0)),
                  pl.BlockSpec((D, V), lambda r: (0, 0)),
                  pl.BlockSpec((1, V), lambda r: (0, 0))],
        out_specs=pl.BlockSpec((TS, V), lambda r: (r, 0)),
        compiler_params=_CP_PAR1,
    )(x.reshape(R, D), ln["g"], ln["b"], w, bias)
    return y.reshape(B, S, V)


# ----------------------------------------------------------------------------
# Parameter construction (deterministic, synthetic)
# ----------------------------------------------------------------------------

def sinusoidal_pe(seq_len, d):
    pos = np.arange(seq_len)[:, None].astype(np.float64)
    i = np.arange(0, d, 2)[None, :].astype(np.float64)
    div = np.exp(-math.log(10000.0) * i / d)
    pe = np.zeros((seq_len, d), dtype=np.float64)
    pe[:, 0::2] = np.sin(pos * div)
    pe[:, 1::2] = np.cos(pos * div)
    return jnp.asarray(pe, jnp.float32)


def init_params(key, *, in_vocab, tgt_vocab, in_seq, tgt_seq, D, n_heads,
                n_enc, n_dec, expand):
    assert D % n_heads == 0
    Dff = D * expand
    hd = D // n_heads
    keys = iter(jax.random.split(key, 512))

    def nrm(shape, scale=0.02):
        return scale * jax.random.normal(next(keys), shape, dtype=jnp.float32)

    def attn_params():
        # Torch Linear weights stored transposed (in_features, out_features): y = x @ W.
        # 1/sqrt(head_dim) folded into Wq (one-time host-side scale).
        wq = nrm((D, D)) * (1.0 / math.sqrt(hd))
        wk, wv, wo = nrm((D, D)), nrm((D, D)), nrm((D, D))
        return dict(
            # heads become a leading axis -> no lane-offset slicing inside the kernel
            wq=wq.reshape(D, n_heads, hd).transpose(1, 0, 2).astype(jnp.bfloat16),
            wk=wk.reshape(D, n_heads, hd).transpose(1, 0, 2).astype(jnp.bfloat16),
            wv=wv.reshape(D, n_heads, hd).transpose(1, 0, 2).astype(jnp.bfloat16),
            wo=wo.reshape(n_heads, hd, D).astype(jnp.bfloat16),
        )

    def ln_params():
        return dict(g=jnp.ones((1, D), jnp.float32), b=jnp.zeros((1, D), jnp.float32))

    def ffn_params():
        return dict(w1=nrm((D, Dff)).astype(jnp.bfloat16),
                    b1=jnp.zeros((1, Dff), jnp.float32),
                    w2=nrm((Dff, D)).astype(jnp.bfloat16),
                    b2=jnp.zeros((1, D), jnp.float32))

    sqrt_d = math.sqrt(D)
    params = dict(
        inp_emb=nrm((in_vocab, D), 1.0) * sqrt_d,   # sqrt(D) scale folded into table
        tgt_emb=nrm((tgt_vocab, D), 1.0) * sqrt_d,
        pe_in=sinusoidal_pe(in_seq, D),
        pe_tgt=sinusoidal_pe(tgt_seq, D),
        enc_blocks=[dict(ln1=ln_params(), attn=attn_params(),
                         ln2=ln_params(), ffn=ffn_params()) for _ in range(n_enc)],
        enc_ln=ln_params(),
        dec_blocks=[dict(ln1=ln_params(), self_attn=attn_params(),
                         ln2=ln_params(), cross_attn=attn_params(),
                         ln3=ln_params(), ffn=ffn_params()) for _ in range(n_dec)],
        dec_ln=ln_params(),
        proj_w=nrm((D, tgt_vocab)).astype(jnp.bfloat16),
        proj_b=jnp.zeros((1, tgt_vocab), jnp.float32),
    )
    return params


# ----------------------------------------------------------------------------
# Full forward pass
# ----------------------------------------------------------------------------

def transformer_forward(params, enc_tokens, dec_tokens, num_heads):
    # Embedding lookup (data-dependent gather) stays in XLA; the sqrt(D) scale is
    # already folded into the tables, so only a single PE add remains here.
    x = params["inp_emb"][enc_tokens] + params["pe_in"][None, :enc_tokens.shape[1]]
    for blk in params["enc_blocks"]:
        x = fused_self_attention(x, blk["ln1"], blk["attn"], num_heads)
        x = fused_ln_ffn(x, blk["ln2"], blk["ffn"])
    enc_out = layernorm(x, params["enc_ln"])

    y = params["tgt_emb"][dec_tokens] + params["pe_tgt"][None, :dec_tokens.shape[1]]
    for blk in params["dec_blocks"]:
        y = fused_self_attention(y, blk["ln1"], blk["self_attn"], num_heads)
        y = fused_cross_attention(y, enc_out, blk["ln2"], blk["cross_attn"], num_heads)
        y = fused_ln_ffn(y, blk["ln3"], blk["ffn"])

    # Masks are constructed in the PyTorch source but have no effect there
    # (non-in-place masked_fill result discarded) -> faithfully ignored here.
    return fused_ln_projection(y, params["dec_ln"], params["proj_w"], params["proj_b"])


# ----------------------------------------------------------------------------
# Main
# ----------------------------------------------------------------------------

if __name__ == "__main__":
    B = 2
    IN_VOCAB, TGT_VOCAB = 16, 16
    IN_SEQ, TGT_SEQ = 8, 8
    D = 32
    NUM_HEADS = 4
    N_ENC, N_DEC = 2, 2
    EXPAND = 4

    key = jax.random.PRNGKey(0)
    kp, ke, kd = jax.random.split(key, 3)

    params = init_params(kp, in_vocab=IN_VOCAB, tgt_vocab=TGT_VOCAB,
                         in_seq=IN_SEQ, tgt_seq=TGT_SEQ, D=D, n_heads=NUM_HEADS,
                         n_enc=N_ENC, n_dec=N_DEC, expand=EXPAND)

    enc_tokens = jax.random.randint(ke, (B, IN_SEQ), 0, IN_VOCAB)
    dec_tokens = jax.random.randint(kd, (B, TGT_SEQ), 0, TGT_VOCAB)

    fwd = jax.jit(functools.partial(transformer_forward, num_heads=NUM_HEADS))
    logits = fwd(params, enc_tokens, dec_tokens)
    logits = jax.block_until_ready(logits)

    assert logits.shape == (B, TGT_SEQ, TGT_VOCAB)
    assert bool(jnp.all(jnp.isfinite(logits)))
    print("KERNEL_OK")
</pallas_src>

<mosaic_0001>
module attributes {stable_mosaic.version = 11 : i64} {
  func.func @_fused_self_attn_kernel(%arg0: i32, %arg1: memref<1x8x32xf32, #tpu.memory_space<vmem>>, %arg2: memref<1x32xf32, #tpu.memory_space<vmem>>, %arg3: memref<1x32xf32, #tpu.memory_space<vmem>>, %arg4: memref<4x32x8xbf16, #tpu.memory_space<vmem>>, %arg5: memref<4x32x8xbf16, #tpu.memory_space<vmem>>, %arg6: memref<4x32x8xbf16, #tpu.memory_space<vmem>>, %arg7: memref<4x8x32xbf16, #tpu.memory_space<vmem>>, %arg8: memref<1x8x32xf32, #tpu.memory_space<vmem>>) attributes {dimension_semantics = [#tpu.dimension_semantics<parallel>], iteration_bounds = array<i64: 2>, scalar_prefetch = 0 : i64, scratch_operands = 0 : i64, tpu.core_type = #tpu.core_type<tc>, window_params = [{transform_indices = @transform_0, window_bounds = array<i64: 1, 8, 32>}, {pipeline_mode = #tpu.pipeline_mode<synchronous>, transform_indices = @transform_1, window_bounds = array<i64: 1, 32>}, {pipeline_mode = #tpu.pipeline_mode<synchronous>, transform_indices = @transform_2, window_bounds = array<i64: 1, 32>}, {pipeline_mode = #tpu.pipeline_mode<synchronous>, transform_indices = @transform_3, window_bounds = array<i64: 4, 32, 8>}, {pipeline_mode = #tpu.pipeline_mode<synchronous>, transform_indices = @transform_4, window_bounds = array<i64: 4, 32, 8>}, {pipeline_mode = #tpu.pipeline_mode<synchronous>, transform_indices = @transform_5, window_bounds = array<i64: 4, 32, 8>}, {pipeline_mode = #tpu.pipeline_mode<synchronous>, transform_indices = @transform_6, window_bounds = array<i64: 4, 8, 32>}, {transform_indices = @transform_7, window_bounds = array<i64: 1, 8, 32>}]} {
    %c0 = arith.constant 0 : index
    %c0_0 = arith.constant 0 : index
    %c0_1 = arith.constant 0 : index
    %0 = vector.load %arg1[%c0, %c0_0, %c0_1] : memref<1x8x32xf32, #tpu.memory_space<vmem>>, vector<1x8x32xf32>
    %1 = vector.shape_cast %0 : vector<1x8x32xf32> to vector<8x32xf32>
    %c0_2 = arith.constant 0 : index
    %c0_3 = arith.constant 0 : index
    %2 = vector.load %arg2[%c0_2, %c0_3] : memref<1x32xf32, #tpu.memory_space<vmem>>, vector<1x32xf32>
    %3 = vector.shape_cast %2 : vector<1x32xf32> to vector<32xf32>
    %c0_4 = arith.constant 0 : index
    %c0_5 = arith.constant 0 : index
    %4 = vector.load %arg3[%c0_4, %c0_5] : memref<1x32xf32, #tpu.memory_space<vmem>>, vector<1x32xf32>
    %5 = vector.shape_cast %4 : vector<1x32xf32> to vector<32xf32>
    %cst = arith.constant dense<0.000000e+00> : vector<8xf32>
    %6 = vector.multi_reduction <add>, %1, %cst [1] : vector<8x32xf32> to vector<8xf32>
    %7 = vector.shape_cast %6 : vector<8xf32> to vector<8x1xf32>
    %cst_6 = arith.constant 3.200000e+01 : f32
    %8 = vector.broadcast %cst_6 : f32 to vector<8x1xf32>
    %9 = arith.divf %7, %8 : vector<8x1xf32>
    %10 = vector.broadcast %9 : vector<8x1xf32> to vector<8x32xf32>
    %11 = arith.subf %1, %10 : vector<8x32xf32>
    %12 = arith.mulf %11, %11 : vector<8x32xf32>
    %cst_7 = arith.constant dense<0.000000e+00> : vector<8xf32>
    %13 = vector.multi_reduction <add>, %12, %cst_7 [1] : vector<8x32xf32> to vector<8xf32>
    %14 = vector.shape_cast %13 : vector<8xf32> to vector<8x1xf32>
    %cst_8 = arith.constant 3.200000e+01 : f32
    %15 = vector.broadcast %cst_8 : f32 to vector<8x1xf32>
    %16 = arith.divf %14, %15 : vector<8x1xf32>
    %17 = vector.broadcast %9 : vector<8x1xf32> to vector<8x32xf32>
    %18 = arith.subf %1, %17 : vector<8x32xf32>
    %cst_9 = arith.constant 9.99999974E-6 : f32
    %19 = vector.broadcast %cst_9 : f32 to vector<8x1xf32>
    %20 = arith.addf %16, %19 : vector<8x1xf32>
    %21 = math.rsqrt %20 : vector<8x1xf32>
    %22 = vector.broadcast %21 : vector<8x1xf32> to vector<8x32xf32>
    %23 = arith.mulf %18, %22 : vector<8x32xf32>
    %24 = vector.shape_cast %3 : vector<32xf32> to vector<1x32xf32>
    %25 = vector.broadcast %24 : vector<1x32xf32> to vector<8x32xf32>
    %26 = arith.mulf %23, %25 : vector<8x32xf32>
    %27 = vector.shape_cast %5 : vector<32xf32> to vector<1x32xf32>
    %28 = vector.broadcast %27 : vector<1x32xf32> to vector<8x32xf32>
    %29 = arith.addf %26, %28 : vector<8x32xf32>
    %30 = arith.truncf %29 : vector<8x32xf32> to vector<8x32xbf16>
    %31 = arith.truncf %29 : vector<8x32xf32> to vector<8x32xbf16>
    %cst_10 = arith.constant 0.000000e+00 : f32
    %32 = vector.broadcast %cst_10 : f32 to vector<8x32xf32>
    %c0_11 = arith.constant 0 : index
    %c0_12 = arith.constant 0 : index
    %c0_13 = arith.constant 0 : index
    %33 = vector.load %arg4[%c0_11, %c0_12, %c0_13] : memref<4x32x8xbf16, #tpu.memory_space<vmem>>, vector<1x32x8xbf16>
    %34 = vector.shape_cast %33 : vector<1x32x8xbf16> to vector<32x8xbf16>
    %cst_14 = arith.constant dense<0.000000e+00> : vector<8x8xf32>
    %35 = tpu.matmul %30, %34, %cst_14 {dimension_numbers = #tpu.dot_dimension_numbers<[1], [0], [0], [1], [0, 0, 1, 1], [], []>} : vector<8x32xbf16>, vector<32x8xbf16>, vector<8x8xf32> -> vector<8x8xf32>
    %c0_15 = arith.constant 0 : index
    %c0_16 = arith.constant 0 : index
    %c0_17 = arith.constant 0 : index
    %36 = vector.load %arg5[%c0_15, %c0_16, %c0_17] : memref<4x32x8xbf16, #tpu.memory_space<vmem>>, vector<1x32x8xbf16>
    %37 = vector.shape_cast %36 : vector<1x32x8xbf16> to vector<32x8xbf16>
    %cst_18 = arith.constant dense<0.000000e+00> : vector<8x8xf32>
    %38 = tpu.matmul %31, %37, %cst_18 {dimension_numbers = #tpu.dot_dimension_numbers<[1], [0], [0], [1], [0, 0, 1, 1], [], []>} : vector<8x32xbf16>, vector<32x8xbf16>, vector<8x8xf32> -> vector<8x8xf32>
    %c0_19 = arith.constant 0 : index
    %c0_20 = arith.constant 0 : index
    %c0_21 = arith.constant 0 : index
    %39 = vector.load %arg6[%c0_19, %c0_20, %c0_21] : memref<4x32x8xbf16, #tpu.memory_space<vmem>>, vector<1x32x8xbf16>
    %40 = vector.shape_cast %39 : vector<1x32x8xbf16> to vector<32x8xbf16>
    %cst_22 = arith.constant dense<0.000000e+00> : vector<8x8xf32>
    %41 = tpu.matmul %31, %40, %cst_22 {dimension_numbers = #tpu.dot_dimension_numbers<[1], [0], [0], [1], [0, 0, 1, 1], [], []>} : vector<8x32xbf16>, vector<32x8xbf16>, vector<8x8xf32> -> vector<8x8xf32>
    %42 = arith.truncf %35 : vector<8x8xf32> to vector<8x8xbf16>
    %43 = arith.truncf %38 : vector<8x8xf32> to vector<8x8xbf16>
    %cst_23 = arith.constant dense<0.000000e+00> : vector<8x8xf32>
    %44 = tpu.matmul %42, %43, %cst_23 {dimension_numbers = #tpu.dot_dimension_numbers<[1], [1], [0], [0], [0, 0, 1, 0], [], []>} : vector<8x8xbf16>, vector<8x8xbf16>, vector<8x8xf32> -> vector<8x8xf32>
    %cst_24 = arith.constant dense<0xFF800000> : vector<8xf32>
    %45 = vector.multi_reduction <maximumf>, %44, %cst_24 [1] : vector<8x8xf32> to vector<8xf32>
    %46 = vector.shape_cast %45 : vector<8xf32> to vector<8x1xf32>
    %47 = vector.broadcast %46 : vector<8x1xf32> to vector<8x8xf32>
    %48 = arith.subf %44, %47 : vector<8x8xf32>
    %49 = math.exp %48 : vector<8x8xf32>
    %cst_25 = arith.constant dense<0.000000e+00> : vector<8xf32>
    %50 = vector.multi_reduction <add>, %49, %cst_25 [1] : vector<8x8xf32> to vector<8xf32>
    %51 = vector.shape_cast %50 : vector<8xf32> to vector<8x1xf32>
    %52 = tpu.reciprocal %51 {approx = true} : vector<8x1xf32> -> vector<8x1xf32>
    %53 = vector.broadcast %52 : vector<8x1xf32> to vector<8x8xf32>
    %54 = arith.mulf %49, %53 : vector<8x8xf32>
    %55 = arith.truncf %54 : vector<8x8xf32> to vector<8x8xbf16>
    %56 = arith.truncf %41 : vector<8x8xf32> to vector<8x8xbf16>
    %cst_26 = arith.constant dense<0.000000e+00> : vector<8x8xf32>
    %57 = tpu.matmul %55, %56, %cst_26 {dimension_numbers = #tpu.dot_dimension_numbers<[1], [0], [0], [1], [0, 0, 1, 1], [], []>} : vector<8x8xbf16>, vector<8x8xbf16>, vector<8x8xf32> -> vector<8x8xf32>
    %58 = arith.truncf %57 : vector<8x8xf32> to vector<8x8xbf16>
    %c0_27 = arith.constant 0 : index
    %c0_28 = arith.constant 0 : index
    %c0_29 = arith.constant 0 : index
    %59 = vector.load %arg7[%c0_27, %c0_28, %c0_29] : memref<4x8x32xbf16, #tpu.memory_space<vmem>>, vector<1x8x32xbf16>
    %60 = vector.shape_cast %59 : vector<1x8x32xbf16> to vector<8x32xbf16>
    %cst_30 = arith.constant dense<0.000000e+00> : vector<8x32xf32>
    %61 = tpu.matmul %58, %60, %cst_30 {dimension_numbers = #tpu.dot_dimension_numbers<[1], [0], [0], [1], [0, 0, 1, 1], [], []>} : vector<8x8xbf16>, vector<8x32xbf16>, vector<8x32xf32> -> vector<8x32xf32>
    %62 = arith.addf %32, %61 : vector<8x32xf32>
    %c1 = arith.constant 1 : index
    %c0_31 = arith.constant 0 : index
    %c0_32 = arith.constant 0 : index
    %63 = vector.load %arg4[%c1, %c0_31, %c0_32] : memref<4x32x8xbf16, #tpu.memory_space<vmem>>, vector<1x32x8xbf16>
    %64 = vector.shape_cast %63 : vector<1x32x8xbf16> to vector<32x8xbf16>
    %cst_33 = arith.constant dense<0.000000e+00> : vector<8x8xf32>
    %65 = tpu.matmul %30, %64, %cst_33 {dimension_numbers = #tpu.dot_dimension_numbers<[1], [0], [0], [1], [0, 0, 1, 1], [], []>} : vector<8x32xbf16>, vector<32x8xbf16>, vector<8x8xf32> -> vector<8x8xf32>
    %c1_34 = arith.constant 1 : index
    %c0_35 = arith.constant 0 : index
    %c0_36 = arith.constant 0 : index
    %66 = vector.load %arg5[%c1_34, %c0_35, %c0_36] : memref<4x32x8xbf16, #tpu.memory_space<vmem>>, vector<1x32x8xbf16>
    %67 = vector.shape_cast %66 : vector<1x32x8xbf16> to vector<32x8xbf16>
    %cst_37 = arith.constant dense<0.000000e+00> : vector<8x8xf32>
    %68 = tpu.matmul %31, %67, %cst_37 {dimension_numbers = #tpu.dot_dimension_numbers<[1], [0], [0], [1], [0, 0, 1, 1], [], []>} : vector<8x32xbf16>, vector<32x8xbf16>, vector<8x8xf32> -> vector<8x8xf32>
    %c1_38 = arith.constant 1 : index
    %c0_39 = arith.constant 0 : index
    %c0_40 = arith.constant 0 : index
    %69 = vector.load %arg6[%c1_38, %c0_39, %c0_40] : memref<4x32x8xbf16, #tpu.memory_space<vmem>>, vector<1x32x8xbf16>
    %70 = vector.shape_cast %69 : vector<1x32x8xbf16> to vector<32x8xbf16>
    %cst_41 = arith.constant dense<0.000000e+00> : vector<8x8xf32>
    %71 = tpu.matmul %31, %70, %cst_41 {dimension_numbers = #tpu.dot_dimension_numbers<[1], [0], [0], [1], [0, 0, 1, 1], [], []>} : vector<8x32xbf16>, vector<32x8xbf16>, vector<8x8xf32> -> vector<8x8xf32>
    %72 = arith.truncf %65 : vector<8x8xf32> to vector<8x8xbf16>
    %73 = arith.truncf %68 : vector<8x8xf32> to vector<8x8xbf16>
    %cst_42 = arith.constant dense<0.000000e+00> : vector<8x8xf32>
    %74 = tpu.matmul %72, %73, %cst_42 {dimension_numbers = #tpu.dot_dimension_numbers<[1], [1], [0], [0], [0, 0, 1, 0], [], []>} : vector<8x8xbf16>, vector<8x8xbf16>, vector<8x8xf32> -> vector<8x8xf32>
    %cst_43 = arith.constant dense<0xFF800000> : vector<8xf32>
    %75 = vector.multi_reduction <maximumf>, %74, %cst_43 [1] : vector<8x8xf32> to vector<8xf32>
    %76 = vector.shape_cast %75 : vector<8xf32> to vector<8x1xf32>
    %77 = vector.broadcast %76 : vector<8x1xf32> to vector<8x8xf32>
    %78 = arith.subf %74, %77 : vector<8x8xf32>
    %79 = math.exp %78 : vector<8x8xf32>
    %cst_44 = arith.constant dense<0.000000e+00> : vector<8xf32>
    %80 = vector.multi_reduction <add>, %79, %cst_44 [1] : vector<8x8xf32> to vector<8xf32>
    %81 = vector.shape_cast %80 : vector<8xf32> to vector<8x1xf32>
    %82 = tpu.reciprocal %81 {approx = true} : vector<8x1xf32> -> vector<8x1xf32>
    %83 = vector.broadcast %82 : vector<8x1xf32> to vector<8x8xf32>
    %84 = arith.mulf %79, %83 : vector<8x8xf32>
    %85 = arith.truncf %84 : vector<8x8xf32> to vector<8x8xbf16>
    %86 = arith.truncf %71 : vector<8x8xf32> to vector<8x8xbf16>
    %cst_45 = arith.constant dense<0.000000e+00> : vector<8x8xf32>
    %87 = tpu.matmul %85, %86, %cst_45 {dimension_numbers = #tpu.dot_dimension_numbers<[1], [0], [0], [1], [0, 0, 1, 1], [], []>} : vector<8x8xbf16>, vector<8x8xbf16>, vector<8x8xf32> -> vector<8x8xf32>
    %88 = arith.truncf %87 : vector<8x8xf32> to vector<8x8xbf16>
    %c1_46 = arith.constant 1 : index
    %c0_47 = arith.constant 0 : index
    %c0_48 = arith.constant 0 : index
    %89 = vector.load %arg7[%c1_46, %c0_47, %c0_48] : memref<4x8x32xbf16, #tpu.memory_space<vmem>>, vector<1x8x32xbf16>
    %90 = vector.shape_cast %89 : vector<1x8x32xbf16> to vector<8x32xbf16>
    %cst_49 = arith.constant dense<0.000000e+00> : vector<8x32xf32>
    %91 = tpu.matmul %88, %90, %cst_49 {dimension_numbers = #tpu.dot_dimension_numbers<[1], [0], [0], [1], [0, 0, 1, 1], [], []>} : vector<8x8xbf16>, vector<8x32xbf16>, vector<8x32xf32> -> vector<8x32xf32>
    %92 = arith.addf %62, %91 : vector<8x32xf32>
    %c2 = arith.constant 2 : index
    %c0_50 = arith.constant 0 : index
    %c0_51 = arith.constant 0 : index
    %93 = vector.load %arg4[%c2, %c0_50, %c0_51] : memref<4x32x8xbf16, #tpu.memory_space<vmem>>, vector<1x32x8xbf16>
    %94 = vector.shape_cast %93 : vector<1x32x8xbf16> to vector<32x8xbf16>
    %cst_52 = arith.constant dense<0.000000e+00> : vector<8x8xf32>
    %95 = tpu.matmul %30, %94, %cst_52 {dimension_numbers = #tpu.dot_dimension_numbers<[1], [0], [0], [1], [0, 0, 1, 1], [], []>} : vector<8x32xbf16>, vector<32x8xbf16>, vector<8x8xf32> -> vector<8x8xf32>
    %c2_53 = arith.constant 2 : index
    %c0_54 = arith.constant 0 : index
    %c0_55 = arith.constant 0 : index
    %96 = vector.load %arg5[%c2_53, %c0_54, %c0_55] : memref<4x32x8xbf16, #tpu.memory_space<vmem>>, vector<1x32x8xbf16>
    %97 = vector.shape_cast %96 : vector<1x32x8xbf16> to vector<32x8xbf16>
    %cst_56 = arith.constant dense<0.000000e+00> : vector<8x8xf32>
    %98 = tpu.matmul %31, %97, %cst_56 {dimension_numbers = #tpu.dot_dimension_numbers<[1], [0], [0], [1], [0, 0, 1, 1], [], []>} : vector<8x32xbf16>, vector<32x8xbf16>, vector<8x8xf32> -> vector<8x8xf32>
    %c2_57 = arith.constant 2 : index
    %c0_58 = arith.constant 0 : index
    %c0_59 = arith.constant 0 : index
    %99 = vector.load %arg6[%c2_57, %c0_58, %c0_59] : memref<4x32x8xbf16, #tpu.memory_space<vmem>>, vector<1x32x8xbf16>
    %100 = vector.shape_cast %99 : vector<1x32x8xbf16> to vector<32x8xbf16>
    %cst_60 = arith.constant dense<0.000000e+00> : vector<8x8xf32>
    %101 = tpu.matmul %31, %100, %cst_60 {dimension_numbers = #tpu.dot_dimension_numbers<[1], [0], [0], [1], [0, 0, 1, 1], [], []>} : vector<8x32xbf16>, vector<32x8xbf16>, vector<8x8xf32> -> vector<8x8xf32>
    %102 = arith.truncf %95 : vector<8x8xf32> to vector<8x8xbf16>
    %103 = arith.truncf %98 : vector<8x8xf32> to vector<8x8xbf16>
    %cst_61 = arith.constant dense<0.000000e+00> : vector<8x8xf32>
    %104 = tpu.matmul %102, %103, %cst_61 {dimension_numbers = #tpu.dot_dimension_numbers<[1], [1], [0], [0], [0, 0, 1, 0], [], []>} : vector<8x8xbf16>, vector<8x8xbf16>, vector<8x8xf32> -> vector<8x8xf32>
    %cst_62 = arith.constant dense<0xFF800000> : vector<8xf32>
    %105 = vector.multi_reduction <maximumf>, %104, %cst_62 [1] : vector<8x8xf32> to vector<8xf32>
    %106 = vector.shape_cast %105 : vector<8xf32> to vector<8x1xf32>
    %107 = vector.broadcast %106 : vector<8x1xf32> to vector<8x8xf32>
    %108 = arith.subf %104, %107 : vector<8x8xf32>
    %109 = math.exp %108 : vector<8x8xf32>
    %cst_63 = arith.constant dense<0.000000e+00> : vector<8xf32>
    %110 = vector.multi_reduction <add>, %109, %cst_63 [1] : vector<8x8xf32> to vector<8xf32>
    %111 = vector.shape_cast %110 : vector<8xf32> to vector<8x1xf32>
    %112 = tpu.reciprocal %111 {approx = true} : vector<8x1xf32> -> vector<8x1xf32>
    %113 = vector.broadcast %112 : vector<8x1xf32> to vector<8x8xf32>
    %114 = arith.mulf %109, %113 : vector<8x8xf32>
    %115 = arith.truncf %114 : vector<8x8xf32> to vector<8x8xbf16>
    %116 = arith.truncf %101 : vector<8x8xf32> to vector<8x8xbf16>
    %cst_64 = arith.constant dense<0.000000e+00> : vector<8x8xf32>
    %117 = tpu.matmul %115, %116, %cst_64 {dimension_numbers = #tpu.dot_dimension_numbers<[1], [0], [0], [1], [0, 0, 1, 1], [], []>} : vector<8x8xbf16>, vector<8x8xbf16>, vector<8x8xf32> -> vector<8x8xf32>
    %118 = arith.truncf %117 : vector<8x8xf32> to vector<8x8xbf16>
    %c2_65 = arith.constant 2 : index
    %c0_66 = arith.constant 0 : index
    %c0_67 = arith.constant 0 : index
    %119 = vector.load %arg7[%c2_65, %c0_66, %c0_67] : memref<4x8x32xbf16, #tpu.memory_space<vmem>>, vector<1x8x32xbf16>
    %120 = vector.shape_cast %119 : vector<1x8x32xbf16> to vector<8x32xbf16>
    %cst_68 = arith.constant dense<0.000000e+00> : vector<8x32xf32>
    %121 = tpu.matmul %118, %120, %cst_68 {dimension_numbers = #tpu.dot_dimension_numbers<[1], [0], [0], [1], [0, 0, 1, 1], [], []>} : vector<8x8xbf16>, vector<8x32xbf16>, vector<8x32xf32> -> vector<8x32xf32>
    %122 = arith.addf %92, %121 : vector<8x32xf32>
    %c3 = arith.constant 3 : index
    %c0_69 = arith.constant 0 : index
    %c0_70 = arith.constant 0 : index
    %123 = vector.load %arg4[%c3, %c0_69, %c0_70] : memref<4x32x8xbf16, #tpu.memory_space<vmem>>, vector<1x32x8xbf16>
    %124 = vector.shape_cast %123 : vector<1x32x8xbf16> to vector<32x8xbf16>
    %cst_71 = arith.constant dense<0.000000e+00> : vector<8x8xf32>
    %125 = tpu.matmul %30, %124, %cst_71 {dimension_numbers = #tpu.dot_dimension_numbers<[1], [0], [0], [1], [0, 0, 1, 1], [], []>} : vector<8x32xbf16>, vector<32x8xbf16>, vector<8x8xf32> -> vector<8x8xf32>
    %c3_72 = arith.constant 3 : index
    %c0_73 = arith.constant 0 : index
    %c0_74 = arith.constant 0 : index
    %126 = vector.load %arg5[%c3_72, %c0_73, %c0_74] : memref<4x32x8xbf16, #tpu.memory_space<vmem>>, vector<1x32x8xbf16>
    %127 = vector.shape_cast %126 : vector<1x32x8xbf16> to vector<32x8xbf16>
    %cst_75 = arith.constant dense<0.000000e+00> : vector<8x8xf32>
    %128 = tpu.matmul %31, %127, %cst_75 {dimension_numbers = #tpu.dot_dimension_numbers<[1], [0], [0], [1], [0, 0, 1, 1], [], []>} : vector<8x32xbf16>, vector<32x8xbf16>, vector<8x8xf32> -> vector<8x8xf32>
    %c3_76 = arith.constant 3 : index
    %c0_77 = arith.constant 0 : index
    %c0_78 = arith.constant 0 : index
    %129 = vector.load %arg6[%c3_76, %c0_77, %c0_78] : memref<4x32x8xbf16, #tpu.memory_space<vmem>>, vector<1x32x8xbf16>
    %130 = vector.shape_cast %129 : vector<1x32x8xbf16> to vector<32x8xbf16>
    %cst_79 = arith.constant dense<0.000000e+00> : vector<8x8xf32>
    %131 = tpu.matmul %31, %130, %cst_79 {dimension_numbers = #tpu.dot_dimension_numbers<[1], [0], [0], [1], [0, 0, 1, 1], [], []>} : vector<8x32xbf16>, vector<32x8xbf16>, vector<8x8xf32> -> vector<8x8xf32>
    %132 = arith.truncf %125 : vector<8x8xf32> to vector<8x8xbf16>
    %133 = arith.truncf %128 : vector<8x8xf32> to vector<8x8xbf16>
    %cst_80 = arith.constant dense<0.000000e+00> : vector<8x8xf32>
    %134 = tpu.matmul %132, %133, %cst_80 {dimension_numbers = #tpu.dot_dimension_numbers<[1], [1], [0], [0], [0, 0, 1, 0], [], []>} : vector<8x8xbf16>, vector<8x8xbf16>, vector<8x8xf32> -> vector<8x8xf32>
    %cst_81 = arith.constant dense<0xFF800000> : vector<8xf32>
    %135 = vector.multi_reduction <maximumf>, %134, %cst_81 [1] : vector<8x8xf32> to vector<8xf32>
    %136 = vector.shape_cast %135 : vector<8xf32> to vector<8x1xf32>
    %137 = vector.broadcast %136 : vector<8x1xf32> to vector<8x8xf32>
    %138 = arith.subf %134, %137 : vector<8x8xf32>
    %139 = math.exp %138 : vector<8x8xf32>
    %cst_82 = arith.constant dense<0.000000e+00> : vector<8xf32>
    %140 = vector.multi_reduction <add>, %139, %cst_82 [1] : vector<8x8xf32> to vector<8xf32>
    %141 = vector.shape_cast %140 : vector<8xf32> to vector<8x1xf32>
    %142 = tpu.reciprocal %141 {approx = true} : vector<8x1xf32> -> vector<8x1xf32>
    %143 = vector.broadcast %142 : vector<8x1xf32> to vector<8x8xf32>
    %144 = arith.mulf %139, %143 : vector<8x8xf32>
    %145 = arith.truncf %144 : vector<8x8xf32> to vector<8x8xbf16>
    %146 = arith.truncf %131 : vector<8x8xf32> to vector<8x8xbf16>
    %cst_83 = arith.constant dense<0.000000e+00> : vector<8x8xf32>
    %147 = tpu.matmul %145, %146, %cst_83 {dimension_numbers = #tpu.dot_dimension_numbers<[1], [0], [0], [1], [0, 0, 1, 1], [], []>} : vector<8x8xbf16>, vector<8x8xbf16>, vector<8x8xf32> -> vector<8x8xf32>
    %148 = arith.truncf %147 : vector<8x8xf32> to vector<8x8xbf16>
    %c3_84 = arith.constant 3 : index
    %c0_85 = arith.constant 0 : index
    %c0_86 = arith.constant 0 : index
    %149 = vector.load %arg7[%c3_84, %c0_85, %c0_86] : memref<4x8x32xbf16, #tpu.memory_space<vmem>>, vector<1x8x32xbf16>
    %150 = vector.shape_cast %149 : vector<1x8x32xbf16> to vector<8x32xbf16>
    %cst_87 = arith.constant dense<0.000000e+00> : vector<8x32xf32>
    %151 = tpu.matmul %148, %150, %cst_87 {dimension_numbers = #tpu.dot_dimension_numbers<[1], [0], [0], [1], [0, 0, 1, 1], [], []>} : vector<8x8xbf16>, vector<8x32xbf16>, vector<8x32xf32> -> vector<8x32xf32>
    %152 = arith.addf %122, %151 : vector<8x32xf32>
    %153 = arith.addf %1, %152 : vector<8x32xf32>
    %c0_88 = arith.constant 0 : index
    %c0_89 = arith.constant 0 : index
    %c0_90 = arith.constant 0 : index
    %154 = vector.load %arg8[%c0_88, %c0_89, %c0_90] : memref<1x8x32xf32, #tpu.memory_space<vmem>>, vector<1x8x32xf32>
    %155 = vector.shape_cast %154 : vector<1x8x32xf32> to vector<8x32xf32>
    %156 = vector.shape_cast %153 : vector<8x32xf32> to vector<1x8x32xf32>
    tpu.vector_store %arg8[%c0_88, %c0_89, %c0_90], %156 {strides = array<i32>} : memref<1x8x32xf32, #tpu.memory_space<vmem>>, vector<1x8x32xf32>,
    return
  }
  func.func @transform_0(%arg0: i32) -> (i32, i32, i32) {
    %c0_i32 = arith.constant 0 : i32
    %c0_i32_0 = arith.constant 0 : i32
    %c0_i32_1 = arith.constant 0 : i32
    return %arg0, %c0_i32, %c0_i32_0 : i32, i32, i32
  }
  func.func @transform_1(%arg0: i32) -> (i32, i32) {
    %c0_i32 = arith.constant 0 : i32
    %c0_i32_0 = arith.constant 0 : i32
    %c0_i32_1 = arith.constant 0 : i32
    return %c0_i32, %c0_i32_0 : i32, i32
  }
  func.func @transform_2(%arg0: i32) -> (i32, i32) {
    %c0_i32 = arith.constant 0 : i32
    %c0_i32_0 = arith.constant 0 : i32
    %c0_i32_1 = arith.constant 0 : i32
    return %c0_i32, %c0_i32_0 : i32, i32
  }
  func.func @transform_3(%arg0: i32) -> (i32, i32, i32) {
    %c0_i32 = arith.constant 0 : i32
    %c0_i32_0 = arith.constant 0 : i32
    %c0_i32_1 = arith.constant 0 : i32
    %c0_i32_2 = arith.constant 0 : i32
    return %c0_i32, %c0_i32_0, %c0_i32_1 : i32, i32, i32
  }
  func.func @transform_4(%arg0: i32) -> (i32, i32, i32) {
    %c0_i32 = arith.constant 0 : i32
    %c0_i32_0 = arith.constant 0 : i32
    %c0_i32_1 = arith.constant 0 : i32
    %c0_i32_2 = arith.constant 0 : i32
    return %c0_i32, %c0_i32_0, %c0_i32_1 : i32, i32, i32
  }
  func.func @transform_5(%arg0: i32) -> (i32, i32, i32) {
    %c0_i32 = arith.constant 0 : i32
    %c0_i32_0 = arith.constant 0 : i32
    %c0_i32_1 = arith.constant 0 : i32
    %c0_i32_2 = arith.constant 0 : i32
    return %c0_i32, %c0_i32_0, %c0_i32_1 : i32, i32, i32
  }
  func.func @transform_6(%arg0: i32) -> (i32, i32, i32) {
    %c0_i32 = arith.constant 0 : i32
    %c0_i32_0 = arith.constant 0 : i32
    %c0_i32_1 = arith.constant 0 : i32
    %c0_i32_2 = arith.constant 0 : i32
    return %c0_i32, %c0_i32_0, %c0_i32_1 : i32, i32, i32
  }
  func.func @transform_7(%arg0: i32) -> (i32, i32, i32) {
    %c0_i32 = arith.constant 0 : i32
    %c0_i32_0 = arith.constant 0 : i32
    %c0_i32_1 = arith.constant 0 : i32
    return %arg0, %c0_i32, %c0_i32_0 : i32, i32, i32
  }
}

module attributes {stable_mosaic.version = 11 : i64} {
  func.func @_ln_kernel(%arg0: i32, %arg1: memref<16x32xf32, #tpu.memory_space<vmem>>, %arg2: memref<1x32xf32, #tpu.memory_space<vmem>>, %arg3: memref<1x32xf32, #tpu.memory_space<vmem>>, %arg4: memref<16x32xf32, #tpu.memory_space<vmem>>) attributes {dimension_semantics = [#tpu.dimension_semantics<parallel>], iteration_bounds = array<i64: 1>, scalar_prefetch = 0 : i64, scratch_operands = 0 : i64, tpu.core_type = #tpu.core_type<tc>, window_params = [{transform_indices = @transform_0, window_bounds = array<i64: 16, 32>}, {pipeline_mode = #tpu.pipeline_mode<synchronous>, transform_indices = @transform_1, window_bounds = array<i64: 1, 32>}, {pipeline_mode = #tpu.pipeline_mode<synchronous>, transform_indices = @transform_2, window_bounds = array<i64: 1, 32>}, {transform_indices = @transform_3, window_bounds = array<i64: 16, 32>}]} {
    %c0 = arith.constant 0 : index
    %c0_0 = arith.constant 0 : index
    %0 = vector.load %arg1[%c0, %c0_0] : memref<16x32xf32, #tpu.memory_space<vmem>>, vector<16x32xf32>
    %c0_1 = arith.constant 0 : index
    %c0_2 = arith.constant 0 : index
    %1 = vector.load %arg2[%c0_1, %c0_2] : memref<1x32xf32, #tpu.memory_space<vmem>>, vector<1x32xf32>
    %2 = vector.shape_cast %1 : vector<1x32xf32> to vector<32xf32>
    %c0_3 = arith.constant 0 : index
    %c0_4 = arith.constant 0 : index
    %3 = vector.load %arg3[%c0_3, %c0_4] : memref<1x32xf32, #tpu.memory_space<vmem>>, vector<1x32xf32>
    %4 = vector.shape_cast %3 : vector<1x32xf32> to vector<32xf32>
    %cst = arith.constant dense<0.000000e+00> : vector<16xf32>
    %5 = vector.multi_reduction <add>, %0, %cst [1] : vector<16x32xf32> to vector<16xf32>
    %6 = vector.shape_cast %5 : vector<16xf32> to vector<16x1xf32>
    %cst_5 = arith.constant 3.200000e+01 : f32
    %7 = vector.broadcast %cst_5 : f32 to vector<16x1xf32>
    %8 = arith.divf %6, %7 : vector<16x1xf32>
    %9 = vector.broadcast %8 : vector<16x1xf32> to vector<16x32xf32>
    %10 = arith.subf %0, %9 : vector<16x32xf32>
    %11 = arith.mulf %10, %10 : vector<16x32xf32>
    %cst_6 = arith.constant dense<0.000000e+00> : vector<16xf32>
    %12 = vector.multi_reduction <add>, %11, %cst_6 [1] : vector<16x32xf32> to vector<16xf32>
    %13 = vector.shape_cast %12 : vector<16xf32> to vector<16x1xf32>
    %cst_7 = arith.constant 3.200000e+01 : f32
    %14 = vector.broadcast %cst_7 : f32 to vector<16x1xf32>
    %15 = arith.divf %13, %14 : vector<16x1xf32>
    %16 = vector.broadcast %8 : vector<16x1xf32> to vector<16x32xf32>
    %17 = arith.subf %0, %16 : vector<16x32xf32>
    %cst_8 = arith.constant 9.99999974E-6 : f32
    %18 = vector.broadcast %cst_8 : f32 to vector<16x1xf32>
    %19 = arith.addf %15, %18 : vector<16x1xf32>
    %20 = math.rsqrt %19 : vector<16x1xf32>
    %21 = vector.broadcast %20 : vector<16x1xf32> to vector<16x32xf32>
    %22 = arith.mulf %17, %21 : vector<16x32xf32>
    %23 = vector.shape_cast %2 : vector<32xf32> to vector<1x32xf32>
    %24 = vector.broadcast %23 : vector<1x32xf32> to vector<16x32xf32>
    %25 = arith.mulf %22, %24 : vector<16x32xf32>
    %26 = vector.shape_cast %4 : vector<32xf32> to vector<1x32xf32>
    %27 = vector.broadcast %26 : vector<1x32xf32> to vector<16x32xf32>
    %28 = arith.addf %25, %27 : vector<16x32xf32>
    %c0_9 = arith.constant 0 : index
    %c0_10 = arith.constant 0 : index
    %29 = vector.load %arg4[%c0_9, %c0_10] : memref<16x32xf32, #tpu.memory_space<vmem>>, vector<16x32xf32>
    tpu.vector_store %arg4[%c0_9, %c0_10], %28 {strides = array<i32>} : memref<16x32xf32, #tpu.memory_space<vmem>>, vector<16x32xf32>,
    return
  }
  func.func @transform_0(%arg0: i32) -> (i32, i32) {
    %c0_i32 = arith.constant 0 : i32
    %c0_i32_0 = arith.constant 0 : i32
    return %arg0, %c0_i32 : i32, i32
  }
  func.func @transform_1(%arg0: i32) -> (i32, i32) {
    %c0_i32 = arith.constant 0 : i32
    %c0_i32_0 = arith.constant 0 : i32
    %c0_i32_1 = arith.constant 0 : i32
    return %c0_i32, %c0_i32_0 : i32, i32
  }
  func.func @transform_2(%arg0: i32) -> (i32, i32) {
    %c0_i32 = arith.constant 0 : i32
    %c0_i32_0 = arith.constant 0 : i32
    %c0_i32_1 = arith.constant 0 : i32
    return %c0_i32, %c0_i32_0 : i32, i32
  }
  func.func @transform_3(%arg0: i32) -> (i32, i32) {
    %c0_i32 = arith.constant 0 : i32
    %c0_i32_0 = arith.constant 0 : i32
    return %arg0, %c0_i32 : i32, i32
  }
}

module attributes {stable_mosaic.version = 11 : i64} {
  func.func @_fused_ln_ffn_kernel(%arg0: i32, %arg1: memref<16x32xf32, #tpu.memory_space<vmem>>, %arg2: memref<1x32xf32, #tpu.memory_space<vmem>>, %arg3: memref<1x32xf32, #tpu.memory_space<vmem>>, %arg4: memref<32x128xbf16, #tpu.memory_space<vmem>>, %arg5: memref<1x128xf32, #tpu.memory_space<vmem>>, %arg6: memref<128x32xbf16, #tpu.memory_space<vmem>>, %arg7: memref<1x32xf32, #tpu.memory_space<vmem>>, %arg8: memref<16x32xf32, #tpu.memory_space<vmem>>) attributes {dimension_semantics = [#tpu.dimension_semantics<parallel>], iteration_bounds = array<i64: 1>, scalar_prefetch = 0 : i64, scratch_operands = 0 : i64, tpu.core_type = #tpu.core_type<tc>, window_params = [{transform_indices = @transform_0, window_bounds = array<i64: 16, 32>}, {pipeline_mode = #tpu.pipeline_mode<synchronous>, transform_indices = @transform_1, window_bounds = array<i64: 1, 32>}, {pipeline_mode = #tpu.pipeline_mode<synchronous>, transform_indices = @transform_2, window_bounds = array<i64: 1, 32>}, {pipeline_mode = #tpu.pipeline_mode<synchronous>, transform_indices = @transform_3, window_bounds = array<i64: 32, 128>}, {pipeline_mode = #tpu.pipeline_mode<synchronous>, transform_indices = @transform_4, window_bounds = array<i64: 1, 128>}, {pipeline_mode = #tpu.pipeline_mode<synchronous>, transform_indices = @transform_5, window_bounds = array<i64: 128, 32>}, {pipeline_mode = #tpu.pipeline_mode<synchronous>, transform_indices = @transform_6, window_bounds = array<i64: 1, 32>}, {transform_indices = @transform_7, window_bounds = array<i64: 16, 32>}]} {
    %c0 = arith.constant 0 : index
    %c0_0 = arith.constant 0 : index
    %0 = vector.load %arg1[%c0, %c0_0] : memref<16x32xf32, #tpu.memory_space<vmem>>, vector<16x32xf32>
    %c0_1 = arith.constant 0 : index
    %c0_2 = arith.constant 0 : index
    %1 = vector.load %arg2[%c0_1, %c0_2] : memref<1x32xf32, #tpu.memory_space<vmem>>, vector<1x32xf32>
    %2 = vector.shape_cast %1 : vector<1x32xf32> to vector<32xf32>
    %c0_3 = arith.constant 0 : index
    %c0_4 = arith.constant 0 : index
    %3 = vector.load %arg3[%c0_3, %c0_4] : memref<1x32xf32, #tpu.memory_space<vmem>>, vector<1x32xf32>
    %4 = vector.shape_cast %3 : vector<1x32xf32> to vector<32xf32>
    %cst = arith.constant dense<0.000000e+00> : vector<16xf32>
    %5 = vector.multi_reduction <add>, %0, %cst [1] : vector<16x32xf32> to vector<16xf32>
    %6 = vector.shape_cast %5 : vector<16xf32> to vector<16x1xf32>
    %cst_5 = arith.constant 3.200000e+01 : f32
    %7 = vector.broadcast %cst_5 : f32 to vector<16x1xf32>
    %8 = arith.divf %6, %7 : vector<16x1xf32>
    %9 = vector.broadcast %8 : vector<16x1xf32> to vector<16x32xf32>
    %10 = arith.subf %0, %9 : vector<16x32xf32>
    %11 = arith.mulf %10, %10 : vector<16x32xf32>
    %cst_6 = arith.constant dense<0.000000e+00> : vector<16xf32>
    %12 = vector.multi_reduction <add>, %11, %cst_6 [1] : vector<16x32xf32> to vector<16xf32>
    %13 = vector.shape_cast %12 : vector<16xf32> to vector<16x1xf32>
    %cst_7 = arith.constant 3.200000e+01 : f32
    %14 = vector.broadcast %cst_7 : f32 to vector<16x1xf32>
    %15 = arith.divf %13, %14 : vector<16x1xf32>
    %16 = vector.broadcast %8 : vector<16x1xf32> to vector<16x32xf32>
    %17 = arith.subf %0, %16 : vector<16x32xf32>
    %cst_8 = arith.constant 9.99999974E-6 : f32
    %18 = vector.broadcast %cst_8 : f32 to vector<16x1xf32>
    %19 = arith.addf %15, %18 : vector<16x1xf32>
    %20 = math.rsqrt %19 : vector<16x1xf32>
    %21 = vector.broadcast %20 : vector<16x1xf32> to vector<16x32xf32>
    %22 = arith.mulf %17, %21 : vector<16x32xf32>
    %23 = vector.shape_cast %2 : vector<32xf32> to vector<1x32xf32>
    %24 = vector.broadcast %23 : vector<1x32xf32> to vector<16x32xf32>
    %25 = arith.mulf %22, %24 : vector<16x32xf32>
    %26 = vector.shape_cast %4 : vector<32xf32> to vector<1x32xf32>
    %27 = vector.broadcast %26 : vector<1x32xf32> to vector<16x32xf32>
    %28 = arith.addf %25, %27 : vector<16x32xf32>
    %29 = arith.truncf %28 : vector<16x32xf32> to vector<16x32xbf16>
    %c0_9 = arith.constant 0 : index
    %c0_10 = arith.constant 0 : index
    %30 = vector.load %arg4[%c0_9, %c0_10] : memref<32x128xbf16, #tpu.memory_space<vmem>>, vector<32x128xbf16>
    %cst_11 = arith.constant dense<0.000000e+00> : vector<16x128xf32>
    %31 = tpu.matmul %29, %30, %cst_11 {dimension_numbers = #tpu.dot_dimension_numbers<[1], [0], [0], [1], [0, 0, 1, 1], [], []>} : vector<16x32xbf16>, vector<32x128xbf16>, vector<16x128xf32> -> vector<16x128xf32>
    %c0_12 = arith.constant 0 : index
    %c0_13 = arith.constant 0 : index
    %32 = vector.load %arg5[%c0_12, %c0_13] : memref<1x128xf32, #tpu.memory_space<vmem>>, vector<1x128xf32>
    %33 = vector.shape_cast %32 : vector<1x128xf32> to vector<128xf32>
    %34 = vector.shape_cast %33 : vector<128xf32> to vector<1x128xf32>
    %35 = vector.broadcast %34 : vector<1x128xf32> to vector<16x128xf32>
    %36 = arith.addf %31, %35 : vector<16x128xf32>
    %cst_14 = arith.constant 0.000000e+00 : f32
    %37 = vector.broadcast %cst_14 : f32 to vector<16x128xf32>
    %38 = arith.maximumf %36, %37 : vector<16x128xf32>
    %39 = arith.truncf %38 : vector<16x128xf32> to vector<16x128xbf16>
    %c0_15 = arith.constant 0 : index
    %c0_16 = arith.constant 0 : index
    %40 = vector.load %arg6[%c0_15, %c0_16] : memref<128x32xbf16, #tpu.memory_space<vmem>>, vector<128x32xbf16>
    %cst_17 = arith.constant dense<0.000000e+00> : vector<16x32xf32>
    %41 = tpu.matmul %39, %40, %cst_17 {dimension_numbers = #tpu.dot_dimension_numbers<[1], [0], [0], [1], [0, 0, 1, 1], [], []>} : vector<16x128xbf16>, vector<128x32xbf16>, vector<16x32xf32> -> vector<16x32xf32>
    %c0_18 = arith.constant 0 : index
    %c0_19 = arith.constant 0 : index
    %42 = vector.load %arg7[%c0_18, %c0_19] : memref<1x32xf32, #tpu.memory_space<vmem>>, vector<1x32xf32>
    %43 = vector.shape_cast %42 : vector<1x32xf32> to vector<32xf32>
    %44 = vector.shape_cast %43 : vector<32xf32> to vector<1x32xf32>
    %45 = vector.broadcast %44 : vector<1x32xf32> to vector<16x32xf32>
    %46 = arith.addf %41, %45 : vector<16x32xf32>
    %47 = arith.addf %0, %46 : vector<16x32xf32>
    %c0_20 = arith.constant 0 : index
    %c0_21 = arith.constant 0 : index
    %48 = vector.load %arg8[%c0_20, %c0_21] : memref<16x32xf32, #tpu.memory_space<vmem>>, vector<16x32xf32>
    tpu.vector_store %arg8[%c0_20, %c0_21], %47 {strides = array<i32>} : memref<16x32xf32, #tpu.memory_space<vmem>>, vector<16x32xf32>,
    return
  }
  func.func @transform_0(%arg0: i32) -> (i32, i32) {
    %c0_i32 = arith.constant 0 : i32
    %c0_i32_0 = arith.constant 0 : i32
    return %arg0, %c0_i32 : i32, i32
  }
  func.func @transform_1(%arg0: i32) -> (i32, i32) {
    %c0_i32 = arith.constant 0 : i32
    %c0_i32_0 = arith.constant 0 : i32
    %c0_i32_1 = arith.constant 0 : i32
    return %c0_i32, %c0_i32_0 : i32, i32
  }
  func.func @transform_2(%arg0: i32) -> (i32, i32) {
    %c0_i32 = arith.constant 0 : i32
    %c0_i32_0 = arith.constant 0 : i32
    %c0_i32_1 = arith.constant 0 : i32
    return %c0_i32, %c0_i32_0 : i32, i32
  }
  func.func @transform_3(%arg0: i32) -> (i32, i32) {
    %c0_i32 = arith.constant 0 : i32
    %c0_i32_0 = arith.constant 0 : i32
    %c0_i32_1 = arith.constant 0 : i32
    return %c0_i32, %c0_i32_0 : i32, i32
  }
  func.func @transform_4(%arg0: i32) -> (i32, i32) {
    %c0_i32 = arith.constant 0 : i32
    %c0_i32_0 = arith.constant 0 : i32
    %c0_i32_1 = arith.constant 0 : i32
    return %c0_i32, %c0_i32_0 : i32, i32
  }
  func.func @transform_5(%arg0: i32) -> (i32, i32) {
    %c0_i32 = arith.constant 0 : i32
    %c0_i32_0 = arith.constant 0 : i32
    %c0_i32_1 = arith.constant 0 : i32
    return %c0_i32, %c0_i32_0 : i32, i32
  }
  func.func @transform_6(%arg0: i32) -> (i32, i32) {
    %c0_i32 = arith.constant 0 : i32
    %c0_i32_0 = arith.constant 0 : i32
    %c0_i32_1 = arith.constant 0 : i32
    return %c0_i32, %c0_i32_0 : i32, i32
  }
  func.func @transform_7(%arg0: i32) -> (i32, i32) {
    %c0_i32 = arith.constant 0 : i32
    %c0_i32_0 = arith.constant 0 : i32
    return %arg0, %c0_i32 : i32, i32
  }
}

module attributes {stable_mosaic.version = 11 : i64} {
  func.func @_fused_cross_attn_kernel(%arg0: i32, %arg1: memref<1x8x32xf32, #tpu.memory_space<vmem>>, %arg2: memref<1x8x32xf32, #tpu.memory_space<vmem>>, %arg3: memref<1x32xf32, #tpu.memory_space<vmem>>, %arg4: memref<1x32xf32, #tpu.memory_space<vmem>>, %arg5: memref<4x32x8xbf16, #tpu.memory_space<vmem>>, %arg6: memref<4x32x8xbf16, #tpu.memory_space<vmem>>, %arg7: memref<4x32x8xbf16, #tpu.memory_space<vmem>>, %arg8: memref<4x8x32xbf16, #tpu.memory_space<vmem>>, %arg9: memref<1x8x32xf32, #tpu.memory_space<vmem>>) attributes {dimension_semantics = [#tpu.dimension_semantics<parallel>], iteration_bounds = array<i64: 2>, scalar_prefetch = 0 : i64, scratch_operands = 0 : i64, tpu.core_type = #tpu.core_type<tc>, window_params = [{transform_indices = @transform_0, window_bounds = array<i64: 1, 8, 32>}, {transform_indices = @transform_1, window_bounds = array<i64: 1, 8, 32>}, {pipeline_mode = #tpu.pipeline_mode<synchronous>, transform_indices = @transform_2, window_bounds = array<i64: 1, 32>}, {pipeline_mode = #tpu.pipeline_mode<synchronous>, transform_indices = @transform_3, window_bounds = array<i64: 1, 32>}, {pipeline_mode = #tpu.pipeline_mode<synchronous>, transform_indices = @transform_4, window_bounds = array<i64: 4, 32, 8>}, {pipeline_mode = #tpu.pipeline_mode<synchronous>, transform_indices = @transform_5, window_bounds = array<i64: 4, 32, 8>}, {pipeline_mode = #tpu.pipeline_mode<synchronous>, transform_indices = @transform_6, window_bounds = array<i64: 4, 32, 8>}, {pipeline_mode = #tpu.pipeline_mode<synchronous>, transform_indices = @transform_7, window_bounds = array<i64: 4, 8, 32>}, {transform_indices = @transform_8, window_bounds = array<i64: 1, 8, 32>}]} {
    %c0 = arith.constant 0 : index
    %c0_0 = arith.constant 0 : index
    %c0_1 = arith.constant 0 : index
    %0 = vector.load %arg1[%c0, %c0_0, %c0_1] : memref<1x8x32xf32, #tpu.memory_space<vmem>>, vector<1x8x32xf32>
    %1 = vector.shape_cast %0 : vector<1x8x32xf32> to vector<8x32xf32>
    %c0_2 = arith.constant 0 : index
    %c0_3 = arith.constant 0 : index
    %2 = vector.load %arg3[%c0_2, %c0_3] : memref<1x32xf32, #tpu.memory_space<vmem>>, vector<1x32xf32>
    %3 = vector.shape_cast %2 : vector<1x32xf32> to vector<32xf32>
    %c0_4 = arith.constant 0 : index
    %c0_5 = arith.constant 0 : index
    %4 = vector.load %arg4[%c0_4, %c0_5] : memref<1x32xf32, #tpu.memory_space<vmem>>, vector<1x32xf32>
    %5 = vector.shape_cast %4 : vector<1x32xf32> to vector<32xf32>
    %cst = arith.constant dense<0.000000e+00> : vector<8xf32>
    %6 = vector.multi_reduction <add>, %1, %cst [1] : vector<8x32xf32> to vector<8xf32>
    %7 = vector.shape_cast %6 : vector<8xf32> to vector<8x1xf32>
    %cst_6 = arith.constant 3.200000e+01 : f32
    %8 = vector.broadcast %cst_6 : f32 to vector<8x1xf32>
    %9 = arith.divf %7, %8 : vector<8x1xf32>
    %10 = vector.broadcast %9 : vector<8x1xf32> to vector<8x32xf32>
    %11 = arith.subf %1, %10 : vector<8x32xf32>
    %12 = arith.mulf %11, %11 : vector<8x32xf32>
    %cst_7 = arith.constant dense<0.000000e+00> : vector<8xf32>
    %13 = vector.multi_reduction <add>, %12, %cst_7 [1] : vector<8x32xf32> to vector<8xf32>
    %14 = vector.shape_cast %13 : vector<8xf32> to vector<8x1xf32>
    %cst_8 = arith.constant 3.200000e+01 : f32
    %15 = vector.broadcast %cst_8 : f32 to vector<8x1xf32>
    %16 = arith.divf %14, %15 : vector<8x1xf32>
    %17 = vector.broadcast %9 : vector<8x1xf32> to vector<8x32xf32>
    %18 = arith.subf %1, %17 : vector<8x32xf32>
    %cst_9 = arith.constant 9.99999974E-6 : f32
    %19 = vector.broadcast %cst_9 : f32 to vector<8x1xf32>
    %20 = arith.addf %16, %19 : vector<8x1xf32>
    %21 = math.rsqrt %20 : vector<8x1xf32>
    %22 = vector.broadcast %21 : vector<8x1xf32> to vector<8x32xf32>
    %23 = arith.mulf %18, %22 : vector<8x32xf32>
    %24 = vector.shape_cast %3 : vector<32xf32> to vector<1x32xf32>
    %25 = vector.broadcast %24 : vector<1x32xf32> to vector<8x32xf32>
    %26 = arith.mulf %23, %25 : vector<8x32xf32>
    %27 = vector.shape_cast %5 : vector<32xf32> to vector<1x32xf32>
    %28 = vector.broadcast %27 : vector<1x32xf32> to vector<8x32xf32>
    %29 = arith.addf %26, %28 : vector<8x32xf32>
    %c0_10 = arith.constant 0 : index
    %c0_11 = arith.constant 0 : index
    %c0_12 = arith.constant 0 : index
    %30 = vector.load %arg2[%c0_10, %c0_11, %c0_12] : memref<1x8x32xf32, #tpu.memory_space<vmem>>, vector<1x8x32xf32>
    %31 = vector.shape_cast %30 : vector<1x8x32xf32> to vector<8x32xf32>
    %32 = arith.truncf %29 : vector<8x32xf32> to vector<8x32xbf16>
    %33 = arith.truncf %31 : vector<8x32xf32> to vector<8x32xbf16>
    %cst_13 = arith.constant 0.000000e+00 : f32
    %34 = vector.broadcast %cst_13 : f32 to vector<8x32xf32>
    %c0_14 = arith.constant 0 : index
    %c0_15 = arith.constant 0 : index
    %c0_16 = arith.constant 0 : index
    %35 = vector.load %arg5[%c0_14, %c0_15, %c0_16] : memref<4x32x8xbf16, #tpu.memory_space<vmem>>, vector<1x32x8xbf16>
    %36 = vector.shape_cast %35 : vector<1x32x8xbf16> to vector<32x8xbf16>
    %cst_17 = arith.constant dense<0.000000e+00> : vector<8x8xf32>
    %37 = tpu.matmul %32, %36, %cst_17 {dimension_numbers = #tpu.dot_dimension_numbers<[1], [0], [0], [1], [0, 0, 1, 1], [], []>} : vector<8x32xbf16>, vector<32x8xbf16>, vector<8x8xf32> -> vector<8x8xf32>
    %c0_18 = arith.constant 0 : index
    %c0_19 = arith.constant 0 : index
    %c0_20 = arith.constant 0 : index
    %38 = vector.load %arg6[%c0_18, %c0_19, %c0_20] : memref<4x32x8xbf16, #tpu.memory_space<vmem>>, vector<1x32x8xbf16>
    %39 = vector.shape_cast %38 : vector<1x32x8xbf16> to vector<32x8xbf16>
    %cst_21 = arith.constant dense<0.000000e+00> : vector<8x8xf32>
    %40 = tpu.matmul %33, %39, %cst_21 {dimension_numbers = #tpu.dot_dimension_numbers<[1], [0], [0], [1], [0, 0, 1, 1], [], []>} : vector<8x32xbf16>, vector<32x8xbf16>, vector<8x8xf32> -> vector<8x8xf32>
    %c0_22 = arith.constant 0 : index
    %c0_23 = arith.constant 0 : index
    %c0_24 = arith.constant 0 : index
    %41 = vector.load %arg7[%c0_22, %c0_23, %c0_24] : memref<4x32x8xbf16, #tpu.memory_space<vmem>>, vector<1x32x8xbf16>
    %42 = vector.shape_cast %41 : vector<1x32x8xbf16> to vector<32x8xbf16>
    %cst_25 = arith.constant dense<0.000000e+00> : vector<8x8xf32>
    %43 = tpu.matmul %33, %42, %cst_25 {dimension_numbers = #tpu.dot_dimension_numbers<[1], [0], [0], [1], [0, 0, 1, 1], [], []>} : vector<8x32xbf16>, vector<32x8xbf16>, vector<8x8xf32> -> vector<8x8xf32>
    %44 = arith.truncf %37 : vector<8x8xf32> to vector<8x8xbf16>
    %45 = arith.truncf %40 : vector<8x8xf32> to vector<8x8xbf16>
    %cst_26 = arith.constant dense<0.000000e+00> : vector<8x8xf32>
    %46 = tpu.matmul %44, %45, %cst_26 {dimension_numbers = #tpu.dot_dimension_numbers<[1], [1], [0], [0], [0, 0, 1, 0], [], []>} : vector<8x8xbf16>, vector<8x8xbf16>, vector<8x8xf32> -> vector<8x8xf32>
    %cst_27 = arith.constant dense<0xFF800000> : vector<8xf32>
    %47 = vector.multi_reduction <maximumf>, %46, %cst_27 [1] : vector<8x8xf32> to vector<8xf32>
    %48 = vector.shape_cast %47 : vector<8xf32> to vector<8x1xf32>
    %49 = vector.broadcast %48 : vector<8x1xf32> to vector<8x8xf32>
    %50 = arith.subf %46, %49 : vector<8x8xf32>
    %51 = math.exp %50 : vector<8x8xf32>
    %cst_28 = arith.constant dense<0.000000e+00> : vector<8xf32>
    %52 = vector.multi_reduction <add>, %51, %cst_28 [1] : vector<8x8xf32> to vector<8xf32>
    %53 = vector.shape_cast %52 : vector<8xf32> to vector<8x1xf32>
    %54 = tpu.reciprocal %53 {approx = true} : vector<8x1xf32> -> vector<8x1xf32>
    %55 = vector.broadcast %54 : vector<8x1xf32> to vector<8x8xf32>
    %56 = arith.mulf %51, %55 : vector<8x8xf32>
    %57 = arith.truncf %56 : vector<8x8xf32> to vector<8x8xbf16>
    %58 = arith.truncf %43 : vector<8x8xf32> to vector<8x8xbf16>
    %cst_29 = arith.constant dense<0.000000e+00> : vector<8x8xf32>
    %59 = tpu.matmul %57, %58, %cst_29 {dimension_numbers = #tpu.dot_dimension_numbers<[1], [0], [0], [1], [0, 0, 1, 1], [], []>} : vector<8x8xbf16>, vector<8x8xbf16>, vector<8x8xf32> -> vector<8x8xf32>
    %60 = arith.truncf %59 : vector<8x8xf32> to vector<8x8xbf16>
    %c0_30 = arith.constant 0 : index
    %c0_31 = arith.constant 0 : index
    %c0_32 = arith.constant 0 : index
    %61 = vector.load %arg8[%c0_30, %c0_31, %c0_32] : memref<4x8x32xbf16, #tpu.memory_space<vmem>>, vector<1x8x32xbf16>
    %62 = vector.shape_cast %61 : vector<1x8x32xbf16> to vector<8x32xbf16>
    %cst_33 = arith.constant dense<0.000000e+00> : vector<8x32xf32>
    %63 = tpu.matmul %60, %62, %cst_33 {dimension_numbers = #tpu.dot_dimension_numbers<[1], [0], [0], [1], [0, 0, 1, 1], [], []>} : vector<8x8xbf16>, vector<8x32xbf16>, vector<8x32xf32> -> vector<8x32xf32>
    %64 = arith.addf %34, %63 : vector<8x32xf32>
    %c1 = arith.constant 1 : index
    %c0_34 = arith.constant 0 : index
    %c0_35 = arith.constant 0 : index
    %65 = vector.load %arg5[%c1, %c0_34, %c0_35] : memref<4x32x8xbf16, #tpu.memory_space<vmem>>, vector<1x32x8xbf16>
    %66 = vector.shape_cast %65 : vector<1x32x8xbf16> to vector<32x8xbf16>
    %cst_36 = arith.constant dense<0.000000e+00> : vector<8x8xf32>
    %67 = tpu.matmul %32, %66, %cst_36 {dimension_numbers = #tpu.dot_dimension_numbers<[1], [0], [0], [1], [0, 0, 1, 1], [], []>} : vector<8x32xbf16>, vector<32x8xbf16>, vector<8x8xf32> -> vector<8x8xf32>
    %c1_37 = arith.constant 1 : index
    %c0_38 = arith.constant 0 : index
    %c0_39 = arith.constant 0 : index
    %68 = vector.load %arg6[%c1_37, %c0_38, %c0_39] : memref<4x32x8xbf16, #tpu.memory_space<vmem>>, vector<1x32x8xbf16>
    %69 = vector.shape_cast %68 : vector<1x32x8xbf16> to vector<32x8xbf16>
    %cst_40 = arith.constant dense<0.000000e+00> : vector<8x8xf32>
    %70 = tpu.matmul %33, %69, %cst_40 {dimension_numbers = #tpu.dot_dimension_numbers<[1], [0], [0], [1], [0, 0, 1, 1], [], []>} : vector<8x32xbf16>, vector<32x8xbf16>, vector<8x8xf32> -> vector<8x8xf32>
    %c1_41 = arith.constant 1 : index
    %c0_42 = arith.constant 0 : index
    %c0_43 = arith.constant 0 : index
    %71 = vector.load %arg7[%c1_41, %c0_42, %c0_43] : memref<4x32x8xbf16, #tpu.memory_space<vmem>>, vector<1x32x8xbf16>
    %72 = vector.shape_cast %71 : vector<1x32x8xbf16> to vector<32x8xbf16>
    %cst_44 = arith.constant dense<0.000000e+00> : vector<8x8xf32>
    %73 = tpu.matmul %33, %72, %cst_44 {dimension_numbers = #tpu.dot_dimension_numbers<[1], [0], [0], [1], [0, 0, 1, 1], [], []>} : vector<8x32xbf16>, vector<32x8xbf16>, vector<8x8xf32> -> vector<8x8xf32>
    %74 = arith.truncf %67 : vector<8x8xf32> to vector<8x8xbf16>
    %75 = arith.truncf %70 : vector<8x8xf32> to vector<8x8xbf16>
    %cst_45 = arith.constant dense<0.000000e+00> : vector<8x8xf32>
    %76 = tpu.matmul %74, %75, %cst_45 {dimension_numbers = #tpu.dot_dimension_numbers<[1], [1], [0], [0], [0, 0, 1, 0], [], []>} : vector<8x8xbf16>, vector<8x8xbf16>, vector<8x8xf32> -> vector<8x8xf32>
    %cst_46 = arith.constant dense<0xFF800000> : vector<8xf32>
    %77 = vector.multi_reduction <maximumf>, %76, %cst_46 [1] : vector<8x8xf32> to vector<8xf32>
    %78 = vector.shape_cast %77 : vector<8xf32> to vector<8x1xf32>
    %79 = vector.broadcast %78 : vector<8x1xf32> to vector<8x8xf32>
    %80 = arith.subf %76, %79 : vector<8x8xf32>
    %81 = math.exp %80 : vector<8x8xf32>
    %cst_47 = arith.constant dense<0.000000e+00> : vector<8xf32>
    %82 = vector.multi_reduction <add>, %81, %cst_47 [1] : vector<8x8xf32> to vector<8xf32>
    %83 = vector.shape_cast %82 : vector<8xf32> to vector<8x1xf32>
    %84 = tpu.reciprocal %83 {approx = true} : vector<8x1xf32> -> vector<8x1xf32>
    %85 = vector.broadcast %84 : vector<8x1xf32> to vector<8x8xf32>
    %86 = arith.mulf %81, %85 : vector<8x8xf32>
    %87 = arith.truncf %86 : vector<8x8xf32> to vector<8x8xbf16>
    %88 = arith.truncf %73 : vector<8x8xf32> to vector<8x8xbf16>
    %cst_48 = arith.constant dense<0.000000e+00> : vector<8x8xf32>
    %89 = tpu.matmul %87, %88, %cst_48 {dimension_numbers = #tpu.dot_dimension_numbers<[1], [0], [0], [1], [0, 0, 1, 1], [], []>} : vector<8x8xbf16>, vector<8x8xbf16>, vector<8x8xf32> -> vector<8x8xf32>
    %90 = arith.truncf %89 : vector<8x8xf32> to vector<8x8xbf16>
    %c1_49 = arith.constant 1 : index
    %c0_50 = arith.constant 0 : index
    %c0_51 = arith.constant 0 : index
    %91 = vector.load %arg8[%c1_49, %c0_50, %c0_51] : memref<4x8x32xbf16, #tpu.memory_space<vmem>>, vector<1x8x32xbf16>
    %92 = vector.shape_cast %91 : vector<1x8x32xbf16> to vector<8x32xbf16>
    %cst_52 = arith.constant dense<0.000000e+00> : vector<8x32xf32>
    %93 = tpu.matmul %90, %92, %cst_52 {dimension_numbers = #tpu.dot_dimension_numbers<[1], [0], [0], [1], [0, 0, 1, 1], [], []>} : vector<8x8xbf16>, vector<8x32xbf16>, vector<8x32xf32> -> vector<8x32xf32>
    %94 = arith.addf %64, %93 : vector<8x32xf32>
    %c2 = arith.constant 2 : index
    %c0_53 = arith.constant 0 : index
    %c0_54 = arith.constant 0 : index
    %95 = vector.load %arg5[%c2, %c0_53, %c0_54] : memref<4x32x8xbf16, #tpu.memory_space<vmem>>, vector<1x32x8xbf16>
    %96 = vector.shape_cast %95 : vector<1x32x8xbf16> to vector<32x8xbf16>
    %cst_55 = arith.constant dense<0.000000e+00> : vector<8x8xf32>
    %97 = tpu.matmul %32, %96, %cst_55 {dimension_numbers = #tpu.dot_dimension_numbers<[1], [0], [0], [1], [0, 0, 1, 1], [], []>} : vector<8x32xbf16>, vector<32x8xbf16>, vector<8x8xf32> -> vector<8x8xf32>
    %c2_56 = arith.constant 2 : index
    %c0_57 = arith.constant 0 : index
    %c0_58 = arith.constant 0 : index
    %98 = vector.load %arg6[%c2_56, %c0_57, %c0_58] : memref<4x32x8xbf16, #tpu.memory_space<vmem>>, vector<1x32x8xbf16>
    %99 = vector.shape_cast %98 : vector<1x32x8xbf16> to vector<32x8xbf16>
    %cst_59 = arith.constant dense<0.000000e+00> : vector<8x8xf32>
    %100 = tpu.matmul %33, %99, %cst_59 {dimension_numbers = #tpu.dot_dimension_numbers<[1], [0], [0], [1], [0, 0, 1, 1], [], []>} : vector<8x32xbf16>, vector<32x8xbf16>, vector<8x8xf32> -> vector<8x8xf32>
    %c2_60 = arith.constant 2 : index
    %c0_61 = arith.constant 0 : index
    %c0_62 = arith.constant 0 : index
    %101 = vector.load %arg7[%c2_60, %c0_61, %c0_62] : memref<4x32x8xbf16, #tpu.memory_space<vmem>>, vector<1x32x8xbf16>
    %102 = vector.shape_cast %101 : vector<1x32x8xbf16> to vector<32x8xbf16>
    %cst_63 = arith.constant dense<0.000000e+00> : vector<8x8xf32>
    %103 = tpu.matmul %33, %102, %cst_63 {dimension_numbers = #tpu.dot_dimension_numbers<[1], [0], [0], [1], [0, 0, 1, 1], [], []>} : vector<8x32xbf16>, vector<32x8xbf16>, vector<8x8xf32> -> vector<8x8xf32>
    %104 = arith.truncf %97 : vector<8x8xf32> to vector<8x8xbf16>
    %105 = arith.truncf %100 : vector<8x8xf32> to vector<8x8xbf16>
    %cst_64 = arith.constant dense<0.000000e+00> : vector<8x8xf32>
    %106 = tpu.matmul %104, %105, %cst_64 {dimension_numbers = #tpu.dot_dimension_numbers<[1], [1], [0], [0], [0, 0, 1, 0], [], []>} : vector<8x8xbf16>, vector<8x8xbf16>, vector<8x8xf32> -> vector<8x8xf32>
    %cst_65 = arith.constant dense<0xFF800000> : vector<8xf32>
    %107 = vector.multi_reduction <maximumf>, %106, %cst_65 [1] : vector<8x8xf32> to vector<8xf32>
    %108 = vector.shape_cast %107 : vector<8xf32> to vector<8x1xf32>
    %109 = vector.broadcast %108 : vector<8x1xf32> to vector<8x8xf32>
    %110 = arith.subf %106, %109 : vector<8x8xf32>
    %111 = math.exp %110 : vector<8x8xf32>
    %cst_66 = arith.constant dense<0.000000e+00> : vector<8xf32>
    %112 = vector.multi_reduction <add>, %111, %cst_66 [1] : vector<8x8xf32> to vector<8xf32>
    %113 = vector.shape_cast %112 : vector<8xf32> to vector<8x1xf32>
    %114 = tpu.reciprocal %113 {approx = true} : vector<8x1xf32> -> vector<8x1xf32>
    %115 = vector.broadcast %114 : vector<8x1xf32> to vector<8x8xf32>
    %116 = arith.mulf %111, %115 : vector<8x8xf32>
    %117 = arith.truncf %116 : vector<8x8xf32> to vector<8x8xbf16>
    %118 = arith.truncf %103 : vector<8x8xf32> to vector<8x8xbf16>
    %cst_67 = arith.constant dense<0.000000e+00> : vector<8x8xf32>
    %119 = tpu.matmul %117, %118, %cst_67 {dimension_numbers = #tpu.dot_dimension_numbers<[1], [0], [0], [1], [0, 0, 1, 1], [], []>} : vector<8x8xbf16>, vector<8x8xbf16>, vector<8x8xf32> -> vector<8x8xf32>
    %120 = arith.truncf %119 : vector<8x8xf32> to vector<8x8xbf16>
    %c2_68 = arith.constant 2 : index
    %c0_69 = arith.constant 0 : index
    %c0_70 = arith.constant 0 : index
    %121 = vector.load %arg8[%c2_68, %c0_69, %c0_70] : memref<4x8x32xbf16, #tpu.memory_space<vmem>>, vector<1x8x32xbf16>
    %122 = vector.shape_cast %121 : vector<1x8x32xbf16> to vector<8x32xbf16>
    %cst_71 = arith.constant dense<0.000000e+00> : vector<8x32xf32>
    %123 = tpu.matmul %120, %122, %cst_71 {dimension_numbers = #tpu.dot_dimension_numbers<[1], [0], [0], [1], [0, 0, 1, 1], [], []>} : vector<8x8xbf16>, vector<8x32xbf16>, vector<8x32xf32> -> vector<8x32xf32>
    %124 = arith.addf %94, %123 : vector<8x32xf32>
    %c3 = arith.constant 3 : index
    %c0_72 = arith.constant 0 : index
    %c0_73 = arith.constant 0 : index
    %125 = vector.load %arg5[%c3, %c0_72, %c0_73] : memref<4x32x8xbf16, #tpu.memory_space<vmem>>, vector<1x32x8xbf16>
    %126 = vector.shape_cast %125 : vector<1x32x8xbf16> to vector<32x8xbf16>
    %cst_74 = arith.constant dense<0.000000e+00> : vector<8x8xf32>
    %127 = tpu.matmul %32, %126, %cst_74 {dimension_numbers = #tpu.dot_dimension_numbers<[1], [0], [0], [1], [0, 0, 1, 1], [], []>} : vector<8x32xbf16>, vector<32x8xbf16>, vector<8x8xf32> -> vector<8x8xf32>
    %c3_75 = arith.constant 3 : index
    %c0_76 = arith.constant 0 : index
    %c0_77 = arith.constant 0 : index
    %128 = vector.load %arg6[%c3_75, %c0_76, %c0_77] : memref<4x32x8xbf16, #tpu.memory_space<vmem>>, vector<1x32x8xbf16>
    %129 = vector.shape_cast %128 : vector<1x32x8xbf16> to vector<32x8xbf16>
    %cst_78 = arith.constant dense<0.000000e+00> : vector<8x8xf32>
    %130 = tpu.matmul %33, %129, %cst_78 {dimension_numbers = #tpu.dot_dimension_numbers<[1], [0], [0], [1], [0, 0, 1, 1], [], []>} : vector<8x32xbf16>, vector<32x8xbf16>, vector<8x8xf32> -> vector<8x8xf32>
    %c3_79 = arith.constant 3 : index
    %c0_80 = arith.constant 0 : index
    %c0_81 = arith.constant 0 : index
    %131 = vector.load %arg7[%c3_79, %c0_80, %c0_81] : memref<4x32x8xbf16, #tpu.memory_space<vmem>>, vector<1x32x8xbf16>
    %132 = vector.shape_cast %131 : vector<1x32x8xbf16> to vector<32x8xbf16>
    %cst_82 = arith.constant dense<0.000000e+00> : vector<8x8xf32>
    %133 = tpu.matmul %33, %132, %cst_82 {dimension_numbers = #tpu.dot_dimension_numbers<[1], [0], [0], [1], [0, 0, 1, 1], [], []>} : vector<8x32xbf16>, vector<32x8xbf16>, vector<8x8xf32> -> vector<8x8xf32>
    %134 = arith.truncf %127 : vector<8x8xf32> to vector<8x8xbf16>
    %135 = arith.truncf %130 : vector<8x8xf32> to vector<8x8xbf16>
    %cst_83 = arith.constant dense<0.000000e+00> : vector<8x8xf32>
    %136 = tpu.matmul %134, %135, %cst_83 {dimension_numbers = #tpu.dot_dimension_numbers<[1], [1], [0], [0], [0, 0, 1, 0], [], []>} : vector<8x8xbf16>, vector<8x8xbf16>, vector<8x8xf32> -> vector<8x8xf32>
    %cst_84 = arith.constant dense<0xFF800000> : vector<8xf32>
    %137 = vector.multi_reduction <maximumf>, %136, %cst_84 [1] : vector<8x8xf32> to vector<8xf32>
    %138 = vector.shape_cast %137 : vector<8xf32> to vector<8x1xf32>
    %139 = vector.broadcast %138 : vector<8x1xf32> to vector<8x8xf32>
    %140 = arith.subf %136, %139 : vector<8x8xf32>
    %141 = math.exp %140 : vector<8x8xf32>
    %cst_85 = arith.constant dense<0.000000e+00> : vector<8xf32>
    %142 = vector.multi_reduction <add>, %141, %cst_85 [1] : vector<8x8xf32> to vector<8xf32>
    %143 = vector.shape_cast %142 : vector<8xf32> to vector<8x1xf32>
    %144 = tpu.reciprocal %143 {approx = true} : vector<8x1xf32> -> vector<8x1xf32>
    %145 = vector.broadcast %144 : vector<8x1xf32> to vector<8x8xf32>
    %146 = arith.mulf %141, %145 : vector<8x8xf32>
    %147 = arith.truncf %146 : vector<8x8xf32> to vector<8x8xbf16>
    %148 = arith.truncf %133 : vector<8x8xf32> to vector<8x8xbf16>
    %cst_86 = arith.constant dense<0.000000e+00> : vector<8x8xf32>
    %149 = tpu.matmul %147, %148, %cst_86 {dimension_numbers = #tpu.dot_dimension_numbers<[1], [0], [0], [1], [0, 0, 1, 1], [], []>} : vector<8x8xbf16>, vector<8x8xbf16>, vector<8x8xf32> -> vector<8x8xf32>
    %150 = arith.truncf %149 : vector<8x8xf32> to vector<8x8xbf16>
    %c3_87 = arith.constant 3 : index
    %c0_88 = arith.constant 0 : index
    %c0_89 = arith.constant 0 : index
    %151 = vector.load %arg8[%c3_87, %c0_88, %c0_89] : memref<4x8x32xbf16, #tpu.memory_space<vmem>>, vector<1x8x32xbf16>
    %152 = vector.shape_cast %151 : vector<1x8x32xbf16> to vector<8x32xbf16>
    %cst_90 = arith.constant dense<0.000000e+00> : vector<8x32xf32>
    %153 = tpu.matmul %150, %152, %cst_90 {dimension_numbers = #tpu.dot_dimension_numbers<[1], [0], [0], [1], [0, 0, 1, 1], [], []>} : vector<8x8xbf16>, vector<8x32xbf16>, vector<8x32xf32> -> vector<8x32xf32>
    %154 = arith.addf %124, %153 : vector<8x32xf32>
    %155 = arith.addf %1, %154 : vector<8x32xf32>
    %c0_91 = arith.constant 0 : index
    %c0_92 = arith.constant 0 : index
    %c0_93 = arith.constant 0 : index
    %156 = vector.load %arg9[%c0_91, %c0_92, %c0_93] : memref<1x8x32xf32, #tpu.memory_space<vmem>>, vector<1x8x32xf32>
    %157 = vector.shape_cast %156 : vector<1x8x32xf32> to vector<8x32xf32>
    %158 = vector.shape_cast %155 : vector<8x32xf32> to vector<1x8x32xf32>
    tpu.vector_store %arg9[%c0_91, %c0_92, %c0_93], %158 {strides = array<i32>} : memref<1x8x32xf32, #tpu.memory_space<vmem>>, vector<1x8x32xf32>,
    return
  }
  func.func @transform_0(%arg0: i32) -> (i32, i32, i32) {
    %c0_i32 = arith.constant 0 : i32
    %c0_i32_0 = arith.constant 0 : i32
    %c0_i32_1 = arith.constant 0 : i32
    return %arg0, %c0_i32, %c0_i32_0 : i32, i32, i32
  }
  func.func @transform_1(%arg0: i32) -> (i32, i32, i32) {
    %c0_i32 = arith.constant 0 : i32
    %c0_i32_0 = arith.constant 0 : i32
    %c0_i32_1 = arith.constant 0 : i32
    return %arg0, %c0_i32, %c0_i32_0 : i32, i32, i32
  }
  func.func @transform_2(%arg0: i32) -> (i32, i32) {
    %c0_i32 = arith.constant 0 : i32
    %c0_i32_0 = arith.constant 0 : i32
    %c0_i32_1 = arith.constant 0 : i32
    return %c0_i32, %c0_i32_0 : i32, i32
  }
  func.func @transform_3(%arg0: i32) -> (i32, i32) {
    %c0_i32 = arith.constant 0 : i32
    %c0_i32_0 = arith.constant 0 : i32
    %c0_i32_1 = arith.constant 0 : i32
    return %c0_i32, %c0_i32_0 : i32, i32
  }
  func.func @transform_4(%arg0: i32) -> (i32, i32, i32) {
    %c0_i32 = arith.constant 0 : i32
    %c0_i32_0 = arith.constant 0 : i32
    %c0_i32_1 = arith.constant 0 : i32
    %c0_i32_2 = arith.constant 0 : i32
    return %c0_i32, %c0_i32_0, %c0_i32_1 : i32, i32, i32
  }
  func.func @transform_5(%arg0: i32) -> (i32, i32, i32) {
    %c0_i32 = arith.constant 0 : i32
    %c0_i32_0 = arith.constant 0 : i32
    %c0_i32_1 = arith.constant 0 : i32
    %c0_i32_2 = arith.constant 0 : i32
    return %c0_i32, %c0_i32_0, %c0_i32_1 : i32, i32, i32
  }
  func.func @transform_6(%arg0: i32) -> (i32, i32, i32) {
    %c0_i32 = arith.constant 0 : i32
    %c0_i32_0 = arith.constant 0 : i32
    %c0_i32_1 = arith.constant 0 : i32
    %c0_i32_2 = arith.constant 0 : i32
    return %c0_i32, %c0_i32_0, %c0_i32_1 : i32, i32, i32
  }
  func.func @transform_7(%arg0: i32) -> (i32, i32, i32) {
    %c0_i32 = arith.constant 0 : i32
    %c0_i32_0 = arith.constant 0 : i32
    %c0_i32_1 = arith.constant 0 : i32
    %c0_i32_2 = arith.constant 0 : i32
    return %c0_i32, %c0_i32_0, %c0_i32_1 : i32, i32, i32
  }
  func.func @transform_8(%arg0: i32) -> (i32, i32, i32) {
    %c0_i32 = arith.constant 0 : i32
    %c0_i32_0 = arith.constant 0 : i32
    %c0_i32_1 = arith.constant 0 : i32
    return %arg0, %c0_i32, %c0_i32_0 : i32, i32, i32
  }
}

module attributes {stable_mosaic.version = 11 : i64} {
  func.func @_fused_ln_proj_kernel(%arg0: i32, %arg1: memref<16x32xf32, #tpu.memory_space<vmem>>, %arg2: memref<1x32xf32, #tpu.memory_space<vmem>>, %arg3: memref<1x32xf32, #tpu.memory_space<vmem>>, %arg4: memref<32x16xbf16, #tpu.memory_space<vmem>>, %arg5: memref<1x16xf32, #tpu.memory_space<vmem>>, %arg6: memref<16x16xf32, #tpu.memory_space<vmem>>) attributes {dimension_semantics = [#tpu.dimension_semantics<parallel>], iteration_bounds = array<i64: 1>, scalar_prefetch = 0 : i64, scratch_operands = 0 : i64, tpu.core_type = #tpu.core_type<tc>, window_params = [{transform_indices = @transform_0, window_bounds = array<i64: 16, 32>}, {pipeline_mode = #tpu.pipeline_mode<synchronous>, transform_indices = @transform_1, window_bounds = array<i64: 1, 32>}, {pipeline_mode = #tpu.pipeline_mode<synchronous>, transform_indices = @transform_2, window_bounds = array<i64: 1, 32>}, {pipeline_mode = #tpu.pipeline_mode<synchronous>, transform_indices = @transform_3, window_bounds = array<i64: 32, 16>}, {pipeline_mode = #tpu.pipeline_mode<synchronous>, transform_indices = @transform_4, window_bounds = array<i64: 1, 16>}, {transform_indices = @transform_5, window_bounds = array<i64: 16, 16>}]} {
    %c0 = arith.constant 0 : index
    %c0_0 = arith.constant 0 : index
    %0 = vector.load %arg1[%c0, %c0_0] : memref<16x32xf32, #tpu.memory_space<vmem>>, vector<16x32xf32>
    %c0_1 = arith.constant 0 : index
    %c0_2 = arith.constant 0 : index
    %1 = vector.load %arg2[%c0_1, %c0_2] : memref<1x32xf32, #tpu.memory_space<vmem>>, vector<1x32xf32>
    %2 = vector.shape_cast %1 : vector<1x32xf32> to vector<32xf32>
    %c0_3 = arith.constant 0 : index
    %c0_4 = arith.constant 0 : index
    %3 = vector.load %arg3[%c0_3, %c0_4] : memref<1x32xf32, #tpu.memory_space<vmem>>, vector<1x32xf32>
    %4 = vector.shape_cast %3 : vector<1x32xf32> to vector<32xf32>
    %cst = arith.constant dense<0.000000e+00> : vector<16xf32>
    %5 = vector.multi_reduction <add>, %0, %cst [1] : vector<16x32xf32> to vector<16xf32>
    %6 = vector.shape_cast %5 : vector<16xf32> to vector<16x1xf32>
    %cst_5 = arith.constant 3.200000e+01 : f32
    %7 = vector.broadcast %cst_5 : f32 to vector<16x1xf32>
    %8 = arith.divf %6, %7 : vector<16x1xf32>
    %9 = vector.broadcast %8 : vector<16x1xf32> to vector<16x32xf32>
    %10 = arith.subf %0, %9 : vector<16x32xf32>
    %11 = arith.mulf %10, %10 : vector<16x32xf32>
    %cst_6 = arith.constant dense<0.000000e+00> : vector<16xf32>
    %12 = vector.multi_reduction <add>, %11, %cst_6 [1] : vector<16x32xf32> to vector<16xf32>
    %13 = vector.shape_cast %12 : vector<16xf32> to vector<16x1xf32>
    %cst_7 = arith.constant 3.200000e+01 : f32
    %14 = vector.broadcast %cst_7 : f32 to vector<16x1xf32>
    %15 = arith.divf %13, %14 : vector<16x1xf32>
    %16 = vector.broadcast %8 : vector<16x1xf32> to vector<16x32xf32>
    %17 = arith.subf %0, %16 : vector<16x32xf32>
    %cst_8 = arith.constant 9.99999974E-6 : f32
    %18 = vector.broadcast %cst_8 : f32 to vector<16x1xf32>
    %19 = arith.addf %15, %18 : vector<16x1xf32>
    %20 = math.rsqrt %19 : vector<16x1xf32>
    %21 = vector.broadcast %20 : vector<16x1xf32> to vector<16x32xf32>
    %22 = arith.mulf %17, %21 : vector<16x32xf32>
    %23 = vector.shape_cast %2 : vector<32xf32> to vector<1x32xf32>
    %24 = vector.broadcast %23 : vector<1x32xf32> to vector<16x32xf32>
    %25 = arith.mulf %22, %24 : vector<16x32xf32>
    %26 = vector.shape_cast %4 : vector<32xf32> to vector<1x32xf32>
    %27 = vector.broadcast %26 : vector<1x32xf32> to vector<16x32xf32>
    %28 = arith.addf %25, %27 : vector<16x32xf32>
    %29 = arith.truncf %28 : vector<16x32xf32> to vector<16x32xbf16>
    %c0_9 = arith.constant 0 : index
    %c0_10 = arith.constant 0 : index
    %30 = vector.load %arg4[%c0_9, %c0_10] : memref<32x16xbf16, #tpu.memory_space<vmem>>, vector<32x16xbf16>
    %cst_11 = arith.constant dense<0.000000e+00> : vector<16x16xf32>
    %31 = tpu.matmul %29, %30, %cst_11 {dimension_numbers = #tpu.dot_dimension_numbers<[1], [0], [0], [1], [0, 0, 1, 1], [], []>} : vector<16x32xbf16>, vector<32x16xbf16>, vector<16x16xf32> -> vector<16x16xf32>
    %c0_12 = arith.constant 0 : index
    %c0_13 = arith.constant 0 : index
    %32 = vector.load %arg5[%c0_12, %c0_13] : memref<1x16xf32, #tpu.memory_space<vmem>>, vector<1x16xf32>
    %33 = vector.shape_cast %32 : vector<1x16xf32> to vector<16xf32>
    %34 = vector.shape_cast %33 : vector<16xf32> to vector<1x16xf32>
    %35 = vector.broadcast %34 : vector<1x16xf32> to vector<16x16xf32>
    %36 = arith.addf %31, %35 : vector<16x16xf32>
    %c0_14 = arith.constant 0 : index
    %c0_15 = arith.constant 0 : index
    %37 = vector.load %arg6[%c0_14, %c0_15] : memref<16x16xf32, #tpu.memory_space<vmem>>, vector<16x16xf32>
    tpu.vector_store %arg6[%c0_14, %c0_15], %36 {strides = array<i32>} : memref<16x16xf32, #tpu.memory_space<vmem>>, vector<16x16xf32>,
    return
  }
  func.func @transform_0(%arg0: i32) -> (i32, i32) {
    %c0_i32 = arith.constant 0 : i32
    %c0_i32_0 = arith.constant 0 : i32
    return %arg0, %c0_i32 : i32, i32
  }
  func.func @transform_1(%arg0: i32) -> (i32, i32) {
    %c0_i32 = arith.constant 0 : i32
    %c0_i32_0 = arith.constant 0 : i32
    %c0_i32_1 = arith.constant 0 : i32
    return %c0_i32, %c0_i32_0 : i32, i32
  }
  func.func @transform_2(%arg0: i32) -> (i32, i32) {
    %c0_i32 = arith.constant 0 : i32
    %c0_i32_0 = arith.constant 0 : i32
    %c0_i32_1 = arith.constant 0 : i32
    return %c0_i32, %c0_i32_0 : i32, i32
  }
  func.func @transform_3(%arg0: i32) -> (i32, i32) {
    %c0_i32 = arith.constant 0 : i32
    %c0_i32_0 = arith.constant 0 : i32
    %c0_i32_1 = arith.constant 0 : i32
    return %c0_i32, %c0_i32_0 : i32, i32
  }
  func.func @transform_4(%arg0: i32) -> (i32, i32) {
    %c0_i32 = arith.constant 0 : i32
    %c0_i32_0 = arith.constant 0 : i32
    %c0_i32_1 = arith.constant 0 : i32
    return %c0_i32, %c0_i32_0 : i32, i32
  }
  func.func @transform_5(%arg0: i32) -> (i32, i32) {
    %c0_i32 = arith.constant 0 : i32
    %c0_i32_0 = arith.constant 0 : i32
    return %arg0, %c0_i32 : i32, i32
  }
}

</mosaic_0001>

<llo_original>
// kernel: transformer_forward.16
$region0: #{transformer_forward.16}
  #allocation0 [shape = 'u32[]', space=smem, size = 0x4, offset = 0x4, fixed_abs, tag = 'smem constant byte address 0x4 - core index']
  #allocation1 [shape = 'u32[72,128]{1,0:T(1,128)}', space=vmem, size = 0x9000, scoped, tag = 'internal scratch']
  %s0 = inlined_call_operand.vmem [shape: f32[16,32], index: 0, kind: input, shape index: {}]
  %s1 = inlined_call_operand.vmem [shape: f32[1,32], index: 1, kind: input, shape index: {}]
  %s2 = inlined_call_operand.vmem [shape: f32[1,32], index: 2, kind: input, shape index: {}]
  %s3 = inlined_call_operand.vmem [shape: f32[16,32], index: 3, kind: output, shape index: {}]
  %s4 = sld [smem:[#allocation0]]
  $region22: #{transformer_forward.16} parent=0
    _
  %s6 = ssub.s32 1, %s4
  %s7 = scalar_select 0, %s6, %s4
  // Predicated region
  $region2: #{transformer_forward.16} parent=0 // pred_check
    _
  $region3: #{transformer_forward.16} parent=0 // pred_check_branch
    %9 = sbr.rel (0) target = $region5
  $region4: #{transformer_forward.16} parent=0 // pred_region
    _
  $region5: #{transformer_forward.16} parent=0 // pred_fallthru
    _
  // Predicated region
  $region6: #{transformer_forward.16} parent=0 // pred_check
    _
  $region7: #{transformer_forward.16} parent=0 // pred_check_branch
    %11 = sbr.rel (0) target = $region9
  $region8: #{transformer_forward.16} parent=0 // pred_region
    _
  $region9: #{transformer_forward.16} parent=0 // pred_fallthru
    _
  // Predicated region
  $region10: #{transformer_forward.16} parent=0 // pred_check
    _
  $region11: #{transformer_forward.16} parent=0 // pred_check_branch
    %13 = sbr.rel (0) target = $region13
  $region12: #{transformer_forward.16} parent=0 // pred_region
    _
  $region13: #{transformer_forward.16} parent=0 // pred_fallthru
    _
  %v14 = vld [vmem:[%s0] sm:$0xff]
  %v15 = vld [vmem:[%s0 + $0x8] sm:$0xff]
  %v16 = vld [vmem:[%s1] sm:$0x1]
  %v17 = vld [vmem:[%s2] sm:$0x1]
  %vm18 = vcmask 261120
  %v19 = vsel %vm18, %v14, 0.0
  %20 = vadd.xlane.f32.xlu0 %v19
  %v21 = vpop.xlane.xlu0 %20
  %v22 = vsel %vm18, %v15, 0.0
  %23 = vadd.xlane.f32.xlu0 %v22
  %v24 = vpop.xlane.xlu0 %23
  %v25 = vrcp.pop 32.0
  %v26 = vmul.f32 32.0, %v25
  %v27 = vsub.f32 1.0, %v26
  %v28 = vmul.f32 %v25, %v27
  %v29 = vadd.f32 %v25, %v28
  %vm30 = vweird.f32 %v25
  %v31 = vsel %vm30, %v25, %v29
  %v32 = vmul.f32 %v21, %v31
  %v33 = vmul.f32 %v24, %v31
  %v34 = vsub.f32 %v14, %v32
  %v35 = vsub.f32 %v15, %v33
  %v36 = vmul.f32 %v34, %v34
  %v37 = vmul.f32 %v35, %v35
  %v38 = vsel %vm18, %v36, 0.0
  %39 = vadd.xlane.f32.xlu0 %v38
  %v40 = vpop.xlane.xlu0 %39
  %v41 = vsel %vm18, %v37, 0.0
  %42 = vadd.xlane.f32.xlu0 %v41
  %v43 = vpop.xlane.xlu0 %42
  %v44 = vmul.f32 %v40, %v31
  %v45 = vmul.f32 %v43, %v31
  %v46 = vadd.f32 %v44, 1e-05
  %v47 = vadd.f32 %v45, 1e-05
  %v48 = vrsqrt.pop %v46
  %v49 = vmul.f32 %v48, %v46
  %v50 = vmul.f32 %v49, %v48
  %v51 = vmul.f32 0.5, %v50
  %v52 = vsub.f32 1.5, %v51
  %v53 = vmul.f32 %v48, %v52
  %vm54 = vweird.f32 %v46
  %vm55 = vweird.f32 %v48
  %vm56 = vmor %vm54, %vm55
  %v57 = vsel %vm56, %v48, %v53
  %v58 = vrsqrt.pop %v47
  %v59 = vmul.f32 %v58, %v47
  %v60 = vmul.f32 %v59, %v58
  %v61 = vmul.f32 0.5, %v60
  %v62 = vsub.f32 1.5, %v61
  %v63 = vmul.f32 %v58, %v62
  %vm64 = vweird.f32 %v47
  %vm65 = vweird.f32 %v58
  %vm66 = vmor %vm64, %vm65
  %v67 = vsel %vm66, %v58, %v63
  %v68 = vmul.f32 %v34, %v57
  %v69 = vmul.f32 %v35, %v67
  %v71 = vperm.slane %v16, 0
  %v73 = vmul.f32 %v68, %v71
  %v74 = vmul.f32 %v69, %v71
  %v76 = vperm.slane %v17, 0
  %v78 = vadd.f32 %v73, %v76
  %v79 = vadd.f32 %v74, %v76
  %80 = vst.msk [vmem:[%s3] sm:$0xff] %vm18, %v78
  %81 = vst.msk [vmem:[%s3 + $0x8] sm:$0xff] %vm18, %v79
  // Predicated region
  $region14: #{transformer_forward.16} parent=0 // pred_check
    _
  $region15: #{transformer_forward.16} parent=0 // pred_check_branch
    %83 = sbr.rel (0) target = $region17
  $region16: #{transformer_forward.16} parent=0 // pred_region
    _
  $region17: #{transformer_forward.16} parent=0 // pred_fallthru
    _
  // Predicated region
  $region18: #{transformer_forward.16} parent=0 // pred_check
    _
  $region19: #{transformer_forward.16} parent=0 // pred_check_branch
    %85 = sbr.rel (0) target = $region21
  $region20: #{transformer_forward.16} parent=0 // pred_region
    _
  $region21: #{transformer_forward.16} parent=0 // pred_fallthru
    _

// kernel: transformer_forward.13
$region0: #{transformer_forward.13}
  #allocation0 [shape = 'u32[]', space=smem, size = 0x4, offset = 0x4, fixed_abs, tag = 'smem constant byte address 0x4 - core index']
  #allocation1 [shape = 'u32[72,128]{1,0:T(1,128)}', space=vmem, size = 0x9000, scoped, tag = 'internal scratch']
  %s0 = inlined_call_operand.vmem [shape: f32[16,32], index: 0, kind: input, shape index: {}]
  %s1 = inlined_call_operand.vmem [shape: f32[1,32], index: 1, kind: input, shape index: {}]
  %s2 = inlined_call_operand.vmem [shape: f32[1,32], index: 2, kind: input, shape index: {}]
  %s3 = inlined_call_operand.vmem [shape: bf16[32,128], index: 3, kind: input, shape index: {}]
  %s4 = inlined_call_operand.vmem [shape: f32[1,128], index: 4, kind: input, shape index: {}]
  %s5 = inlined_call_operand.vmem [shape: bf16[128,32], index: 5, kind: input, shape index: {}]
  %s6 = inlined_call_operand.vmem [shape: f32[1,32], index: 6, kind: input, shape index: {}]
  %s7 = inlined_call_operand.vmem [shape: f32[16,32], index: 7, kind: output, shape index: {}]
  %s8 = sld [smem:[#allocation0]]
  $region38: #{transformer_forward.13} parent=0
    _
  %s10 = ssub.s32 1, %s8
  %s11 = scalar_select 0, %s10, %s8
  // Predicated region
  $region2: #{transformer_forward.13} parent=0 // pred_check
    _
  $region3: #{transformer_forward.13} parent=0 // pred_check_branch
    %13 = sbr.rel (0) target = $region5
  $region4: #{transformer_forward.13} parent=0 // pred_region
    _
  $region5: #{transformer_forward.13} parent=0 // pred_fallthru
    _
  // Predicated region
  $region6: #{transformer_forward.13} parent=0 // pred_check
    _
  $region7: #{transformer_forward.13} parent=0 // pred_check_branch
    %15 = sbr.rel (0) target = $region9
  $region8: #{transformer_forward.13} parent=0 // pred_region
    _
  $region9: #{transformer_forward.13} parent=0 // pred_fallthru
    _
  // Predicated region
  $region10: #{transformer_forward.13} parent=0 // pred_check
    _
  $region11: #{transformer_forward.13} parent=0 // pred_check_branch
    %17 = sbr.rel (0) target = $region13
  $region12: #{transformer_forward.13} parent=0 // pred_region
    _
  $region13: #{transformer_forward.13} parent=0 // pred_fallthru
    _
  // Predicated region
  $region14: #{transformer_forward.13} parent=0 // pred_check
    _
  $region15: #{transformer_forward.13} parent=0 // pred_check_branch
    %19 = sbr.rel (0) target = $region17
  $region16: #{transformer_forward.13} parent=0 // pred_region
    _
  $region17: #{transformer_forward.13} parent=0 // pred_fallthru
    _
  // Predicated region
  $region18: #{transformer_forward.13} parent=0 // pred_check
    _
  $region19: #{transformer_forward.13} parent=0 // pred_check_branch
    %21 = sbr.rel (0) target = $region21
  $region20: #{transformer_forward.13} parent=0 // pred_region
    _
  $region21: #{transformer_forward.13} parent=0 // pred_fallthru
    _
  // Predicated region
  $region22: #{transformer_forward.13} parent=0 // pred_check
    _
  $region23: #{transformer_forward.13} parent=0 // pred_check_branch
    %23 = sbr.rel (0) target = $region25
  $region24: #{transformer_forward.13} parent=0 // pred_region
    _
  $region25: #{transformer_forward.13} parent=0 // pred_fallthru
    _
  // Predicated region
  $region26: #{transformer_forward.13} parent=0 // pred_check
    _
  $region27: #{transformer_forward.13} parent=0 // pred_check_branch
    %25 = sbr.rel (0) target = $region29
  $region28: #{transformer_forward.13} parent=0 // pred_region
    _
  $region29: #{transformer_forward.13} parent=0 // pred_fallthru
    _
  %v27 = vld [vmem:[%s0] sm:$0xff]
  %v28 = vld [vmem:[%s0 + $0x8] sm:$0xff]
  %v29 = vld [vmem:[%s1] sm:$0x1]
  %v30 = vld [vmem:[%s2] sm:$0x1]
  %vm31 = vcmask 261120
  %v32 = vsel %vm31, %v27, 0.0
  %33 = vadd.xlane.f32.xlu0 %v32
  %v34 = vpop.xlane.xlu0 %33
  %v35 = vsel %vm31, %v28, 0.0
  %36 = vadd.xlane.f32.xlu0 %v35
  %v37 = vpop.xlane.xlu0 %36
  %v38 = vrcp.pop 32.0
  %v39 = vmul.f32 32.0, %v38
  %v40 = vsub.f32 1.0, %v39
  %v41 = vmul.f32 %v38, %v40
  %v42 = vadd.f32 %v38, %v41
  %vm43 = vweird.f32 %v38
  %v44 = vsel %vm43, %v38, %v42
  %v45 = vmul.f32 %v34, %v44
  %v46 = vmul.f32 %v37, %v44
  %v47 = vsub.f32 %v27, %v45
  %v48 = vsub.f32 %v28, %v46
  %v49 = vmul.f32 %v47, %v47
  %v50 = vmul.f32 %v48, %v48
  %v51 = vsel %vm31, %v49, 0.0
  %52 = vadd.xlane.f32.xlu0 %v51
  %v53 = vpop.xlane.xlu0 %52
  %v54 = vsel %vm31, %v50, 0.0
  %55 = vadd.xlane.f32.xlu0 %v54
  %v56 = vpop.xlane.xlu0 %55
  %v57 = vmul.f32 %v53, %v44
  %v58 = vmul.f32 %v56, %v44
  %v59 = vadd.f32 %v57, 1e-05
  %v60 = vadd.f32 %v58, 1e-05
  %v61 = vrsqrt.pop %v59
  %v62 = vmul.f32 %v61, %v59
  %v63 = vmul.f32 %v62, %v61
  %v64 = vmul.f32 0.5, %v63
  %v65 = vsub.f32 1.5, %v64
  %v66 = vmul.f32 %v61, %v65
  %vm67 = vweird.f32 %v59
  %vm68 = vweird.f32 %v61
  %vm69 = vmor %vm67, %vm68
  %v70 = vsel %vm69, %v61, %v66
  %v71 = vrsqrt.pop %v60
  %v72 = vmul.f32 %v71, %v60
  %v73 = vmul.f32 %v72, %v71
  %v74 = vmul.f32 0.5, %v73
  %v75 = vsub.f32 1.5, %v74
  %v76 = vmul.f32 %v71, %v75
  %vm77 = vweird.f32 %v60
  %vm78 = vweird.f32 %v71
  %vm79 = vmor %vm77, %vm78
  %v80 = vsel %vm79, %v71, %v76
  %v81 = vmul.f32 %v47, %v70
  %v82 = vmul.f32 %v48, %v80
  %v84 = vperm.slane %v29, 0
  %v86 = vmul.f32 %v81, %v84
  %v87 = vmul.f32 %v82, %v84
  %v89 = vperm.slane %v30, 0
  %v91 = vadd.f32 %v86, %v89
  %v92 = vadd.f32 %v87, %v89
  %v93 = vpack.c.bf16 %v92, %v91
  %v94 = vld [vmem:[%s3] sm:$0xf]
  %v95 = vld [vmem:[%s3 + $0x4] sm:$0xf]
  %v96 = vld [vmem:[%s3 + $0x8] sm:$0xf]
  %v97 = vld [vmem:[%s3 + $0xc] sm:$0xf]
  %v98 = vld [vmem:[%s4] sm:$0x1]
  %v100 = vperm.slane %v98, 0
  %v106 = vunpack.c.l.b16 %v94
  %v107 = vunpack.c.l.b16 %v95
  %v108 = vunpack.c.l.b16 %v96
  %v109 = vunpack.c.l.b16 %v97
  %v110 = vpack.c.b16 %v107, %v106
  %v111 = vpack.c.b16 %v109, %v108
  %v115 = vsel %vm31, %v93, 0
  %117 = vmatpush.bf16.msra.mxu0 0
  %118 = vmatpush.bf16.msra.mxu0 0
  %119 = vmatpush.bf16.msra.mxu0 0
  %120 = vmatpush.bf16.msra.mxu0 0
  %121 = vmatpush.bf16.msra.mxu0 0
  %122 = vmatpush.bf16.msra.mxu0 0
  %123 = vmatpush.bf16.msra.mxu0 %v111
  %124 = vmatpush.bf16.msra.mxu0 %v110
  %125 = vmatmul.bf16.gmra.mxu0 %v115
  %v126 = vpop.f32.mrf.mxu0
  %v127 = vadd.f32 %v100, %v126
  %v128 = vpop.f32.mrf.mxu0
  %v129 = vadd.f32 %v100, %v128
  %130 = vdwg.mxu0
  %v131 = vmax.f32 %v127, 0.0
  %v132 = vmax.f32 %v129, 0.0
  %v133 = vpack.c.bf16 %v132, %v131
  %v134 = vld [vmem:[%s5] sm:$0xf]
  %v135 = vld [vmem:[%s5 + $0x4] sm:$0xf]
  %v136 = vld [vmem:[%s5 + $0x8] sm:$0xf]
  %v137 = vld [vmem:[%s5 + $0xc] sm:$0xf]
  %v138 = vld [vmem:[%s5 + $0x10] sm:$0xf]
  %v139 = vld [vmem:[%s5 + $0x14] sm:$0xf]
  %v140 = vld [vmem:[%s5 + $0x18] sm:$0xf]
  %v141 = vld [vmem:[%s5 + $0x1c] sm:$0xf]
  %v142 = vld [vmem:[%s5 + $0x20] sm:$0xf]
  %v143 = vld [vmem:[%s5 + $0x24] sm:$0xf]
  %v144 = vld [vmem:[%s5 + $0x28] sm:$0xf]
  %v145 = vld [vmem:[%s5 + $0x2c] sm:$0xf]
  %v146 = vld [vmem:[%s5 + $0x30] sm:$0xf]
  %v147 = vld [vmem:[%s5 + $0x34] sm:$0xf]
  %v148 = vld [vmem:[%s5 + $0x38] sm:$0xf]
  %v149 = vld [vmem:[%s5 + $0x3c] sm:$0xf]
  %v150 = vld [vmem:[%s6] sm:$0x1]
  %v152 = vperm.slane %v150, 0
  %v170 = vunpack.c.l.b16 %v134
  %v171 = vunpack.c.l.b16 %v135
  %v172 = vunpack.c.l.b16 %v136
  %v173 = vunpack.c.l.b16 %v137
  %v174 = vunpack.c.l.b16 %v138
  %v175 = vunpack.c.l.b16 %v139
  %v176 = vunpack.c.l.b16 %v140
  %v177 = vunpack.c.l.b16 %v141
  %v178 = vunpack.c.l.b16 %v142
  %v179 = vunpack.c.l.b16 %v143
  %v180 = vunpack.c.l.b16 %v144
  %v181 = vunpack.c.l.b16 %v145
  %v182 = vunpack.c.l.b16 %v146
  %v183 = vunpack.c.l.b16 %v147
  %v184 = vunpack.c.l.b16 %v148
  %v185 = vunpack.c.l.b16 %v149
  %v186 = vpack.c.b16 %v171, %v170
  %v187 = vpack.c.b16 %v173, %v172
  %v188 = vpack.c.b16 %v175, %v174
  %v189 = vpack.c.b16 %v177, %v176
  %v190 = vpack.c.b16 %v179, %v178
  %v191 = vpack.c.b16 %v181, %v180
  %v192 = vpack.c.b16 %v183, %v182
  %v193 = vpack.c.b16 %v185, %v184
  %202 = vmatpush.bf16.msra.mxu0 %v193
  %203 = vmatpush.bf16.msra.mxu0 %v192
  %204 = vmatpush.bf16.msra.mxu0 %v191
  %205 = vmatpush.bf16.msra.mxu0 %v190
  %206 = vmatpush.bf16.msra.mxu0 %v189
  %207 = vmatpush.bf16.msra.mxu0 %v188
  %208 = vmatpush.bf16.msra.mxu0 %v187
  %209 = vmatpush.bf16.msra.mxu0 %v186
  %210 = vmatmul.bf16.gmra.mxu0 %v133
  %v211 = vpop.f32.mrf.mxu0
  %v212 = vadd.f32 %v152, %v211
  %v213 = vpop.f32.mrf.mxu0
  %v214 = vadd.f32 %v152, %v213
  %215 = vdwg.mxu0
  %v216 = vadd.f32 %v27, %v212
  %v217 = vadd.f32 %v28, %v214
  %218 = vst.msk [vmem:[%s7] sm:$0xff] %vm31, %v216
  %219 = vst.msk [vmem:[%s7 + $0x8] sm:$0xff] %vm31, %v217
  // Predicated region
  $region30: #{transformer_forward.13} parent=0 // pred_check
    _
  $region31: #{transformer_forward.13} parent=0 // pred_check_branch
    %221 = sbr.rel (0) target = $region33
  $region32: #{transformer_forward.13} parent=0 // pred_region
    _
  $region33: #{transformer_forward.13} parent=0 // pred_fallthru
    _
  // Predicated region
  $region34: #{transformer_forward.13} parent=0 // pred_check
    _
  $region35: #{transformer_forward.13} parent=0 // pred_check_branch
    %223 = sbr.rel (0) target = $region37
  $region36: #{transformer_forward.13} parent=0 // pred_region
    _
  $region37: #{transformer_forward.13} parent=0 // pred_fallthru
    _

// kernel: transformer_forward.12
$region0: #{transformer_forward.12}
  #allocation0 [shape = 'u32[]', space=smem, size = 0x4, offset = 0x4, fixed_abs, tag = 'smem constant byte address 0x4 - core index']
  #allocation1 [shape = 'u32[72,128]{1,0:T(1,128)}', space=vmem, size = 0x9000, scoped, tag = 'internal scratch']
  %s0 = inlined_call_operand.vmem [shape: f32[2,8,32], index: 0, kind: input, shape index: {}]
  %s1 = inlined_call_operand.vmem [shape: f32[1,32], index: 1, kind: input, shape index: {}]
  %s2 = inlined_call_operand.vmem [shape: f32[1,32], index: 2, kind: input, shape index: {}]
  %s3 = inlined_call_operand.vmem [shape: bf16[4,32,8], index: 3, kind: input, shape index: {}]
  %s4 = inlined_call_operand.vmem [shape: bf16[4,32,8], index: 4, kind: input, shape index: {}]
  %s5 = inlined_call_operand.vmem [shape: bf16[4,32,8], index: 5, kind: input, shape index: {}]
  %s6 = inlined_call_operand.vmem [shape: bf16[4,8,32], index: 6, kind: input, shape index: {}]
  %s7 = inlined_call_operand.vmem [shape: f32[2,8,32], index: 7, kind: output, shape index: {}]
  %s8 = sld [smem:[#allocation0]]
  $region61: #{transformer_forward.12} parent=0
    _
  %s10 = ssub.s32 1, %s8
  %s11 = scalar_select 0, %s10, %s8
  loop: start=0, step=1, limit=4
  $region2: #{transformer_forward.12} parent=0 // loop_pre_header
    _
  $region3: #{transformer_forward.12} parent=0 // loop_header
    %s13 = sphi 0, %s17
    %p14 = scmp.ge.s32.totalorder %s13, 4
    %s23 = sphi 0, %s25
    %s26 = sphi 0, %s23
    %s27 = sphi 0, %s26
    %s43 = sphi 0, %s27
    %s47 = sphi 0, %s47
    %s49 = sphi 0, %s47
    %s50 = sphi 0, %s49
    %s64 = sphi 0, %s50
    %s68 = sphi 0, %s68
    %s70 = sphi 0, %s68
    %s71 = sphi 0, %s70
    %s85 = sphi 0, %s71
    %s89 = sphi 0, %s89
    %s91 = sphi 0, %s89
    %s92 = sphi 0, %s91
    %s106 = sphi 0, %s92
    %s110 = sphi 0, %s110
    %s112 = sphi 0, %s110
    %s113 = sphi 0, %s112
    %s127 = sphi 0, %s113
    %s131 = sphi 0, %s131
    %s133 = sphi 0, %s131
    %s134 = sphi 0, %s133
    %s148 = sphi 0, %s134
    %s152 = sphi 0, %s152
    %s154 = sphi 0, %s152
    %s155 = sphi 0, %s154
    %s169 = sphi 0, %s155
    %s175 = sphi 0, %s177
    %s178 = sphi 0, %s175
    %s179 = sphi 0, %s178
    %s195 = sphi 0, %s179
  $region4: #{transformer_forward.12} parent=0 // loop_header_branch
    %16 = sbr.rel (%p14) target = $region8
  $region5: #{transformer_forward.12} parent=0 // loop_body
    %s18 = ssub.s32 %s13, 1
    %s19 = ssub.s32 %s13, 2
    %s20 = sadd.s32 %s13, 1
    %s21 = ssub.s32 %s13, %s20
    %p22 = scmp.eq.s32.totalorder %s21, 0
    %s24 = sadd.s32 %s23, 1
    %s25 = scalar_select %p22, %s23, %s24
    %p28 = pneg %p22
    %p29 = scmp.eq.s32.totalorder %s13, 1
    %p30 = por %p28, %p29
    %p31 = scmp.ne.s32.totalorder %s23, %s26
    %p32 = scmp.eq.s32.totalorder %s13, 0
    %p33 = por %p31, %p32
    %p34 = scmp.ne.s32.totalorder %s23, %s26
    %p35 = scmp.eq.s32.totalorder %s18, 1
    %p36 = por %p34, %p35
    %p37 = scmp.ne.s32.totalorder %s26, %s27
    %p38 = scmp.eq.s32.totalorder %s18, 0
    %p39 = por %p37, %p38
    %p40 = scmp.ne.s32.totalorder %s26, %s27
    %p41 = scmp.eq.s32.totalorder %s19, 1
    %p42 = por %p40, %p41
    %p44 = scmp.ne.s32.totalorder %s27, %s43
    %p45 = scmp.eq.s32.totalorder %s19, 0
    %p46 = por %p44, %p45
    %s48 = sadd.s32 %s47, 1
    %p51 = scmp.eq.s32.totalorder %s13, 1
    %p52 = scmp.ne.s32.totalorder %s47, %s49
    %p53 = scmp.eq.s32.totalorder %s13, 0
    %p54 = por %p52, %p53
    %p55 = scmp.ne.s32.totalorder %s47, %s49
    %p56 = scmp.eq.s32.totalorder %s18, 1
    %p57 = por %p55, %p56
    %p58 = scmp.ne.s32.totalorder %s49, %s50
    %p59 = scmp.eq.s32.totalorder %s18, 0
    %p60 = por %p58, %p59
    %p61 = scmp.ne.s32.totalorder %s49, %s50
    %p62 = scmp.eq.s32.totalorder %s19, 1
    %p63 = por %p61, %p62
    %p65 = scmp.ne.s32.totalorder %s50, %s64
    %p66 = scmp.eq.s32.totalorder %s19, 0
    %p67 = por %p65, %p66
    %s69 = sadd.s32 %s68, 1
    %p72 = scmp.eq.s32.totalorder %s13, 1
    %p73 = scmp.ne.s32.totalorder %s68, %s70
    %p74 = scmp.eq.s32.totalorder %s13, 0
    %p75 = por %p73, %p74
    %p76 = scmp.ne.s32.totalorder %s68, %s70
    %p77 = scmp.eq.s32.totalorder %s18, 1
    %p78 = por %p76, %p77
    %p79 = scmp.ne.s32.totalorder %s70, %s71
    %p80 = scmp.eq.s32.totalorder %s18, 0
    %p81 = por %p79, %p80
    %p82 = scmp.ne.s32.totalorder %s70, %s71
    %p83 = scmp.eq.s32.totalorder %s19, 1
    %p84 = por %p82, %p83
    %p86 = scmp.ne.s32.totalorder %s71, %s85
    %p87 = scmp.eq.s32.totalorder %s19, 0
    %p88 = por %p86, %p87
    %s90 = sadd.s32 %s89, 1
    %p93 = scmp.eq.s32.totalorder %s13, 1
    %p94 = scmp.ne.s32.totalorder %s89, %s91
    %p95 = scmp.eq.s32.totalorder %s13, 0
    %p96 = por %p94, %p95
    %p97 = scmp.ne.s32.totalorder %s89, %s91
    %p98 = scmp.eq.s32.totalorder %s18, 1
    %p99 = por %p97, %p98
    %p100 = scmp.ne.s32.totalorder %s91, %s92
    %p101 = scmp.eq.s32.totalorder %s18, 0
    %p102 = por %p100, %p101
    %p103 = scmp.ne.s32.totalorder %s91, %s92
    %p104 = scmp.eq.s32.totalorder %s19, 1
    %p105 = por %p103, %p104
    %p107 = scmp.ne.s32.totalorder %s92, %s106
    %p108 = scmp.eq.s32.totalorder %s19, 0
    %p109 = por %p107, %p108
    %s111 = sadd.s32 %s110, 1
    %p114 = scmp.eq.s32.totalorder %s13, 1
    %p115 = scmp.ne.s32.totalorder %s110, %s112
    %p116 = scmp.eq.s32.totalorder %s13, 0
    %p117 = por %p115, %p116
    %p118 = scmp.ne.s32.totalorder %s110, %s112
    %p119 = scmp.eq.s32.totalorder %s18, 1
    %p120 = por %p118, %p119
    %p121 = scmp.ne.s32.totalorder %s112, %s113
    %p122 = scmp.eq.s32.totalorder %s18, 0
    %p123 = por %p121, %p122
    %p124 = scmp.ne.s32.totalorder %s112, %s113
    %p125 = scmp.eq.s32.totalorder %s19, 1
    %p126 = por %p124, %p125
    %p128 = scmp.ne.s32.totalorder %s113, %s127
    %p129 = scmp.eq.s32.totalorder %s19, 0
    %p130 = por %p128, %p129
    %s132 = sadd.s32 %s131, 1
    %p135 = scmp.eq.s32.totalorder %s13, 1
    %p136 = scmp.ne.s32.totalorder %s131, %s133
    %p137 = scmp.eq.s32.totalorder %s13, 0
    %p138 = por %p136, %p137
    %p139 = scmp.ne.s32.totalorder %s131, %s133
    %p140 = scmp.eq.s32.totalorder %s18, 1
    %p141 = por %p139, %p140
    %p142 = scmp.ne.s32.totalorder %s133, %s134
    %p143 = scmp.eq.s32.totalorder %s18, 0
    %p144 = por %p142, %p143
    %p145 = scmp.ne.s32.totalorder %s133, %s134
    %p146 = scmp.eq.s32.totalorder %s19, 1
    %p147 = por %p145, %p146
    %p149 = scmp.ne.s32.totalorder %s134, %s148
    %p150 = scmp.eq.s32.totalorder %s19, 0
    %p151 = por %p149, %p150
    %s153 = sadd.s32 %s152, 1
    %p156 = scmp.eq.s32.totalorder %s13, 1
    %p157 = scmp.ne.s32.totalorder %s152, %s154
    %p158 = scmp.eq.s32.totalorder %s13, 0
    %p159 = por %p157, %p158
    %p160 = scmp.ne.s32.totalorder %s152, %s154
    %p161 = scmp.eq.s32.totalorder %s18, 1
    %p162 = por %p160, %p161
    %p163 = scmp.ne.s32.totalorder %s154, %s155
    %p164 = scmp.eq.s32.totalorder %s18, 0
    %p165 = por %p163, %p164
    %p166 = scmp.ne.s32.totalorder %s154, %s155
    %p167 = scmp.eq.s32.totalorder %s19, 1
    %p168 = por %p166, %p167
    %p170 = scmp.ne.s32.totalorder %s155, %s169
    %p171 = scmp.eq.s32.totalorder %s19, 0
    %p172 = por %p170, %p171
    %s173 = ssub.s32 %s13, %s20
    %p174 = scmp.eq.s32.totalorder %s173, 0
    %s176 = sadd.s32 %s175, 1
    %s177 = scalar_select %p174, %s175, %s176
    %p180 = pneg %p174
    %p181 = scmp.eq.s32.totalorder %s13, 1
    %p182 = por %p180, %p181
    %p183 = scmp.ne.s32.totalorder %s175, %s178
    %p184 = scmp.eq.s32.totalorder %s13, 0
    %p185 = por %p183, %p184
    %p186 = scmp.ne.s32.totalorder %s175, %s178
    %p187 = scmp.eq.s32.totalorder %s18, 1
    %p188 = por %p186, %p187
    %p189 = scmp.ne.s32.totalorder %s178, %s179
    %p190 = scmp.eq.s32.totalorder %s18, 0
    %p191 = por %p189, %p190
    %p192 = scmp.ne.s32.totalorder %s178, %s179
    %p193 = scmp.eq.s32.totalorder %s19, 1
    %p194 = por %p192, %p193
    %p196 = scmp.ne.s32.totalorder %s179, %s195
    %p197 = scmp.eq.s32.totalorder %s19, 0
    %p198 = por %p196, %p197
    %p199 = scmp.le.s32.totalorder 1, %s13
    %p200 = scmp.lt.s32.totalorder %s13, 3
    %p201 = pnand %p199, %p200
    %p202 = pneg %p201
    // Predicated region
    $region9: #{transformer_forward.12} parent=5 // pred_check
      _
    $region10: #{transformer_forward.12} parent=5 // pred_check_branch
      %204 = sbr.rel (%p201) target = $region12
    $region11: #{transformer_forward.12} parent=5 // pred_region
      %s205 = ssub.s32 %s13, 1
      // Predicated region
      $region13: #{transformer_forward.12} parent=11 // pred_check
        %p206 = pneg %p60
      $region14: #{transformer_forward.12} parent=11 // pred_check_branch
        %208 = sbr.rel (%p206) target = $region16
      $region15: #{transformer_forward.12} parent=11 // pred_region
        _
      $region16: #{transformer_forward.12} parent=11 // pred_fallthru
        _
      // Predicated region
      $region17: #{transformer_forward.12} parent=11 // pred_check
        %p209 = pneg %p81
      $region18: #{transformer_forward.12} parent=11 // pred_check_branch
        %211 = sbr.rel (%p209) target = $region20
      $region19: #{transformer_forward.12} parent=11 // pred_region
        _
      $region20: #{transformer_forward.12} parent=11 // pred_fallthru
        _
      // Predicated region
      $region21: #{transformer_forward.12} parent=11 // pred_check
        %p212 = pneg %p102
      $region22: #{transformer_forward.12} parent=11 // pred_check_branch
        %214 = sbr.rel (%p212) target = $region24
      $region23: #{transformer_forward.12} parent=11 // pred_region
        _
      $region24: #{transformer_forward.12} parent=11 // pred_fallthru
        _
      // Predicated region
      $region25: #{transformer_forward.12} parent=11 // pred_check
        %p215 = pneg %p123
      $region26: #{transformer_forward.12} parent=11 // pred_check_branch
        %217 = sbr.rel (%p215) target = $region28
      $region27: #{transformer_forward.12} parent=11 // pred_region
        _
      $region28: #{transformer_forward.12} parent=11 // pred_fallthru
        _
      // Predicated region
      $region29: #{transformer_forward.12} parent=11 // pred_check
        %p218 = pneg %p144
      $region30: #{transformer_forward.12} parent=11 // pred_check_branch
        %220 = sbr.rel (%p218) target = $region32
      $region31: #{transformer_forward.12} parent=11 // pred_region
        _
      $region32: #{transformer_forward.12} parent=11 // pred_fallthru
        _
      // Predicated region
      $region33: #{transformer_forward.12} parent=11 // pred_check
        %p221 = pneg %p165
      $region34: #{transformer_forward.12} parent=11 // pred_check_branch
        %223 = sbr.rel (%p221) target = $region36
      $region35: #{transformer_forward.12} parent=11 // pred_region
        _
      $region36: #{transformer_forward.12} parent=11 // pred_fallthru
        _
    $region12: #{transformer_forward.12} parent=5 // pred_fallthru
      _
    %p224 = scmp.lt.s32.totalorder %s13, 2
    // Predicated region
    $region37: #{transformer_forward.12} parent=5 // pred_check
      %p225 = pneg %p224
    $region38: #{transformer_forward.12} parent=5 // pred_check_branch
      %227 = sbr.rel (%p225) target = $region40
    $region39: #{transformer_forward.12} parent=5 // pred_region
      // Predicated region
      $region41: #{transformer_forward.12} parent=39 // pred_check
        %p228 = pneg %p33
      $region42: #{transformer_forward.12} parent=39 // pred_check_branch
        %230 = sbr.rel (%p228) target = $region44
      $region43: #{transformer_forward.12} parent=39 // pred_region
        %p231 = scmp.lt.s32.totalorder %s13, 1
        %s232 = scalar_select %p231, %s13, 1
        %s233 = smul.addr %s232, 8
        %s234 = scalar_lea.vmem %s0, %s233
      $region44: #{transformer_forward.12} parent=39 // pred_fallthru
        _
    $region40: #{transformer_forward.12} parent=5 // pred_fallthru
      _
    %p235 = scmp.le.s32.totalorder 1, %s13
    %p236 = scmp.lt.s32.totalorder %s13, 3
    %p237 = pnand %p235, %p236
    %p238 = pneg %p237
    // Predicated region
    $region45: #{transformer_forward.12} parent=5 // pred_check
      _
    $region46: #{transformer_forward.12} parent=5 // pred_check_branch
      %240 = sbr.rel (%p237) target = $region48
    $region47: #{transformer_forward.12} parent=5 // pred_region
      %s241 = ssub.s32 %s13, 1
      %p242 = scmp.lt.s32.totalorder %s18, 1
      %s243 = scalar_select %p242, %s18, 1
      %s244 = smul.addr %s243, 8
      %s245 = scalar_lea.vmem %s0, %s244
      %p246 = pneg %p39
      %p247 = pneg %p36
      %p248 = pneg %p60
      %p249 = pneg %p57
      %p250 = pneg %p81
      %p251 = pneg %p78
      %p252 = pneg %p102
      %p253 = pneg %p99
      %p254 = pneg %p123
      %p255 = pneg %p120
      %p256 = pneg %p144
      %p257 = pneg %p141
      %p258 = pneg %p165
      %p259 = pneg %p162
      %p260 = pneg %p191
      %p261 = pneg %p188
      %p262 = scmp.lt.s32.totalorder %s18, 1
      %s263 = scalar_select %p262, %s18, 1
      %s264 = smul.addr %s263, 8
      %s265 = scalar_lea.vmem %s7, %s264
      %p266 = scmp.lt.s32.totalorder %s18, 1
      %s267 = scalar_select %p266, %s18, 1
      %s268 = smul.addr %s267, 8
      %s269 = scalar_lea.vmem %s0, %s268
      %p270 = scmp.lt.s32.totalorder %s18, 1
      %s271 = scalar_select %p270, %s18, 1
      %s272 = smul.addr %s271, 8
      %s273 = scalar_lea.vmem %s7, %s272
      %v275 = vld [vmem:[%s269] sm:$0xff]
      %v276 = vld [vmem:[%s1] sm:$0x1]
      %v277 = vld [vmem:[%s2] sm:$0x1]
      %vm278 = vcmask 261120
      %v279 = vsel %vm278, %v275, 0.0
      %280 = vadd.xlane.f32.xlu0 %v279
      %v281 = vpop.xlane.xlu0 %280
      %v282 = vrcp.pop 32.0
      %v283 = vmul.f32 32.0, %v282
      %v284 = vsub.f32 1.0, %v283
      %v285 = vmul.f32 %v282, %v284
      %v286 = vadd.f32 %v282, %v285
      %vm287 = vweird.f32 %v282
      %v288 = vsel %vm287, %v282, %v286
      %v289 = vmul.f32 %v281, %v288
      %v290 = vsub.f32 %v275, %v289
      %v291 = vmul.f32 %v290, %v290
      %v292 = vsel %vm278, %v291, 0.0
      %293 = vadd.xlane.f32.xlu0 %v292
      %v294 = vpop.xlane.xlu0 %293
      %v295 = vmul.f32 %v294, %v288
      %v296 = vadd.f32 %v295, 1e-05
      %v297 = vrsqrt.pop %v296
      %v298 = vmul.f32 %v297, %v296
      %v299 = vmul.f32 %v298, %v297
      %v300 = vmul.f32 0.5, %v299
      %v301 = vsub.f32 1.5, %v300
      %v302 = vmul.f32 %v297, %v301
      %vm303 = vweird.f32 %v296
      %vm304 = vweird.f32 %v297
      %vm305 = vmor %vm303, %vm304
      %v306 = vsel %vm305, %v297, %v302
      %v307 = vmul.f32 %v290, %v306
      %v309 = vperm.slane %v276, 0
      %v311 = vmul.f32 %v307, %v309
      %v313 = vperm.slane %v277, 0
      %v315 = vadd.f32 %v311, %v313
      %v316 = vpack.c.bf16 %v315, %v315
      %v317 = vld [vmem:[%s3] sm:$0xf]
      %v318 = vld [vmem:[%s3 + $0x4] sm:$0xf]
      %v319 = vld [vmem:[%s3 + $0x8] sm:$0xf]
      %v320 = vld [vmem:[%s3 + $0xc] sm:$0xf]
      %v325 = vunpack.c.l.b16 %v317
      %v326 = vunpack.c.l.b16 %v318
      %v327 = vunpack.c.l.b16 %v319
      %v328 = vunpack.c.l.b16 %v320
      %v329 = vpack.c.b16 %v326, %v325
      %v330 = vpack.c.b16 %v328, %v327
      %v334 = vsel %vm278, %v316, 0
      %336 = vmatpush.bf16.msra.mxu0 0
      %337 = vmatpush.bf16.msra.mxu0 0
      %338 = vmatpush.bf16.msra.mxu0 0
      %339 = vmatpush.bf16.msra.mxu0 0
      %340 = vmatpush.bf16.msra.mxu0 0
      %341 = vmatpush.bf16.msra.mxu0 0
      %342 = vmatpush.bf16.msra.mxu0 %v330
      %343 = vmatpush.bf16.msra.mxu0 %v329
      %344 = vmatmul.bf16.gmra.mxu0 %v334
      %v345 = vpop.f32.mrf.mxu0
      %v346 = vadd.f32 0.0, %v345
      %v347 = vpop.f32.mrf.mxu0
      %348 = vdwg.mxu0
      %v349 = vld [vmem:[%s4] sm:$0xf]
      %v350 = vld [vmem:[%s4 + $0x4] sm:$0xf]
      %v351 = vld [vmem:[%s4 + $0x8] sm:$0xf]
      %v352 = vld [vmem:[%s4 + $0xc] sm:$0xf]
      %v357 = vunpack.c.l.b16 %v349
      %v358 = vunpack.c.l.b16 %v350
      %v359 = vunpack.c.l.b16 %v351
      %v360 = vunpack.c.l.b16 %v352
      %v361 = vpack.c.b16 %v358, %v357
      %v362 = vpack.c.b16 %v360, %v359
      %365 = vmatpush.bf16.msra.mxu0 0
      %366 = vmatpush.bf16.msra.mxu0 0
      %367 = vmatpush.bf16.msra.mxu0 0
      %368 = vmatpush.bf16.msra.mxu0 0
      %369 = vmatpush.bf16.msra.mxu0 0
      %370 = vmatpush.bf16.msra.mxu0 0
      %371 = vmatpush.bf16.msra.mxu0 %v362
      %372 = vmatpush.bf16.msra.mxu0 %v361
      %373 = vmatmul.bf16.gmra.mxu0 %v334
      %v374 = vpop.f32.mrf.mxu0
      %v375 = vadd.f32 0.0, %v374
      %v376 = vpop.f32.mrf.mxu0
      %377 = vdwg.mxu0
      %v378 = vld [vmem:[%s5] sm:$0xf]
      %v379 = vld [vmem:[%s5 + $0x4] sm:$0xf]
      %v380 = vld [vmem:[%s5 + $0x8] sm:$0xf]
      %v381 = vld [vmem:[%s5 + $0xc] sm:$0xf]
      %v386 = vunpack.c.l.b16 %v378
      %v387 = vunpack.c.l.b16 %v379
      %v388 = vunpack.c.l.b16 %v380
      %v389 = vunpack.c.l.b16 %v381
      %v390 = vpack.c.b16 %v387, %v386
      %v391 = vpack.c.b16 %v389, %v388
      %394 = vmatpush.bf16.msra.mxu0 0
      %395 = vmatpush.bf16.msra.mxu0 0
      %396 = vmatpush.bf16.msra.mxu0 0
      %397 = vmatpush.bf16.msra.mxu0 0
      %398 = vmatpush.bf16.msra.mxu0 0
      %399 = vmatpush.bf16.msra.mxu0 0
      %400 = vmatpush.bf16.msra.mxu0 %v391
      %401 = vmatpush.bf16.msra.mxu0 %v390
      %402 = vmatmul.bf16.gmra.mxu0 %v334
      %v403 = vpop.f32.mrf.mxu0
      %v404 = vadd.f32 0.0, %v403
      %v405 = vpop.f32.mrf.mxu0
      %406 = vdwg.mxu0
      %v407 = vpack.c.bf16 %v346, %v346
      %v408 = vpack.c.bf16 %v375, %v375
      %vm409 = vcmask 64512
      %v411 = vsel %vm409, %v407, 0
      %v414 = vsel %vm409, %v408, 0
      %416 = vmatpush.bf16.xpose.msra.mxu0 0
      %417 = vmatpush.bf16.xpose.msra.mxu0 0
      %418 = vmatpush.bf16.xpose.msra.mxu0 0
      %419 = vmatpush.bf16.xpose.msra.mxu0 0
      %420 = vmatpush.bf16.xpose.msra.mxu0 0
      %421 = vmatpush.bf16.xpose.msra.mxu0 0
      %422 = vmatpush.bf16.xpose.msra.mxu0 0
      %423 = vmatpush.bf16.xpose.msra.mxu0 %v414
      %424 = vmatmul.bf16.gmra.mxu0 %v411
      %v425 = vpop.f32.mrf.mxu0
      %v426 = vadd.f32 0.0, %v425
      %v427 = vpop.f32.mrf.mxu0
      %428 = vdwg.mxu0
      %v429 = vsel %vm409, %v426, -inf
      %430 = vmax.xlane.f32.xlu0 %v429
      %v431 = vpop.xlane.xlu0 %430
      %v432 = vsub.f32 %v426, %v431
      %v433 = vmul.f32 %v432, 1.442695
      %v434 = vpow.pop %v433
      %v435 = vsel %vm409, %v434, 0.0
      %436 = vadd.xlane.f32.xlu0 %v435
      %v437 = vpop.xlane.xlu0 %436
      %v438 = vrcp.pop %v437
      %v439 = vmul.f32 %v434, %v438
      %v440 = vpack.c.bf16 %v439, %v439
      %v441 = vpack.c.bf16 %v404, %v404
      %v443 = vsel %vm409, %v440, 0
      %vm445 = vcmask 1043456
      %v447 = vsel %vm445, %v441, 0
      %449 = vmatpush.bf16.msra.mxu0 0
      %450 = vmatpush.bf16.msra.mxu0 0
      %451 = vmatpush.bf16.msra.mxu0 0
      %452 = vmatpush.bf16.msra.mxu0 0
      %453 = vmatpush.bf16.msra.mxu0 0
      %454 = vmatpush.bf16.msra.mxu0 0
      %455 = vmatpush.bf16.msra.mxu0 0
      %456 = vmatpush.bf16.msra.mxu0 %v447
      %457 = vmatmul.bf16.gmra.mxu0 %v443
      %v458 = vpop.f32.mrf.mxu0
      %v459 = vadd.f32 0.0, %v458
      %v460 = vpop.f32.mrf.mxu0
      %461 = vdwg.mxu0
      %v462 = vpack.c.bf16 %v459, %v459
      %v463 = vld [vmem:[%s6] sm:$0xf]
      %s464 = scalar_lea.vmem %s3, 16
      %v465 = vld [vmem:[%s464] sm:$0xf]
      %v466 = vld [vmem:[%s464 + $0x4] sm:$0xf]
      %v467 = vld [vmem:[%s464 + $0x8] sm:$0xf]
      %v468 = vld [vmem:[%s464 + $0xc] sm:$0xf]
      %v473 = vunpack.c.l.b16 %v465
      %v474 = vunpack.c.l.b16 %v466
      %v475 = vunpack.c.l.b16 %v467
      %v476 = vunpack.c.l.b16 %v468
      %v477 = vpack.c.b16 %v474, %v473
      %v478 = vpack.c.b16 %v476, %v475
      %481 = vmatpush.bf16.msra.mxu0 0
      %482 = vmatpush.bf16.msra.mxu0 0
      %483 = vmatpush.bf16.msra.mxu0 0
      %484 = vmatpush.bf16.msra.mxu0 0
      %485 = vmatpush.bf16.msra.mxu0 0
      %486 = vmatpush.bf16.msra.mxu0 0
      %487 = vmatpush.bf16.msra.mxu0 %v478
      %488 = vmatpush.bf16.msra.mxu0 %v477
      %489 = vmatmul.bf16.gmra.mxu0 %v334
      %v490 = vpop.f32.mrf.mxu0
      %v491 = vadd.f32 0.0, %v490
      %v492 = vpop.f32.mrf.mxu0
      %493 = vdwg.mxu0
      %s494 = scalar_lea.vmem %s4, 16
      %v495 = vld [vmem:[%s494] sm:$0xf]
      %v496 = vld [vmem:[%s494 + $0x4] sm:$0xf]
      %v497 = vld [vmem:[%s494 + $0x8] sm:$0xf]
      %v498 = vld [vmem:[%s494 + $0xc] sm:$0xf]
      %v503 = vunpack.c.l.b16 %v495
      %v504 = vunpack.c.l.b16 %v496
      %v505 = vunpack.c.l.b16 %v497
      %v506 = vunpack.c.l.b16 %v498
      %v507 = vpack.c.b16 %v504, %v503
      %v508 = vpack.c.b16 %v506, %v505
      %511 = vmatpush.bf16.msra.mxu0 0
      %512 = vmatpush.bf16.msra.mxu0 0
      %513 = vmatpush.bf16.msra.mxu0 0
      %514 = vmatpush.bf16.msra.mxu0 0
      %515 = vmatpush.bf16.msra.mxu0 0
      %516 = vmatpush.bf16.msra.mxu0 0
      %517 = vmatpush.bf16.msra.mxu0 %v508
      %518 = vmatpush.bf16.msra.mxu0 %v507
      %519 = vmatmul.bf16.gmra.mxu0 %v334
      %v520 = vpop.f32.mrf.mxu0
      %v521 = vadd.f32 0.0, %v520
      %v522 = vpop.f32.mrf.mxu0
      %523 = vdwg.mxu0
      %s524 = scalar_lea.vmem %s5, 16
      %v525 = vld [vmem:[%s524] sm:$0xf]
      %v526 = vld [vmem:[%s524 + $0x4] sm:$0xf]
      %v527 = vld [vmem:[%s524 + $0x8] sm:$0xf]
      %v528 = vld [vmem:[%s524 + $0xc] sm:$0xf]
      %v533 = vunpack.c.l.b16 %v525
      %v534 = vunpack.c.l.b16 %v526
      %v535 = vunpack.c.l.b16 %v527
      %v536 = vunpack.c.l.b16 %v528
      %v537 = vpack.c.b16 %v534, %v533
      %v538 = vpack.c.b16 %v536, %v535
      %541 = vmatpush.bf16.msra.mxu0 0
      %542 = vmatpush.bf16.msra.mxu0 0
      %543 = vmatpush.bf16.msra.mxu0 0
      %544 = vmatpush.bf16.msra.mxu0 0
      %545 = vmatpush.bf16.msra.mxu0 0
      %546 = vmatpush.bf16.msra.mxu0 0
      %547 = vmatpush.bf16.msra.mxu0 %v538
      %548 = vmatpush.bf16.msra.mxu0 %v537
      %549 = vmatmul.bf16.gmra.mxu0 %v334
      %v550 = vpop.f32.mrf.mxu0
      %v551 = vadd.f32 0.0, %v550
      %v552 = vpop.f32.mrf.mxu0
      %553 = vdwg.mxu0
      %v554 = vpack.c.bf16 %v491, %v491
      %v555 = vpack.c.bf16 %v521, %v521
      %v557 = vsel %vm409, %v554, 0
      %v560 = vsel %vm409, %v555, 0
      %562 = vmatpush.bf16.xpose.msra.mxu0 0
      %563 = vmatpush.bf16.xpose.msra.mxu0 0
      %564 = vmatpush.bf16.xpose.msra.mxu0 0
      %565 = vmatpush.bf16.xpose.msra.mxu0 0
      %566 = vmatpush.bf16.xpose.msra.mxu0 0
      %567 = vmatpush.bf16.xpose.msra.mxu0 0
      %568 = vmatpush.bf16.xpose.msra.mxu0 0
      %569 = vmatpush.bf16.xpose.msra.mxu0 %v560
      %570 = vmatmul.bf16.gmra.mxu0 %v557
      %v571 = vpop.f32.mrf.mxu0
      %v572 = vadd.f32 0.0, %v571
      %v573 = vpop.f32.mrf.mxu0
      %574 = vdwg.mxu0
      %v575 = vsel %vm409, %v572, -inf
      %576 = vmax.xlane.f32.xlu0 %v575
      %v577 = vpop.xlane.xlu0 %576
      %v578 = vsub.f32 %v572, %v577
      %v579 = vmul.f32 %v578, 1.442695
      %v580 = vpow.pop %v579
      %v581 = vsel %vm409, %v580, 0.0
      %582 = vadd.xlane.f32.xlu0 %v581
      %v583 = vpop.xlane.xlu0 %582
      %v584 = vrcp.pop %v583
      %v585 = vmul.f32 %v580, %v584
      %v586 = vpack.c.bf16 %v585, %v585
      %v587 = vpack.c.bf16 %v551, %v551
      %v589 = vsel %vm409, %v586, 0
      %v592 = vsel %vm445, %v587, 0
      %594 = vmatpush.bf16.msra.mxu0 0
      %595 = vmatpush.bf16.msra.mxu0 0
      %596 = vmatpush.bf16.msra.mxu0 0
      %597 = vmatpush.bf16.msra.mxu0 0
      %598 = vmatpush.bf16.msra.mxu0 0
      %599 = vmatpush.bf16.msra.mxu0 0
      %600 = vmatpush.bf16.msra.mxu0 0
      %601 = vmatpush.bf16.msra.mxu0 %v592
      %602 = vmatmul.bf16.gmra.mxu0 %v589
      %v603 = vpop.f32.mrf.mxu0
      %v604 = vadd.f32 0.0, %v603
      %v605 = vpop.f32.mrf.mxu0
      %606 = vdwg.mxu0
      %v607 = vpack.c.bf16 %v604, %v604
      %s608 = scalar_lea.vmem %s6, 4
      %v609 = vld [vmem:[%s608] sm:$0xf]
      %v611 = vsel %vm409, %v607, 0
      %v614 = vsel %vm445, %v609, 0
      %616 = vmatpush.bf16.msra.mxu0 0
      %617 = vmatpush.bf16.msra.mxu0 0
      %618 = vmatpush.bf16.msra.mxu0 0
      %619 = vmatpush.bf16.msra.mxu0 0
      %620 = vmatpush.bf16.msra.mxu0 0
      %621 = vmatpush.bf16.msra.mxu0 0
      %622 = vmatpush.bf16.msra.mxu0 0
      %623 = vmatpush.bf16.msra.mxu0 %v614
      %624 = vmatmul.bf16.gmra.mxu0 %v611
      %v625 = vpop.f32.mrf.mxu0
      %v626 = vadd.f32 0.0, %v625
      %v627 = vpop.f32.mrf.mxu0
      %628 = vdwg.mxu0
      %v630 = vsel %vm409, %v462, 0
      %v633 = vsel %vm445, %v463, 0
      %635 = vmatpush.bf16.msra.mxu0 0
      %636 = vmatpush.bf16.msra.mxu0 0
      %637 = vmatpush.bf16.msra.mxu0 0
      %638 = vmatpush.bf16.msra.mxu0 0
      %639 = vmatpush.bf16.msra.mxu0 0
      %640 = vmatpush.bf16.msra.mxu0 0
      %641 = vmatpush.bf16.msra.mxu0 0
      %642 = vmatpush.bf16.msra.mxu0 %v633
      %643 = vmatmul.bf16.gmra.mxu0 %v630
      %v644 = vpop.f32.mrf.mxu0
      %v645 = vadd.f32 %v626, %v644
      %v646 = vpop.f32.mrf.mxu0
      %647 = vdwg.mxu0
      %s648 = scalar_lea.vmem %s3, 32
      %v649 = vld [vmem:[%s648] sm:$0xf]
      %v650 = vld [vmem:[%s648 + $0x4] sm:$0xf]
      %v651 = vld [vmem:[%s648 + $0x8] sm:$0xf]
      %v652 = vld [vmem:[%s648 + $0xc] sm:$0xf]
      %v657 = vunpack.c.l.b16 %v649
      %v658 = vunpack.c.l.b16 %v650
      %v659 = vunpack.c.l.b16 %v651
      %v660 = vunpack.c.l.b16 %v652
      %v661 = vpack.c.b16 %v658, %v657
      %v662 = vpack.c.b16 %v660, %v659
      %665 = vmatpush.bf16.msra.mxu0 0
      %666 = vmatpush.bf16.msra.mxu0 0
      %667 = vmatpush.bf16.msra.mxu0 0
      %668 = vmatpush.bf16.msra.mxu0 0
      %669 = vmatpush.bf16.msra.mxu0 0
      %670 = vmatpush.bf16.msra.mxu0 0
      %671 = vmatpush.bf16.msra.mxu0 %v662
      %672 = vmatpush.bf16.msra.mxu0 %v661
      %673 = vmatmul.bf16.gmra.mxu0 %v334
      %v674 = vpop.f32.mrf.mxu0
      %v675 = vadd.f32 0.0, %v674
      %v676 = vpop.f32.mrf.mxu0
      %677 = vdwg.mxu0
      %s678 = scalar_lea.vmem %s4, 32
      %v679 = vld [vmem:[%s678] sm:$0xf]
      %v680 = vld [vmem:[%s678 + $0x4] sm:$0xf]
      %v681 = vld [vmem:[%s678 + $0x8] sm:$0xf]
      %v682 = vld [vmem:[%s678 + $0xc] sm:$0xf]
      %v687 = vunpack.c.l.b16 %v679
      %v688 = vunpack.c.l.b16 %v680
      %v689 = vunpack.c.l.b16 %v681
      %v690 = vunpack.c.l.b16 %v682
      %v691 = vpack.c.b16 %v688, %v687
      %v692 = vpack.c.b16 %v690, %v689
      %695 = vmatpush.bf16.msra.mxu0 0
      %696 = vmatpush.bf16.msra.mxu0 0
      %697 = vmatpush.bf16.msra.mxu0 0
      %698 = vmatpush.bf16.msra.mxu0 0
      %699 = vmatpush.bf16.msra.mxu0 0
      %700 = vmatpush.bf16.msra.mxu0 0
      %701 = vmatpush.bf16.msra.mxu0 %v692
      %702 = vmatpush.bf16.msra.mxu0 %v691
      %703 = vmatmul.bf16.gmra.mxu0 %v334
      %v704 = vpop.f32.mrf.mxu0
      %v705 = vadd.f32 0.0, %v704
      %v706 = vpop.f32.mrf.mxu0
      %707 = vdwg.mxu0
      %s708 = scalar_lea.vmem %s5, 32
      %v709 = vld [vmem:[%s708] sm:$0xf]
      %v710 = vld [vmem:[%s708 + $0x4] sm:$0xf]
      %v711 = vld [vmem:[%s708 + $0x8] sm:$0xf]
      %v712 = vld [vmem:[%s708 + $0xc] sm:$0xf]
      %v717 = vunpack.c.l.b16 %v709
      %v718 = vunpack.c.l.b16 %v710
      %v719 = vunpack.c.l.b16 %v711
      %v720 = vunpack.c.l.b16 %v712
      %v721 = vpack.c.b16 %v718, %v717
      %v722 = vpack.c.b16 %v720, %v719
      %725 = vmatpush.bf16.msra.mxu0 0
      %726 = vmatpush.bf16.msra.mxu0 0
      %727 = vmatpush.bf16.msra.mxu0 0
      %728 = vmatpush.bf16.msra.mxu0 0
      %729 = vmatpush.bf16.msra.mxu0 0
      %730 = vmatpush.bf16.msra.mxu0 0
      %731 = vmatpush.bf16.msra.mxu0 %v722
      %732 = vmatpush.bf16.msra.mxu0 %v721
      %733 = vmatmul.bf16.gmra.mxu0 %v334
      %v734 = vpop.f32.mrf.mxu0
      %v735 = vadd.f32 0.0, %v734
      %v736 = vpop.f32.mrf.mxu0
      %737 = vdwg.mxu0
      %v738 = vpack.c.bf16 %v675, %v675
      %v739 = vpack.c.bf16 %v705, %v705
      %v741 = vsel %vm409, %v738, 0
      %v744 = vsel %vm409, %v739, 0
      %746 = vmatpush.bf16.xpose.msra.mxu0 0
      %747 = vmatpush.bf16.xpose.msra.mxu0 0
      %748 = vmatpush.bf16.xpose.msra.mxu0 0
      %749 = vmatpush.bf16.xpose.msra.mxu0 0
      %750 = vmatpush.bf16.xpose.msra.mxu0 0
      %751 = vmatpush.bf16.xpose.msra.mxu0 0
      %752 = vmatpush.bf16.xpose.msra.mxu0 0
      %753 = vmatpush.bf16.xpose.msra.mxu0 %v744
      %754 = vmatmul.bf16.gmra.mxu0 %v741
      %v755 = vpop.f32.mrf.mxu0
      %v756 = vadd.f32 0.0, %v755
      %v757 = vpop.f32.mrf.mxu0
      %758 = vdwg.mxu0
      %v759 = vsel %vm409, %v756, -inf
      %760 = vmax.xlane.f32.xlu0 %v759
      %v761 = vpop.xlane.xlu0 %760
      %v762 = vsub.f32 %v756, %v761
      %v763 = vmul.f32 %v762, 1.442695
      %v764 = vpow.pop %v763
      %v765 = vsel %vm409, %v764, 0.0
      %766 = vadd.xlane.f32.xlu0 %v765
      %v767 = vpop.xlane.xlu0 %766
      %v768 = vrcp.pop %v767
      %v769 = vmul.f32 %v764, %v768
      %v770 = vpack.c.bf16 %v769, %v769
      %v771 = vpack.c.bf16 %v735, %v735
      %v773 = vsel %vm409, %v770, 0
      %v776 = vsel %vm445, %v771, 0
      %778 = vmatpush.bf16.msra.mxu0 0
      %779 = vmatpush.bf16.msra.mxu0 0
      %780 = vmatpush.bf16.msra.mxu0 0
      %781 = vmatpush.bf16.msra.mxu0 0
      %782 = vmatpush.bf16.msra.mxu0 0
      %783 = vmatpush.bf16.msra.mxu0 0
      %784 = vmatpush.bf16.msra.mxu0 0
      %785 = vmatpush.bf16.msra.mxu0 %v776
      %786 = vmatmul.bf16.gmra.mxu0 %v773
      %v787 = vpop.f32.mrf.mxu0
      %v788 = vadd.f32 0.0, %v787
      %v789 = vpop.f32.mrf.mxu0
      %790 = vdwg.mxu0
      %v791 = vpack.c.bf16 %v788, %v788
      %s792 = scalar_lea.vmem %s6, 8
      %v793 = vld [vmem:[%s792] sm:$0xf]
      %v795 = vsel %vm409, %v791, 0
      %v798 = vsel %vm445, %v793, 0
      %800 = vmatpush.bf16.msra.mxu0 0
      %801 = vmatpush.bf16.msra.mxu0 0
      %802 = vmatpush.bf16.msra.mxu0 0
      %803 = vmatpush.bf16.msra.mxu0 0
      %804 = vmatpush.bf16.msra.mxu0 0
      %805 = vmatpush.bf16.msra.mxu0 0
      %806 = vmatpush.bf16.msra.mxu0 0
      %807 = vmatpush.bf16.msra.mxu0 %v798
      %808 = vmatmul.bf16.gmra.mxu0 %v795
      %v809 = vpop.f32.mrf.mxu0
      %v810 = vadd.f32 0.0, %v809
      %v811 = vpop.f32.mrf.mxu0
      %812 = vdwg.mxu0
      %v813 = vadd.f32 %v645, %v810
      %s814 = scalar_lea.vmem %s3, 48
      %v815 = vld [vmem:[%s814] sm:$0xf]
      %v816 = vld [vmem:[%s814 + $0x4] sm:$0xf]
      %v817 = vld [vmem:[%s814 + $0x8] sm:$0xf]
      %v818 = vld [vmem:[%s814 + $0xc] sm:$0xf]
      %v823 = vunpack.c.l.b16 %v815
      %v824 = vunpack.c.l.b16 %v816
      %v825 = vunpack.c.l.b16 %v817
      %v826 = vunpack.c.l.b16 %v818
      %v827 = vpack.c.b16 %v824, %v823
      %v828 = vpack.c.b16 %v826, %v825
      %831 = vmatpush.bf16.msra.mxu0 0
      %832 = vmatpush.bf16.msra.mxu0 0
      %833 = vmatpush.bf16.msra.mxu0 0
      %834 = vmatpush.bf16.msra.mxu0 0
      %835 = vmatpush.bf16.msra.mxu0 0
      %836 = vmatpush.bf16.msra.mxu0 0
      %837 = vmatpush.bf16.msra.mxu0 %v828
      %838 = vmatpush.bf16.msra.mxu0 %v827
      %839 = vmatmul.bf16.gmra.mxu0 %v334
      %v840 = vpop.f32.mrf.mxu0
      %v841 = vadd.f32 0.0, %v840
      %v842 = vpop.f32.mrf.mxu0
      %843 = vdwg.mxu0
      %s844 = scalar_lea.vmem %s4, 48
      %v845 = vld [vmem:[%s844] sm:$0xf]
      %v846 = vld [vmem:[%s844 + $0x4] sm:$0xf]
      %v847 = vld [vmem:[%s844 + $0x8] sm:$0xf]
      %v848 = vld [vmem:[%s844 + $0xc] sm:$0xf]
      %v853 = vunpack.c.l.b16 %v845
      %v854 = vunpack.c.l.b16 %v846
      %v855 = vunpack.c.l.b16 %v847
      %v856 = vunpack.c.l.b16 %v848
      %v857 = vpack.c.b16 %v854, %v853
      %v858 = vpack.c.b16 %v856, %v855
      %861 = vmatpush.bf16.msra.mxu0 0
      %862 = vmatpush.bf16.msra.mxu0 0
      %863 = vmatpush.bf16.msra.mxu0 0
      %864 = vmatpush.bf16.msra.mxu0 0
      %865 = vmatpush.bf16.msra.mxu0 0
      %866 = vmatpush.bf16.msra.mxu0 0
      %867 = vmatpush.bf16.msra.mxu0 %v858
      %868 = vmatpush.bf16.msra.mxu0 %v857
      %869 = vmatmul.bf16.gmra.mxu0 %v334
      %v870 = vpop.f32.mrf.mxu0
      %v871 = vadd.f32 0.0, %v870
      %v872 = vpop.f32.mrf.mxu0
      %873 = vdwg.mxu0
      %s874 = scalar_lea.vmem %s5, 48
      %v875 = vld [vmem:[%s874] sm:$0xf]
      %v876 = vld [vmem:[%s874 + $0x4] sm:$0xf]
      %v877 = vld [vmem:[%s874 + $0x8] sm:$0xf]
      %v878 = vld [vmem:[%s874 + $0xc] sm:$0xf]
      %v883 = vunpack.c.l.b16 %v875
      %v884 = vunpack.c.l.b16 %v876
      %v885 = vunpack.c.l.b16 %v877
      %v886 = vunpack.c.l.b16 %v878
      %v887 = vpack.c.b16 %v884, %v883
      %v888 = vpack.c.b16 %v886, %v885
      %891 = vmatpush.bf16.msra.mxu0 0
      %892 = vmatpush.bf16.msra.mxu0 0
      %893 = vmatpush.bf16.msra.mxu0 0
      %894 = vmatpush.bf16.msra.mxu0 0
      %895 = vmatpush.bf16.msra.mxu0 0
      %896 = vmatpush.bf16.msra.mxu0 0
      %897 = vmatpush.bf16.msra.mxu0 %v888
      %898 = vmatpush.bf16.msra.mxu0 %v887
      %899 = vmatmul.bf16.gmra.mxu0 %v334
      %v900 = vpop.f32.mrf.mxu0
      %v901 = vadd.f32 0.0, %v900
      %v902 = vpop.f32.mrf.mxu0
      %903 = vdwg.mxu0
      %v904 = vpack.c.bf16 %v841, %v841
      %v905 = vpack.c.bf16 %v871, %v871
      %v907 = vsel %vm409, %v904, 0
      %v910 = vsel %vm409, %v905, 0
      %912 = vmatpush.bf16.xpose.msra.mxu0 0
      %913 = vmatpush.bf16.xpose.msra.mxu0 0
      %914 = vmatpush.bf16.xpose.msra.mxu0 0
      %915 = vmatpush.bf16.xpose.msra.mxu0 0
      %916 = vmatpush.bf16.xpose.msra.mxu0 0
      %917 = vmatpush.bf16.xpose.msra.mxu0 0
      %918 = vmatpush.bf16.xpose.msra.mxu0 0
      %919 = vmatpush.bf16.xpose.msra.mxu0 %v910
      %920 = vmatmul.bf16.gmra.mxu0 %v907
      %v921 = vpop.f32.mrf.mxu0
      %v922 = vadd.f32 0.0, %v921
      %v923 = vpop.f32.mrf.mxu0
      %924 = vdwg.mxu0
      %v925 = vsel %vm409, %v922, -inf
      %926 = vmax.xlane.f32.xlu0 %v925
      %v927 = vpop.xlane.xlu0 %926
      %v928 = vsub.f32 %v922, %v927
      %v929 = vmul.f32 %v928, 1.442695
      %v930 = vpow.pop %v929
      %v931 = vsel %vm409, %v930, 0.0
      %932 = vadd.xlane.f32.xlu0 %v931
      %v933 = vpop.xlane.xlu0 %932
      %v934 = vrcp.pop %v933
      %v935 = vmul.f32 %v930, %v934
      %v936 = vpack.c.bf16 %v935, %v935
      %v937 = vpack.c.bf16 %v901, %v901
      %v939 = vsel %vm409, %v936, 0
      %v942 = vsel %vm445, %v937, 0
      %944 = vmatpush.bf16.msra.mxu0 0
      %945 = vmatpush.bf16.msra.mxu0 0
      %946 = vmatpush.bf16.msra.mxu0 0
      %947 = vmatpush.bf16.msra.mxu0 0
      %948 = vmatpush.bf16.msra.mxu0 0
      %949 = vmatpush.bf16.msra.mxu0 0
      %950 = vmatpush.bf16.msra.mxu0 0
      %951 = vmatpush.bf16.msra.mxu0 %v942
      %952 = vmatmul.bf16.gmra.mxu0 %v939
      %v953 = vpop.f32.mrf.mxu0
      %v954 = vadd.f32 0.0, %v953
      %v955 = vpop.f32.mrf.mxu0
      %956 = vdwg.mxu0
      %v957 = vpack.c.bf16 %v954, %v954
      %s958 = scalar_lea.vmem %s6, 12
      %v959 = vld [vmem:[%s958] sm:$0xf]
      %v961 = vsel %vm409, %v957, 0
      %v964 = vsel %vm445, %v959, 0
      %966 = vmatpush.bf16.msra.mxu0 0
      %967 = vmatpush.bf16.msra.mxu0 0
      %968 = vmatpush.bf16.msra.mxu0 0
      %969 = vmatpush.bf16.msra.mxu0 0
      %970 = vmatpush.bf16.msra.mxu0 0
      %971 = vmatpush.bf16.msra.mxu0 0
      %972 = vmatpush.bf16.msra.mxu0 0
      %973 = vmatpush.bf16.msra.mxu0 %v964
      %974 = vmatmul.bf16.gmra.mxu0 %v961
      %v975 = vpop.f32.mrf.mxu0
      %v976 = vadd.f32 0.0, %v975
      %v977 = vpop.f32.mrf.mxu0
      %978 = vdwg.mxu0
      %v979 = vadd.f32 %v813, %v976
      %v980 = vadd.f32 %v275, %v979
      %981 = vst.msk [vmem:[%s273] sm:$0xff] %vm278, %v980
      %p982 = scmp.lt.s32.totalorder %s18, 1
      %s983 = scalar_select %p982, %s18, 1
      %s984 = smul.addr %s983, 8
      %s985 = scalar_lea.vmem %s7, %s984
      // Predicated region
      $region49: #{transformer_forward.12} parent=47 // pred_check
        %p986 = pneg %p188
      $region50: #{transformer_forward.12} parent=47 // pred_check_branch
        %988 = sbr.rel (%p986) target = $region52
      $region51: #{transformer_forward.12} parent=47 // pred_region
        _
      $region52: #{transformer_forward.12} parent=47 // pred_fallthru
        _
    $region48: #{transformer_forward.12} parent=5 // pred_fallthru
      _
    %p989 = scmp.le.s32.totalorder 2, %s13
    // Predicated region
    $region53: #{transformer_forward.12} parent=5 // pred_check
      %p990 = pneg %p989
    $region54: #{transformer_forward.12} parent=5 // pred_check_branch
      %992 = sbr.rel (%p990) target = $region56
    $region55: #{transformer_forward.12} parent=5 // pred_region
      %s993 = ssub.s32 %s13, 2
      // Predicated region
      $region57: #{transformer_forward.12} parent=55 // pred_check
        %p994 = pneg %p194
      $region58: #{transformer_forward.12} parent=55 // pred_check_branch
        %996 = sbr.rel (%p994) target = $region60
      $region59: #{transformer_forward.12} parent=55 // pred_region
        %p997 = scmp.lt.s32.totalorder %s19, 1
        %s998 = scalar_select %p997, %s19, 1
        %s999 = smul.addr %s998, 8
        %s1000 = scalar_lea.vmem %s7, %s999
      $region60: #{transformer_forward.12} parent=55 // pred_fallthru
        _
    $region56: #{transformer_forward.12} parent=5 // pred_fallthru
      _
  $region6: #{transformer_forward.12} parent=0 // loop_footer
    %s17 = sadd.s32 1, %s13
  $region7: #{transformer_forward.12} parent=0 // loop_footer_branch
    %12 = sbr.rel target = $region3
  $region8: #{transformer_forward.12} parent=0 // loop_exit
    _

// kernel: transformer_forward.18
$region0: #{transformer_forward.18}
  #allocation0 [shape = 'u32[]', space=smem, size = 0x4, offset = 0x4, fixed_abs, tag = 'smem constant byte address 0x4 - core index']
  #allocation1 [shape = 'u32[72,128]{1,0:T(1,128)}', space=vmem, size = 0x9000, scoped, tag = 'internal scratch']
  %s0 = inlined_call_operand.vmem [shape: f32[2,8,32], index: 0, kind: input, shape index: {}]
  %s1 = inlined_call_operand.vmem [shape: f32[2,8,32], index: 1, kind: input, shape index: {}]
  %s2 = inlined_call_operand.vmem [shape: f32[1,32], index: 2, kind: input, shape index: {}]
  %s3 = inlined_call_operand.vmem [shape: f32[1,32], index: 3, kind: input, shape index: {}]
  %s4 = inlined_call_operand.vmem [shape: bf16[4,32,8], index: 4, kind: input, shape index: {}]
  %s5 = inlined_call_operand.vmem [shape: bf16[4,32,8], index: 5, kind: input, shape index: {}]
  %s6 = inlined_call_operand.vmem [shape: bf16[4,32,8], index: 6, kind: input, shape index: {}]
  %s7 = inlined_call_operand.vmem [shape: bf16[4,8,32], index: 7, kind: input, shape index: {}]
  %s8 = inlined_call_operand.vmem [shape: f32[2,8,32], index: 8, kind: output, shape index: {}]
  %s9 = sld [smem:[#allocation0]]
  $region65: #{transformer_forward.18} parent=0
    _
  %s11 = ssub.s32 1, %s9
  %s12 = scalar_select 0, %s11, %s9
  loop: start=0, step=1, limit=4
  $region2: #{transformer_forward.18} parent=0 // loop_pre_header
    _
  $region3: #{transformer_forward.18} parent=0 // loop_header
    %s14 = sphi 0, %s18
    %p15 = scmp.ge.s32.totalorder %s14, 4
    %s24 = sphi 0, %s26
    %s27 = sphi 0, %s24
    %s28 = sphi 0, %s27
    %s44 = sphi 0, %s28
    %s50 = sphi 0, %s52
    %s53 = sphi 0, %s50
    %s54 = sphi 0, %s53
    %s70 = sphi 0, %s54
    %s74 = sphi 0, %s74
    %s76 = sphi 0, %s74
    %s77 = sphi 0, %s76
    %s91 = sphi 0, %s77
    %s95 = sphi 0, %s95
    %s97 = sphi 0, %s95
    %s98 = sphi 0, %s97
    %s112 = sphi 0, %s98
    %s116 = sphi 0, %s116
    %s118 = sphi 0, %s116
    %s119 = sphi 0, %s118
    %s133 = sphi 0, %s119
    %s137 = sphi 0, %s137
    %s139 = sphi 0, %s137
    %s140 = sphi 0, %s139
    %s154 = sphi 0, %s140
    %s158 = sphi 0, %s158
    %s160 = sphi 0, %s158
    %s161 = sphi 0, %s160
    %s175 = sphi 0, %s161
    %s179 = sphi 0, %s179
    %s181 = sphi 0, %s179
    %s182 = sphi 0, %s181
    %s196 = sphi 0, %s182
    %s202 = sphi 0, %s204
    %s205 = sphi 0, %s202
    %s206 = sphi 0, %s205
    %s222 = sphi 0, %s206
  $region4: #{transformer_forward.18} parent=0 // loop_header_branch
    %17 = sbr.rel (%p15) target = $region8
  $region5: #{transformer_forward.18} parent=0 // loop_body
    %s19 = ssub.s32 %s14, 1
    %s20 = ssub.s32 %s14, 2
    %s21 = sadd.s32 %s14, 1
    %s22 = ssub.s32 %s14, %s21
    %p23 = scmp.eq.s32.totalorder %s22, 0
    %s25 = sadd.s32 %s24, 1
    %s26 = scalar_select %p23, %s24, %s25
    %p29 = pneg %p23
    %p30 = scmp.eq.s32.totalorder %s14, 1
    %p31 = por %p29, %p30
    %p32 = scmp.ne.s32.totalorder %s24, %s27
    %p33 = scmp.eq.s32.totalorder %s14, 0
    %p34 = por %p32, %p33
    %p35 = scmp.ne.s32.totalorder %s24, %s27
    %p36 = scmp.eq.s32.totalorder %s19, 1
    %p37 = por %p35, %p36
    %p38 = scmp.ne.s32.totalorder %s27, %s28
    %p39 = scmp.eq.s32.totalorder %s19, 0
    %p40 = por %p38, %p39
    %p41 = scmp.ne.s32.totalorder %s27, %s28
    %p42 = scmp.eq.s32.totalorder %s20, 1
    %p43 = por %p41, %p42
    %p45 = scmp.ne.s32.totalorder %s28, %s44
    %p46 = scmp.eq.s32.totalorder %s20, 0
    %p47 = por %p45, %p46
    %s48 = ssub.s32 %s14, %s21
    %p49 = scmp.eq.s32.totalorder %s48, 0
    %s51 = sadd.s32 %s50, 1
    %s52 = scalar_select %p49, %s50, %s51
    %p55 = pneg %p49
    %p56 = scmp.eq.s32.totalorder %s14, 1
    %p57 = por %p55, %p56
    %p58 = scmp.ne.s32.totalorder %s50, %s53
    %p59 = scmp.eq.s32.totalorder %s14, 0
    %p60 = por %p58, %p59
    %p61 = scmp.ne.s32.totalorder %s50, %s53
    %p62 = scmp.eq.s32.totalorder %s19, 1
    %p63 = por %p61, %p62
    %p64 = scmp.ne.s32.totalorder %s53, %s54
    %p65 = scmp.eq.s32.totalorder %s19, 0
    %p66 = por %p64, %p65
    %p67 = scmp.ne.s32.totalorder %s53, %s54
    %p68 = scmp.eq.s32.totalorder %s20, 1
    %p69 = por %p67, %p68
    %p71 = scmp.ne.s32.totalorder %s54, %s70
    %p72 = scmp.eq.s32.totalorder %s20, 0
    %p73 = por %p71, %p72
    %s75 = sadd.s32 %s74, 1
    %p78 = scmp.eq.s32.totalorder %s14, 1
    %p79 = scmp.ne.s32.totalorder %s74, %s76
    %p80 = scmp.eq.s32.totalorder %s14, 0
    %p81 = por %p79, %p80
    %p82 = scmp.ne.s32.totalorder %s74, %s76
    %p83 = scmp.eq.s32.totalorder %s19, 1
    %p84 = por %p82, %p83
    %p85 = scmp.ne.s32.totalorder %s76, %s77
    %p86 = scmp.eq.s32.totalorder %s19, 0
    %p87 = por %p85, %p86
    %p88 = scmp.ne.s32.totalorder %s76, %s77
    %p89 = scmp.eq.s32.totalorder %s20, 1
    %p90 = por %p88, %p89
    %p92 = scmp.ne.s32.totalorder %s77, %s91
    %p93 = scmp.eq.s32.totalorder %s20, 0
    %p94 = por %p92, %p93
    %s96 = sadd.s32 %s95, 1
    %p99 = scmp.eq.s32.totalorder %s14, 1
    %p100 = scmp.ne.s32.totalorder %s95, %s97
    %p101 = scmp.eq.s32.totalorder %s14, 0
    %p102 = por %p100, %p101
    %p103 = scmp.ne.s32.totalorder %s95, %s97
    %p104 = scmp.eq.s32.totalorder %s19, 1
    %p105 = por %p103, %p104
    %p106 = scmp.ne.s32.totalorder %s97, %s98
    %p107 = scmp.eq.s32.totalorder %s19, 0
    %p108 = por %p106, %p107
    %p109 = scmp.ne.s32.totalorder %s97, %s98
    %p110 = scmp.eq.s32.totalorder %s20, 1
    %p111 = por %p109, %p110
    %p113 = scmp.ne.s32.totalorder %s98, %s112
    %p114 = scmp.eq.s32.totalorder %s20, 0
    %p115 = por %p113, %p114
    %s117 = sadd.s32 %s116, 1
    %p120 = scmp.eq.s32.totalorder %s14, 1
    %p121 = scmp.ne.s32.totalorder %s116, %s118
    %p122 = scmp.eq.s32.totalorder %s14, 0
    %p123 = por %p121, %p122
    %p124 = scmp.ne.s32.totalorder %s116, %s118
    %p125 = scmp.eq.s32.totalorder %s19, 1
    %p126 = por %p124, %p125
    %p127 = scmp.ne.s32.totalorder %s118, %s119
    %p128 = scmp.eq.s32.totalorder %s19, 0
    %p129 = por %p127, %p128
    %p130 = scmp.ne.s32.totalorder %s118, %s119
    %p131 = scmp.eq.s32.totalorder %s20, 1
    %p132 = por %p130, %p131
    %p134 = scmp.ne.s32.totalorder %s119, %s133
    %p135 = scmp.eq.s32.totalorder %s20, 0
    %p136 = por %p134, %p135
    %s138 = sadd.s32 %s137, 1
    %p141 = scmp.eq.s32.totalorder %s14, 1
    %p142 = scmp.ne.s32.totalorder %s137, %s139
    %p143 = scmp.eq.s32.totalorder %s14, 0
    %p144 = por %p142, %p143
    %p145 = scmp.ne.s32.totalorder %s137, %s139
    %p146 = scmp.eq.s32.totalorder %s19, 1
    %p147 = por %p145, %p146
    %p148 = scmp.ne.s32.totalorder %s139, %s140
    %p149 = scmp.eq.s32.totalorder %s19, 0
    %p150 = por %p148, %p149
    %p151 = scmp.ne.s32.totalorder %s139, %s140
    %p152 = scmp.eq.s32.totalorder %s20, 1
    %p153 = por %p151, %p152
    %p155 = scmp.ne.s32.totalorder %s140, %s154
    %p156 = scmp.eq.s32.totalorder %s20, 0
    %p157 = por %p155, %p156
    %s159 = sadd.s32 %s158, 1
    %p162 = scmp.eq.s32.totalorder %s14, 1
    %p163 = scmp.ne.s32.totalorder %s158, %s160
    %p164 = scmp.eq.s32.totalorder %s14, 0
    %p165 = por %p163, %p164
    %p166 = scmp.ne.s32.totalorder %s158, %s160
    %p167 = scmp.eq.s32.totalorder %s19, 1
    %p168 = por %p166, %p167
    %p169 = scmp.ne.s32.totalorder %s160, %s161
    %p170 = scmp.eq.s32.totalorder %s19, 0
    %p171 = por %p169, %p170
    %p172 = scmp.ne.s32.totalorder %s160, %s161
    %p173 = scmp.eq.s32.totalorder %s20, 1
    %p174 = por %p172, %p173
    %p176 = scmp.ne.s32.totalorder %s161, %s175
    %p177 = scmp.eq.s32.totalorder %s20, 0
    %p178 = por %p176, %p177
    %s180 = sadd.s32 %s179, 1
    %p183 = scmp.eq.s32.totalorder %s14, 1
    %p184 = scmp.ne.s32.totalorder %s179, %s181
    %p185 = scmp.eq.s32.totalorder %s14, 0
    %p186 = por %p184, %p185
    %p187 = scmp.ne.s32.totalorder %s179, %s181
    %p188 = scmp.eq.s32.totalorder %s19, 1
    %p189 = por %p187, %p188
    %p190 = scmp.ne.s32.totalorder %s181, %s182
    %p191 = scmp.eq.s32.totalorder %s19, 0
    %p192 = por %p190, %p191
    %p193 = scmp.ne.s32.totalorder %s181, %s182
    %p194 = scmp.eq.s32.totalorder %s20, 1
    %p195 = por %p193, %p194
    %p197 = scmp.ne.s32.totalorder %s182, %s196
    %p198 = scmp.eq.s32.totalorder %s20, 0
    %p199 = por %p197, %p198
    %s200 = ssub.s32 %s14, %s21
    %p201 = scmp.eq.s32.totalorder %s200, 0
    %s203 = sadd.s32 %s202, 1
    %s204 = scalar_select %p201, %s202, %s203
    %p207 = pneg %p201
    %p208 = scmp.eq.s32.totalorder %s14, 1
    %p209 = por %p207, %p208
    %p210 = scmp.ne.s32.totalorder %s202, %s205
    %p211 = scmp.eq.s32.totalorder %s14, 0
    %p212 = por %p210, %p211
    %p213 = scmp.ne.s32.totalorder %s202, %s205
    %p214 = scmp.eq.s32.totalorder %s19, 1
    %p215 = por %p213, %p214
    %p216 = scmp.ne.s32.totalorder %s205, %s206
    %p217 = scmp.eq.s32.totalorder %s19, 0
    %p218 = por %p216, %p217
    %p219 = scmp.ne.s32.totalorder %s205, %s206
    %p220 = scmp.eq.s32.totalorder %s20, 1
    %p221 = por %p219, %p220
    %p223 = scmp.ne.s32.totalorder %s206, %s222
    %p224 = scmp.eq.s32.totalorder %s20, 0
    %p225 = por %p223, %p224
    %p226 = scmp.le.s32.totalorder 1, %s14
    %p227 = scmp.lt.s32.totalorder %s14, 3
    %p228 = pnand %p226, %p227
    %p229 = pneg %p228
    // Predicated region
    $region9: #{transformer_forward.18} parent=5 // pred_check
      _
    $region10: #{transformer_forward.18} parent=5 // pred_check_branch
      %231 = sbr.rel (%p228) target = $region12
    $region11: #{transformer_forward.18} parent=5 // pred_region
      %s232 = ssub.s32 %s14, 1
      // Predicated region
      $region13: #{transformer_forward.18} parent=11 // pred_check
        %p233 = pneg %p87
      $region14: #{transformer_forward.18} parent=11 // pred_check_branch
        %235 = sbr.rel (%p233) target = $region16
      $region15: #{transformer_forward.18} parent=11 // pred_region
        _
      $region16: #{transformer_forward.18} parent=11 // pred_fallthru
        _
      // Predicated region
      $region17: #{transformer_forward.18} parent=11 // pred_check
        %p236 = pneg %p108
      $region18: #{transformer_forward.18} parent=11 // pred_check_branch
        %238 = sbr.rel (%p236) target = $region20
      $region19: #{transformer_forward.18} parent=11 // pred_region
        _
      $region20: #{transformer_forward.18} parent=11 // pred_fallthru
        _
      // Predicated region
      $region21: #{transformer_forward.18} parent=11 // pred_check
        %p239 = pneg %p129
      $region22: #{transformer_forward.18} parent=11 // pred_check_branch
        %241 = sbr.rel (%p239) target = $region24
      $region23: #{transformer_forward.18} parent=11 // pred_region
        _
      $region24: #{transformer_forward.18} parent=11 // pred_fallthru
        _
      // Predicated region
      $region25: #{transformer_forward.18} parent=11 // pred_check
        %p242 = pneg %p150
      $region26: #{transformer_forward.18} parent=11 // pred_check_branch
        %244 = sbr.rel (%p242) target = $region28
      $region27: #{transformer_forward.18} parent=11 // pred_region
        _
      $region28: #{transformer_forward.18} parent=11 // pred_fallthru
        _
      // Predicated region
      $region29: #{transformer_forward.18} parent=11 // pred_check
        %p245 = pneg %p171
      $region30: #{transformer_forward.18} parent=11 // pred_check_branch
        %247 = sbr.rel (%p245) target = $region32
      $region31: #{transformer_forward.18} parent=11 // pred_region
        _
      $region32: #{transformer_forward.18} parent=11 // pred_fallthru
        _
      // Predicated region
      $region33: #{transformer_forward.18} parent=11 // pred_check
        %p248 = pneg %p192
      $region34: #{transformer_forward.18} parent=11 // pred_check_branch
        %250 = sbr.rel (%p248) target = $region36
      $region35: #{transformer_forward.18} parent=11 // pred_region
        _
      $region36: #{transformer_forward.18} parent=11 // pred_fallthru
        _
    $region12: #{transformer_forward.18} parent=5 // pred_fallthru
      _
    %p251 = scmp.lt.s32.totalorder %s14, 2
    // Predicated region
    $region37: #{transformer_forward.18} parent=5 // pred_check
      %p252 = pneg %p251
    $region38: #{transformer_forward.18} parent=5 // pred_check_branch
      %254 = sbr.rel (%p252) target = $region40
    $region39: #{transformer_forward.18} parent=5 // pred_region
      // Predicated region
      $region41: #{transformer_forward.18} parent=39 // pred_check
        %p255 = pneg %p34
      $region42: #{transformer_forward.18} parent=39 // pred_check_branch
        %257 = sbr.rel (%p255) target = $region44
      $region43: #{transformer_forward.18} parent=39 // pred_region
        %p258 = scmp.lt.s32.totalorder %s14, 1
        %s259 = scalar_select %p258, %s14, 1
        %s260 = smul.addr %s259, 8
        %s261 = scalar_lea.vmem %s0, %s260
      $region44: #{transformer_forward.18} parent=39 // pred_fallthru
        _
      // Predicated region
      $region45: #{transformer_forward.18} parent=39 // pred_check
        %p262 = pneg %p60
      $region46: #{transformer_forward.18} parent=39 // pred_check_branch
        %264 = sbr.rel (%p262) target = $region48
      $region47: #{transformer_forward.18} parent=39 // pred_region
        %p265 = scmp.lt.s32.totalorder %s14, 1
        %s266 = scalar_select %p265, %s14, 1
        %s267 = smul.addr %s266, 8
        %s268 = scalar_lea.vmem %s1, %s267
      $region48: #{transformer_forward.18} parent=39 // pred_fallthru
        _
    $region40: #{transformer_forward.18} parent=5 // pred_fallthru
      _
    %p269 = scmp.le.s32.totalorder 1, %s14
    %p270 = scmp.lt.s32.totalorder %s14, 3
    %p271 = pnand %p269, %p270
    %p272 = pneg %p271
    // Predicated region
    $region49: #{transformer_forward.18} parent=5 // pred_check
      _
    $region50: #{transformer_forward.18} parent=5 // pred_check_branch
      %274 = sbr.rel (%p271) target = $region52
    $region51: #{transformer_forward.18} parent=5 // pred_region
      %s275 = ssub.s32 %s14, 1
      %p276 = scmp.lt.s32.totalorder %s19, 1
      %s277 = scalar_select %p276, %s19, 1
      %s278 = smul.addr %s277, 8
      %s279 = scalar_lea.vmem %s0, %s278
      %p280 = pneg %p40
      %p281 = pneg %p37
      %p282 = scmp.lt.s32.totalorder %s19, 1
      %s283 = scalar_select %p282, %s19, 1
      %s284 = smul.addr %s283, 8
      %s285 = scalar_lea.vmem %s1, %s284
      %p286 = pneg %p66
      %p287 = pneg %p63
      %p288 = pneg %p87
      %p289 = pneg %p84
      %p290 = pneg %p108
      %p291 = pneg %p105
      %p292 = pneg %p129
      %p293 = pneg %p126
      %p294 = pneg %p150
      %p295 = pneg %p147
      %p296 = pneg %p171
      %p297 = pneg %p168
      %p298 = pneg %p192
      %p299 = pneg %p189
      %p300 = pneg %p218
      %p301 = pneg %p215
      %p302 = scmp.lt.s32.totalorder %s19, 1
      %s303 = scalar_select %p302, %s19, 1
      %s304 = smul.addr %s303, 8
      %s305 = scalar_lea.vmem %s8, %s304
      %p306 = scmp.lt.s32.totalorder %s19, 1
      %s307 = scalar_select %p306, %s19, 1
      %s308 = smul.addr %s307, 8
      %s309 = scalar_lea.vmem %s0, %s308
      %p310 = scmp.lt.s32.totalorder %s19, 1
      %s311 = scalar_select %p310, %s19, 1
      %s312 = smul.addr %s311, 8
      %s313 = scalar_lea.vmem %s1, %s312
      %p314 = scmp.lt.s32.totalorder %s19, 1
      %s315 = scalar_select %p314, %s19, 1
      %s316 = smul.addr %s315, 8
      %s317 = scalar_lea.vmem %s8, %s316
      %v319 = vld [vmem:[%s309] sm:$0xff]
      %v320 = vld [vmem:[%s2] sm:$0x1]
      %v321 = vld [vmem:[%s3] sm:$0x1]
      %vm322 = vcmask 261120
      %v323 = vsel %vm322, %v319, 0.0
      %324 = vadd.xlane.f32.xlu0 %v323
      %v325 = vpop.xlane.xlu0 %324
      %v326 = vrcp.pop 32.0
      %v327 = vmul.f32 32.0, %v326
      %v328 = vsub.f32 1.0, %v327
      %v329 = vmul.f32 %v326, %v328
      %v330 = vadd.f32 %v326, %v329
      %vm331 = vweird.f32 %v326
      %v332 = vsel %vm331, %v326, %v330
      %v333 = vmul.f32 %v325, %v332
      %v334 = vsub.f32 %v319, %v333
      %v335 = vmul.f32 %v334, %v334
      %v336 = vsel %vm322, %v335, 0.0
      %337 = vadd.xlane.f32.xlu0 %v336
      %v338 = vpop.xlane.xlu0 %337
      %v339 = vmul.f32 %v338, %v332
      %v340 = vadd.f32 %v339, 1e-05
      %v341 = vrsqrt.pop %v340
      %v342 = vmul.f32 %v341, %v340
      %v343 = vmul.f32 %v342, %v341
      %v344 = vmul.f32 0.5, %v343
      %v345 = vsub.f32 1.5, %v344
      %v346 = vmul.f32 %v341, %v345
      %vm347 = vweird.f32 %v340
      %vm348 = vweird.f32 %v341
      %vm349 = vmor %vm347, %vm348
      %v350 = vsel %vm349, %v341, %v346
      %v351 = vmul.f32 %v334, %v350
      %v353 = vperm.slane %v320, 0
      %v355 = vmul.f32 %v351, %v353
      %v357 = vperm.slane %v321, 0
      %v359 = vadd.f32 %v355, %v357
      %v360 = vld [vmem:[%s313] sm:$0xff]
      %v361 = vpack.c.bf16 %v359, %v359
      %v362 = vpack.c.bf16 %v360, %v360
      %v363 = vld [vmem:[%s4] sm:$0xf]
      %v364 = vld [vmem:[%s4 + $0x4] sm:$0xf]
      %v365 = vld [vmem:[%s4 + $0x8] sm:$0xf]
      %v366 = vld [vmem:[%s4 + $0xc] sm:$0xf]
      %v371 = vunpack.c.l.b16 %v363
      %v372 = vunpack.c.l.b16 %v364
      %v373 = vunpack.c.l.b16 %v365
      %v374 = vunpack.c.l.b16 %v366
      %v375 = vpack.c.b16 %v372, %v371
      %v376 = vpack.c.b16 %v374, %v373
      %v380 = vsel %vm322, %v361, 0
      %382 = vmatpush.bf16.msra.mxu0 0
      %383 = vmatpush.bf16.msra.mxu0 0
      %384 = vmatpush.bf16.msra.mxu0 0
      %385 = vmatpush.bf16.msra.mxu0 0
      %386 = vmatpush.bf16.msra.mxu0 0
      %387 = vmatpush.bf16.msra.mxu0 0
      %388 = vmatpush.bf16.msra.mxu0 %v376
      %389 = vmatpush.bf16.msra.mxu0 %v375
      %390 = vmatmul.bf16.gmra.mxu0 %v380
      %v391 = vpop.f32.mrf.mxu0
      %v392 = vadd.f32 0.0, %v391
      %v393 = vpop.f32.mrf.mxu0
      %394 = vdwg.mxu0
      %v395 = vld [vmem:[%s5] sm:$0xf]
      %v396 = vld [vmem:[%s5 + $0x4] sm:$0xf]
      %v397 = vld [vmem:[%s5 + $0x8] sm:$0xf]
      %v398 = vld [vmem:[%s5 + $0xc] sm:$0xf]
      %v403 = vunpack.c.l.b16 %v395
      %v404 = vunpack.c.l.b16 %v396
      %v405 = vunpack.c.l.b16 %v397
      %v406 = vunpack.c.l.b16 %v398
      %v407 = vpack.c.b16 %v404, %v403
      %v408 = vpack.c.b16 %v406, %v405
      %v412 = vsel %vm322, %v362, 0
      %414 = vmatpush.bf16.msra.mxu0 0
      %415 = vmatpush.bf16.msra.mxu0 0
      %416 = vmatpush.bf16.msra.mxu0 0
      %417 = vmatpush.bf16.msra.mxu0 0
      %418 = vmatpush.bf16.msra.mxu0 0
      %419 = vmatpush.bf16.msra.mxu0 0
      %420 = vmatpush.bf16.msra.mxu0 %v408
      %421 = vmatpush.bf16.msra.mxu0 %v407
      %422 = vmatmul.bf16.gmra.mxu0 %v412
      %v423 = vpop.f32.mrf.mxu0
      %v424 = vadd.f32 0.0, %v423
      %v425 = vpop.f32.mrf.mxu0
      %426 = vdwg.mxu0
      %v427 = vld [vmem:[%s6] sm:$0xf]
      %v428 = vld [vmem:[%s6 + $0x4] sm:$0xf]
      %v429 = vld [vmem:[%s6 + $0x8] sm:$0xf]
      %v430 = vld [vmem:[%s6 + $0xc] sm:$0xf]
      %v435 = vunpack.c.l.b16 %v427
      %v436 = vunpack.c.l.b16 %v428
      %v437 = vunpack.c.l.b16 %v429
      %v438 = vunpack.c.l.b16 %v430
      %v439 = vpack.c.b16 %v436, %v435
      %v440 = vpack.c.b16 %v438, %v437
      %443 = vmatpush.bf16.msra.mxu0 0
      %444 = vmatpush.bf16.msra.mxu0 0
      %445 = vmatpush.bf16.msra.mxu0 0
      %446 = vmatpush.bf16.msra.mxu0 0
      %447 = vmatpush.bf16.msra.mxu0 0
      %448 = vmatpush.bf16.msra.mxu0 0
      %449 = vmatpush.bf16.msra.mxu0 %v440
      %450 = vmatpush.bf16.msra.mxu0 %v439
      %451 = vmatmul.bf16.gmra.mxu0 %v412
      %v452 = vpop.f32.mrf.mxu0
      %v453 = vadd.f32 0.0, %v452
      %v454 = vpop.f32.mrf.mxu0
      %455 = vdwg.mxu0
      %v456 = vpack.c.bf16 %v392, %v392
      %v457 = vpack.c.bf16 %v424, %v424
      %vm458 = vcmask 64512
      %v460 = vsel %vm458, %v456, 0
      %v463 = vsel %vm458, %v457, 0
      %465 = vmatpush.bf16.xpose.msra.mxu0 0
      %466 = vmatpush.bf16.xpose.msra.mxu0 0
      %467 = vmatpush.bf16.xpose.msra.mxu0 0
      %468 = vmatpush.bf16.xpose.msra.mxu0 0
      %469 = vmatpush.bf16.xpose.msra.mxu0 0
      %470 = vmatpush.bf16.xpose.msra.mxu0 0
      %471 = vmatpush.bf16.xpose.msra.mxu0 0
      %472 = vmatpush.bf16.xpose.msra.mxu0 %v463
      %473 = vmatmul.bf16.gmra.mxu0 %v460
      %v474 = vpop.f32.mrf.mxu0
      %v475 = vadd.f32 0.0, %v474
      %v476 = vpop.f32.mrf.mxu0
      %477 = vdwg.mxu0
      %v478 = vsel %vm458, %v475, -inf
      %479 = vmax.xlane.f32.xlu0 %v478
      %v480 = vpop.xlane.xlu0 %479
      %v481 = vsub.f32 %v475, %v480
      %v482 = vmul.f32 %v481, 1.442695
      %v483 = vpow.pop %v482
      %v484 = vsel %vm458, %v483, 0.0
      %485 = vadd.xlane.f32.xlu0 %v484
      %v486 = vpop.xlane.xlu0 %485
      %v487 = vrcp.pop %v486
      %v488 = vmul.f32 %v483, %v487
      %v489 = vpack.c.bf16 %v488, %v488
      %v490 = vpack.c.bf16 %v453, %v453
      %v492 = vsel %vm458, %v489, 0
      %vm494 = vcmask 1043456
      %v496 = vsel %vm494, %v490, 0
      %498 = vmatpush.bf16.msra.mxu0 0
      %499 = vmatpush.bf16.msra.mxu0 0
      %500 = vmatpush.bf16.msra.mxu0 0
      %501 = vmatpush.bf16.msra.mxu0 0
      %502 = vmatpush.bf16.msra.mxu0 0
      %503 = vmatpush.bf16.msra.mxu0 0
      %504 = vmatpush.bf16.msra.mxu0 0
      %505 = vmatpush.bf16.msra.mxu0 %v496
      %506 = vmatmul.bf16.gmra.mxu0 %v492
      %v507 = vpop.f32.mrf.mxu0
      %v508 = vadd.f32 0.0, %v507
      %v509 = vpop.f32.mrf.mxu0
      %510 = vdwg.mxu0
      %v511 = vpack.c.bf16 %v508, %v508
      %v512 = vld [vmem:[%s7] sm:$0xf]
      %s513 = scalar_lea.vmem %s4, 16
      %v514 = vld [vmem:[%s513] sm:$0xf]
      %v515 = vld [vmem:[%s513 + $0x4] sm:$0xf]
      %v516 = vld [vmem:[%s513 + $0x8] sm:$0xf]
      %v517 = vld [vmem:[%s513 + $0xc] sm:$0xf]
      %v522 = vunpack.c.l.b16 %v514
      %v523 = vunpack.c.l.b16 %v515
      %v524 = vunpack.c.l.b16 %v516
      %v525 = vunpack.c.l.b16 %v517
      %v526 = vpack.c.b16 %v523, %v522
      %v527 = vpack.c.b16 %v525, %v524
      %530 = vmatpush.bf16.msra.mxu0 0
      %531 = vmatpush.bf16.msra.mxu0 0
      %532 = vmatpush.bf16.msra.mxu0 0
      %533 = vmatpush.bf16.msra.mxu0 0
      %534 = vmatpush.bf16.msra.mxu0 0
      %535 = vmatpush.bf16.msra.mxu0 0
      %536 = vmatpush.bf16.msra.mxu0 %v527
      %537 = vmatpush.bf16.msra.mxu0 %v526
      %538 = vmatmul.bf16.gmra.mxu0 %v380
      %v539 = vpop.f32.mrf.mxu0
      %v540 = vadd.f32 0.0, %v539
      %v541 = vpop.f32.mrf.mxu0
      %542 = vdwg.mxu0
      %s543 = scalar_lea.vmem %s5, 16
      %v544 = vld [vmem:[%s543] sm:$0xf]
      %v545 = vld [vmem:[%s543 + $0x4] sm:$0xf]
      %v546 = vld [vmem:[%s543 + $0x8] sm:$0xf]
      %v547 = vld [vmem:[%s543 + $0xc] sm:$0xf]
      %v552 = vunpack.c.l.b16 %v544
      %v553 = vunpack.c.l.b16 %v545
      %v554 = vunpack.c.l.b16 %v546
      %v555 = vunpack.c.l.b16 %v547
      %v556 = vpack.c.b16 %v553, %v552
      %v557 = vpack.c.b16 %v555, %v554
      %560 = vmatpush.bf16.msra.mxu0 0
      %561 = vmatpush.bf16.msra.mxu0 0
      %562 = vmatpush.bf16.msra.mxu0 0
      %563 = vmatpush.bf16.msra.mxu0 0
      %564 = vmatpush.bf16.msra.mxu0 0
      %565 = vmatpush.bf16.msra.mxu0 0
      %566 = vmatpush.bf16.msra.mxu0 %v557
      %567 = vmatpush.bf16.msra.mxu0 %v556
      %568 = vmatmul.bf16.gmra.mxu0 %v412
      %v569 = vpop.f32.mrf.mxu0
      %v570 = vadd.f32 0.0, %v569
      %v571 = vpop.f32.mrf.mxu0
      %572 = vdwg.mxu0
      %s573 = scalar_lea.vmem %s6, 16
      %v574 = vld [vmem:[%s573] sm:$0xf]
      %v575 = vld [vmem:[%s573 + $0x4] sm:$0xf]
      %v576 = vld [vmem:[%s573 + $0x8] sm:$0xf]
      %v577 = vld [vmem:[%s573 + $0xc] sm:$0xf]
      %v582 = vunpack.c.l.b16 %v574
      %v583 = vunpack.c.l.b16 %v575
      %v584 = vunpack.c.l.b16 %v576
      %v585 = vunpack.c.l.b16 %v577
      %v586 = vpack.c.b16 %v583, %v582
      %v587 = vpack.c.b16 %v585, %v584
      %590 = vmatpush.bf16.msra.mxu0 0
      %591 = vmatpush.bf16.msra.mxu0 0
      %592 = vmatpush.bf16.msra.mxu0 0
      %593 = vmatpush.bf16.msra.mxu0 0
      %594 = vmatpush.bf16.msra.mxu0 0
      %595 = vmatpush.bf16.msra.mxu0 0
      %596 = vmatpush.bf16.msra.mxu0 %v587
      %597 = vmatpush.bf16.msra.mxu0 %v586
      %598 = vmatmul.bf16.gmra.mxu0 %v412
      %v599 = vpop.f32.mrf.mxu0
      %v600 = vadd.f32 0.0, %v599
      %v601 = vpop.f32.mrf.mxu0
      %602 = vdwg.mxu0
      %v603 = vpack.c.bf16 %v540, %v540
      %v604 = vpack.c.bf16 %v570, %v570
      %v606 = vsel %vm458, %v603, 0
      %v609 = vsel %vm458, %v604, 0
      %611 = vmatpush.bf16.xpose.msra.mxu0 0
      %612 = vmatpush.bf16.xpose.msra.mxu0 0
      %613 = vmatpush.bf16.xpose.msra.mxu0 0
      %614 = vmatpush.bf16.xpose.msra.mxu0 0
      %615 = vmatpush.bf16.xpose.msra.mxu0 0
      %616 = vmatpush.bf16.xpose.msra.mxu0 0
      %617 = vmatpush.bf16.xpose.msra.mxu0 0
      %618 = vmatpush.bf16.xpose.msra.mxu0 %v609
      %619 = vmatmul.bf16.gmra.mxu0 %v606
      %v620 = vpop.f32.mrf.mxu0
      %v621 = vadd.f32 0.0, %v620
      %v622 = vpop.f32.mrf.mxu0
      %623 = vdwg.mxu0
      %v624 = vsel %vm458, %v621, -inf
      %625 = vmax.xlane.f32.xlu0 %v624
      %v626 = vpop.xlane.xlu0 %625
      %v627 = vsub.f32 %v621, %v626
      %v628 = vmul.f32 %v627, 1.442695
      %v629 = vpow.pop %v628
      %v630 = vsel %vm458, %v629, 0.0
      %631 = vadd.xlane.f32.xlu0 %v630
      %v632 = vpop.xlane.xlu0 %631
      %v633 = vrcp.pop %v632
      %v634 = vmul.f32 %v629, %v633
      %v635 = vpack.c.bf16 %v634, %v634
      %v636 = vpack.c.bf16 %v600, %v600
      %v638 = vsel %vm458, %v635, 0
      %v641 = vsel %vm494, %v636, 0
      %643 = vmatpush.bf16.msra.mxu0 0
      %644 = vmatpush.bf16.msra.mxu0 0
      %645 = vmatpush.bf16.msra.mxu0 0
      %646 = vmatpush.bf16.msra.mxu0 0
      %647 = vmatpush.bf16.msra.mxu0 0
      %648 = vmatpush.bf16.msra.mxu0 0
      %649 = vmatpush.bf16.msra.mxu0 0
      %650 = vmatpush.bf16.msra.mxu0 %v641
      %651 = vmatmul.bf16.gmra.mxu0 %v638
      %v652 = vpop.f32.mrf.mxu0
      %v653 = vadd.f32 0.0, %v652
      %v654 = vpop.f32.mrf.mxu0
      %655 = vdwg.mxu0
      %v656 = vpack.c.bf16 %v653, %v653
      %s657 = scalar_lea.vmem %s7, 4
      %v658 = vld [vmem:[%s657] sm:$0xf]
      %v660 = vsel %vm458, %v656, 0
      %v663 = vsel %vm494, %v658, 0
      %665 = vmatpush.bf16.msra.mxu0 0
      %666 = vmatpush.bf16.msra.mxu0 0
      %667 = vmatpush.bf16.msra.mxu0 0
      %668 = vmatpush.bf16.msra.mxu0 0
      %669 = vmatpush.bf16.msra.mxu0 0
      %670 = vmatpush.bf16.msra.mxu0 0
      %671 = vmatpush.bf16.msra.mxu0 0
      %672 = vmatpush.bf16.msra.mxu0 %v663
      %673 = vmatmul.bf16.gmra.mxu0 %v660
      %v674 = vpop.f32.mrf.mxu0
      %v675 = vadd.f32 0.0, %v674
      %v676 = vpop.f32.mrf.mxu0
      %677 = vdwg.mxu0
      %v679 = vsel %vm458, %v511, 0
      %v682 = vsel %vm494, %v512, 0
      %684 = vmatpush.bf16.msra.mxu0 0
      %685 = vmatpush.bf16.msra.mxu0 0
      %686 = vmatpush.bf16.msra.mxu0 0
      %687 = vmatpush.bf16.msra.mxu0 0
      %688 = vmatpush.bf16.msra.mxu0 0
      %689 = vmatpush.bf16.msra.mxu0 0
      %690 = vmatpush.bf16.msra.mxu0 0
      %691 = vmatpush.bf16.msra.mxu0 %v682
      %692 = vmatmul.bf16.gmra.mxu0 %v679
      %v693 = vpop.f32.mrf.mxu0
      %v694 = vadd.f32 %v675, %v693
      %v695 = vpop.f32.mrf.mxu0
      %696 = vdwg.mxu0
      %s697 = scalar_lea.vmem %s4, 32
      %v698 = vld [vmem:[%s697] sm:$0xf]
      %v699 = vld [vmem:[%s697 + $0x4] sm:$0xf]
      %v700 = vld [vmem:[%s697 + $0x8] sm:$0xf]
      %v701 = vld [vmem:[%s697 + $0xc] sm:$0xf]
      %v706 = vunpack.c.l.b16 %v698
      %v707 = vunpack.c.l.b16 %v699
      %v708 = vunpack.c.l.b16 %v700
      %v709 = vunpack.c.l.b16 %v701
      %v710 = vpack.c.b16 %v707, %v706
      %v711 = vpack.c.b16 %v709, %v708
      %714 = vmatpush.bf16.msra.mxu0 0
      %715 = vmatpush.bf16.msra.mxu0 0
      %716 = vmatpush.bf16.msra.mxu0 0
      %717 = vmatpush.bf16.msra.mxu0 0
      %718 = vmatpush.bf16.msra.mxu0 0
      %719 = vmatpush.bf16.msra.mxu0 0
      %720 = vmatpush.bf16.msra.mxu0 %v711
      %721 = vmatpush.bf16.msra.mxu0 %v710
      %722 = vmatmul.bf16.gmra.mxu0 %v380
      %v723 = vpop.f32.mrf.mxu0
      %v724 = vadd.f32 0.0, %v723
      %v725 = vpop.f32.mrf.mxu0
      %726 = vdwg.mxu0
      %s727 = scalar_lea.vmem %s5, 32
      %v728 = vld [vmem:[%s727] sm:$0xf]
      %v729 = vld [vmem:[%s727 + $0x4] sm:$0xf]
      %v730 = vld [vmem:[%s727 + $0x8] sm:$0xf]
      %v731 = vld [vmem:[%s727 + $0xc] sm:$0xf]
      %v736 = vunpack.c.l.b16 %v728
      %v737 = vunpack.c.l.b16 %v729
      %v738 = vunpack.c.l.b16 %v730
      %v739 = vunpack.c.l.b16 %v731
      %v740 = vpack.c.b16 %v737, %v736
      %v741 = vpack.c.b16 %v739, %v738
      %744 = vmatpush.bf16.msra.mxu0 0
      %745 = vmatpush.bf16.msra.mxu0 0
      %746 = vmatpush.bf16.msra.mxu0 0
      %747 = vmatpush.bf16.msra.mxu0 0
      %748 = vmatpush.bf16.msra.mxu0 0
      %749 = vmatpush.bf16.msra.mxu0 0
      %750 = vmatpush.bf16.msra.mxu0 %v741
      %751 = vmatpush.bf16.msra.mxu0 %v740
      %752 = vmatmul.bf16.gmra.mxu0 %v412
      %v753 = vpop.f32.mrf.mxu0
      %v754 = vadd.f32 0.0, %v753
      %v755 = vpop.f32.mrf.mxu0
      %756 = vdwg.mxu0
      %s757 = scalar_lea.vmem %s6, 32
      %v758 = vld [vmem:[%s757] sm:$0xf]
      %v759 = vld [vmem:[%s757 + $0x4] sm:$0xf]
      %v760 = vld [vmem:[%s757 + $0x8] sm:$0xf]
      %v761 = vld [vmem:[%s757 + $0xc] sm:$0xf]
      %v766 = vunpack.c.l.b16 %v758
      %v767 = vunpack.c.l.b16 %v759
      %v768 = vunpack.c.l.b16 %v760
      %v769 = vunpack.c.l.b16 %v761
      %v770 = vpack.c.b16 %v767, %v766
      %v771 = vpack.c.b16 %v769, %v768
      %774 = vmatpush.bf16.msra.mxu0 0
      %775 = vmatpush.bf16.msra.mxu0 0
      %776 = vmatpush.bf16.msra.mxu0 0
      %777 = vmatpush.bf16.msra.mxu0 0
      %778 = vmatpush.bf16.msra.mxu0 0
      %779 = vmatpush.bf16.msra.mxu0 0
      %780 = vmatpush.bf16.msra.mxu0 %v771
      %781 = vmatpush.bf16.msra.mxu0 %v770
      %782 = vmatmul.bf16.gmra.mxu0 %v412
      %v783 = vpop.f32.mrf.mxu0
      %v784 = vadd.f32 0.0, %v783
      %v785 = vpop.f32.mrf.mxu0
      %786 = vdwg.mxu0
      %v787 = vpack.c.bf16 %v724, %v724
      %v788 = vpack.c.bf16 %v754, %v754
      %v790 = vsel %vm458, %v787, 0
      %v793 = vsel %vm458, %v788, 0
      %795 = vmatpush.bf16.xpose.msra.mxu0 0
      %796 = vmatpush.bf16.xpose.msra.mxu0 0
      %797 = vmatpush.bf16.xpose.msra.mxu0 0
      %798 = vmatpush.bf16.xpose.msra.mxu0 0
      %799 = vmatpush.bf16.xpose.msra.mxu0 0
      %800 = vmatpush.bf16.xpose.msra.mxu0 0
      %801 = vmatpush.bf16.xpose.msra.mxu0 0
      %802 = vmatpush.bf16.xpose.msra.mxu0 %v793
      %803 = vmatmul.bf16.gmra.mxu0 %v790
      %v804 = vpop.f32.mrf.mxu0
      %v805 = vadd.f32 0.0, %v804
      %v806 = vpop.f32.mrf.mxu0
      %807 = vdwg.mxu0
      %v808 = vsel %vm458, %v805, -inf
      %809 = vmax.xlane.f32.xlu0 %v808
      %v810 = vpop.xlane.xlu0 %809
      %v811 = vsub.f32 %v805, %v810
      %v812 = vmul.f32 %v811, 1.442695
      %v813 = vpow.pop %v812
      %v814 = vsel %vm458, %v813, 0.0
      %815 = vadd.xlane.f32.xlu0 %v814
      %v816 = vpop.xlane.xlu0 %815
      %v817 = vrcp.pop %v816
      %v818 = vmul.f32 %v813, %v817
      %v819 = vpack.c.bf16 %v818, %v818
      %v820 = vpack.c.bf16 %v784, %v784
      %v822 = vsel %vm458, %v819, 0
      %v825 = vsel %vm494, %v820, 0
      %827 = vmatpush.bf16.msra.mxu0 0
      %828 = vmatpush.bf16.msra.mxu0 0
      %829 = vmatpush.bf16.msra.mxu0 0
      %830 = vmatpush.bf16.msra.mxu0 0
      %831 = vmatpush.bf16.msra.mxu0 0
      %832 = vmatpush.bf16.msra.mxu0 0
      %833 = vmatpush.bf16.msra.mxu0 0
      %834 = vmatpush.bf16.msra.mxu0 %v825
      %835 = vmatmul.bf16.gmra.mxu0 %v822
      %v836 = vpop.f32.mrf.mxu0
      %v837 = vadd.f32 0.0, %v836
      %v838 = vpop.f32.mrf.mxu0
      %839 = vdwg.mxu0
      %v840 = vpack.c.bf16 %v837, %v837
      %s841 = scalar_lea.vmem %s7, 8
      %v842 = vld [vmem:[%s841] sm:$0xf]
      %v844 = vsel %vm458, %v840, 0
      %v847 = vsel %vm494, %v842, 0
      %849 = vmatpush.bf16.msra.mxu0 0
      %850 = vmatpush.bf16.msra.mxu0 0
      %851 = vmatpush.bf16.msra.mxu0 0
      %852 = vmatpush.bf16.msra.mxu0 0
      %853 = vmatpush.bf16.msra.mxu0 0
      %854 = vmatpush.bf16.msra.mxu0 0
      %855 = vmatpush.bf16.msra.mxu0 0
      %856 = vmatpush.bf16.msra.mxu0 %v847
      %857 = vmatmul.bf16.gmra.mxu0 %v844
      %v858 = vpop.f32.mrf.mxu0
      %v859 = vadd.f32 0.0, %v858
      %v860 = vpop.f32.mrf.mxu0
      %861 = vdwg.mxu0
      %v862 = vadd.f32 %v694, %v859
      %s863 = scalar_lea.vmem %s4, 48
      %v864 = vld [vmem:[%s863] sm:$0xf]
      %v865 = vld [vmem:[%s863 + $0x4] sm:$0xf]
      %v866 = vld [vmem:[%s863 + $0x8] sm:$0xf]
      %v867 = vld [vmem:[%s863 + $0xc] sm:$0xf]
      %v872 = vunpack.c.l.b16 %v864
      %v873 = vunpack.c.l.b16 %v865
      %v874 = vunpack.c.l.b16 %v866
      %v875 = vunpack.c.l.b16 %v867
      %v876 = vpack.c.b16 %v873, %v872
      %v877 = vpack.c.b16 %v875, %v874
      %880 = vmatpush.bf16.msra.mxu0 0
      %881 = vmatpush.bf16.msra.mxu0 0
      %882 = vmatpush.bf16.msra.mxu0 0
      %883 = vmatpush.bf16.msra.mxu0 0
      %884 = vmatpush.bf16.msra.mxu0 0
      %885 = vmatpush.bf16.msra.mxu0 0
      %886 = vmatpush.bf16.msra.mxu0 %v877
      %887 = vmatpush.bf16.msra.mxu0 %v876
      %888 = vmatmul.bf16.gmra.mxu0 %v380
      %v889 = vpop.f32.mrf.mxu0
      %v890 = vadd.f32 0.0, %v889
      %v891 = vpop.f32.mrf.mxu0
      %892 = vdwg.mxu0
      %s893 = scalar_lea.vmem %s5, 48
      %v894 = vld [vmem:[%s893] sm:$0xf]
      %v895 = vld [vmem:[%s893 + $0x4] sm:$0xf]
      %v896 = vld [vmem:[%s893 + $0x8] sm:$0xf]
      %v897 = vld [vmem:[%s893 + $0xc] sm:$0xf]
      %v902 = vunpack.c.l.b16 %v894
      %v903 = vunpack.c.l.b16 %v895
      %v904 = vunpack.c.l.b16 %v896
      %v905 = vunpack.c.l.b16 %v897
      %v906 = vpack.c.b16 %v903, %v902
      %v907 = vpack.c.b16 %v905, %v904
      %910 = vmatpush.bf16.msra.mxu0 0
      %911 = vmatpush.bf16.msra.mxu0 0
      %912 = vmatpush.bf16.msra.mxu0 0
      %913 = vmatpush.bf16.msra.mxu0 0
      %914 = vmatpush.bf16.msra.mxu0 0
      %915 = vmatpush.bf16.msra.mxu0 0
      %916 = vmatpush.bf16.msra.mxu0 %v907
      %917 = vmatpush.bf16.msra.mxu0 %v906
      %918 = vmatmul.bf16.gmra.mxu0 %v412
      %v919 = vpop.f32.mrf.mxu0
      %v920 = vadd.f32 0.0, %v919
      %v921 = vpop.f32.mrf.mxu0
      %922 = vdwg.mxu0
      %s923 = scalar_lea.vmem %s6, 48
      %v924 = vld [vmem:[%s923] sm:$0xf]
      %v925 = vld [vmem:[%s923 + $0x4] sm:$0xf]
      %v926 = vld [vmem:[%s923 + $0x8] sm:$0xf]
      %v927 = vld [vmem:[%s923 + $0xc] sm:$0xf]
      %v932 = vunpack.c.l.b16 %v924
      %v933 = vunpack.c.l.b16 %v925
      %v934 = vunpack.c.l.b16 %v926
      %v935 = vunpack.c.l.b16 %v927
      %v936 = vpack.c.b16 %v933, %v932
      %v937 = vpack.c.b16 %v935, %v934
      %940 = vmatpush.bf16.msra.mxu0 0
      %941 = vmatpush.bf16.msra.mxu0 0
      %942 = vmatpush.bf16.msra.mxu0 0
      %943 = vmatpush.bf16.msra.mxu0 0
      %944 = vmatpush.bf16.msra.mxu0 0
      %945 = vmatpush.bf16.msra.mxu0 0
      %946 = vmatpush.bf16.msra.mxu0 %v937
      %947 = vmatpush.bf16.msra.mxu0 %v936
      %948 = vmatmul.bf16.gmra.mxu0 %v412
      %v949 = vpop.f32.mrf.mxu0
      %v950 = vadd.f32 0.0, %v949
      %v951 = vpop.f32.mrf.mxu0
      %952 = vdwg.mxu0
      %v953 = vpack.c.bf16 %v890, %v890
      %v954 = vpack.c.bf16 %v920, %v920
      %v956 = vsel %vm458, %v953, 0
      %v959 = vsel %vm458, %v954, 0
      %961 = vmatpush.bf16.xpose.msra.mxu0 0
      %962 = vmatpush.bf16.xpose.msra.mxu0 0
      %963 = vmatpush.bf16.xpose.msra.mxu0 0
      %964 = vmatpush.bf16.xpose.msra.mxu0 0
      %965 = vmatpush.bf16.xpose.msra.mxu0 0
      %966 = vmatpush.bf16.xpose.msra.mxu0 0
      %967 = vmatpush.bf16.xpose.msra.mxu0 0
      %968 = vmatpush.bf16.xpose.msra.mxu0 %v959
      %969 = vmatmul.bf16.gmra.mxu0 %v956
      %v970 = vpop.f32.mrf.mxu0
      %v971 = vadd.f32 0.0, %v970
      %v972 = vpop.f32.mrf.mxu0
      %973 = vdwg.mxu0
      %v974 = vsel %vm458, %v971, -inf
      %975 = vmax.xlane.f32.xlu0 %v974
      %v976 = vpop.xlane.xlu0 %975
      %v977 = vsub.f32 %v971, %v976
      %v978 = vmul.f32 %v977, 1.442695
      %v979 = vpow.pop %v978
      %v980 = vsel %vm458, %v979, 0.0
      %981 = vadd.xlane.f32.xlu0 %v980
      %v982 = vpop.xlane.xlu0 %981
      %v983 = vrcp.pop %v982
      %v984 = vmul.f32 %v979, %v983
      %v985 = vpack.c.bf16 %v984, %v984
      %v986 = vpack.c.bf16 %v950, %v950
      %v988 = vsel %vm458, %v985, 0
      %v991 = vsel %vm494, %v986, 0
      %993 = vmatpush.bf16.msra.mxu0 0
      %994 = vmatpush.bf16.msra.mxu0 0
      %995 = vmatpush.bf16.msra.mxu0 0
      %996 = vmatpush.bf16.msra.mxu0 0
      %997 = vmatpush.bf16.msra.mxu0 0
      %998 = vmatpush.bf16.msra.mxu0 0
      %999 = vmatpush.bf16.msra.mxu0 0
      %1000 = vmatpush.bf16.msra.mxu0 %v991
      %1001 = vmatmul.bf16.gmra.mxu0 %v988
      %v1002 = vpop.f32.mrf.mxu0
      %v1003 = vadd.f32 0.0, %v1002
      %v1004 = vpop.f32.mrf.mxu0
      %1005 = vdwg.mxu0
      %v1006 = vpack.c.bf16 %v1003, %v1003
      %s1007 = scalar_lea.vmem %s7, 12
      %v1008 = vld [vmem:[%s1007] sm:$0xf]
      %v1010 = vsel %vm458, %v1006, 0
      %v1013 = vsel %vm494, %v1008, 0
      %1015 = vmatpush.bf16.msra.mxu0 0
      %1016 = vmatpush.bf16.msra.mxu0 0
      %1017 = vmatpush.bf16.msra.mxu0 0
      %1018 = vmatpush.bf16.msra.mxu0 0
      %1019 = vmatpush.bf16.msra.mxu0 0
      %1020 = vmatpush.bf16.msra.mxu0 0
      %1021 = vmatpush.bf16.msra.mxu0 0
      %1022 = vmatpush.bf16.msra.mxu0 %v1013
      %1023 = vmatmul.bf16.gmra.mxu0 %v1010
      %v1024 = vpop.f32.mrf.mxu0
      %v1025 = vadd.f32 0.0, %v1024
      %v1026 = vpop.f32.mrf.mxu0
      %1027 = vdwg.mxu0
      %v1028 = vadd.f32 %v862, %v1025
      %v1029 = vadd.f32 %v319, %v1028
      %1030 = vst.msk [vmem:[%s317] sm:$0xff] %vm322, %v1029
      %p1031 = scmp.lt.s32.totalorder %s19, 1
      %s1032 = scalar_select %p1031, %s19, 1
      %s1033 = smul.addr %s1032, 8
      %s1034 = scalar_lea.vmem %s8, %s1033
      // Predicated region
      $region53: #{transformer_forward.18} parent=51 // pred_check
        %p1035 = pneg %p215
      $region54: #{transformer_forward.18} parent=51 // pred_check_branch
        %1037 = sbr.rel (%p1035) target = $region56
      $region55: #{transformer_forward.18} parent=51 // pred_region
        _
      $region56: #{transformer_forward.18} parent=51 // pred_fallthru
        _
    $region52: #{transformer_forward.18} parent=5 // pred_fallthru
      _
    %p1038 = scmp.le.s32.totalorder 2, %s14
    // Predicated region
    $region57: #{transformer_forward.18} parent=5 // pred_check
      %p1039 = pneg %p1038
    $region58: #{transformer_forward.18} parent=5 // pred_check_branch
      %1041 = sbr.rel (%p1039) target = $region60
    $region59: #{transformer_forward.18} parent=5 // pred_region
      %s1042 = ssub.s32 %s14, 2
      // Predicated region
      $region61: #{transformer_forward.18} parent=59 // pred_check
        %p1043 = pneg %p221
      $region62: #{transformer_forward.18} parent=59 // pred_check_branch
        %1045 = sbr.rel (%p1043) target = $region64
      $region63: #{transformer_forward.18} parent=59 // pred_region
        %p1046 = scmp.lt.s32.totalorder %s20, 1
        %s1047 = scalar_select %p1046, %s20, 1
        %s1048 = smul.addr %s1047, 8
        %s1049 = scalar_lea.vmem %s8, %s1048
      $region64: #{transformer_forward.18} parent=59 // pred_fallthru
        _
    $region60: #{transformer_forward.18} parent=5 // pred_fallthru
      _
  $region6: #{transformer_forward.18} parent=0 // loop_footer
    %s18 = sadd.s32 1, %s14
  $region7: #{transformer_forward.18} parent=0 // loop_footer_branch
    %13 = sbr.rel target = $region3
  $region8: #{transformer_forward.18} parent=0 // loop_exit
    _

// kernel: transformer_forward.23
$region0: #{transformer_forward.23}
  #allocation0 [shape = 'u32[]', space=smem, size = 0x4, offset = 0x4, fixed_abs, tag = 'smem constant byte address 0x4 - core index']
  #allocation1 [shape = 'u32[72,128]{1,0:T(1,128)}', space=vmem, size = 0x9000, scoped, tag = 'internal scratch']
  %s0 = inlined_call_operand.vmem [shape: f32[16,32], index: 0, kind: input, shape index: {}]
  %s1 = inlined_call_operand.vmem [shape: f32[1,32], index: 1, kind: input, shape index: {}]
  %s2 = inlined_call_operand.vmem [shape: f32[1,32], index: 2, kind: input, shape index: {}]
  %s3 = inlined_call_operand.vmem [shape: bf16[32,16], index: 3, kind: input, shape index: {}]
  %s4 = inlined_call_operand.vmem [shape: f32[1,16], index: 4, kind: input, shape index: {}]
  %s5 = inlined_call_operand.hbm [shape: f32[16,16], index: 5, kind: output, shape index: {}]
  %s6 = sld [smem:[#allocation0]]
  $region30: #{transformer_forward.23} parent=0
    _
  %s8 = ssub.s32 1, %s6
  %s9 = scalar_select 0, %s8, %s6
  $region1: #{transformer_forward.23} parent=0
    #allocation2 [shape = 'u8[8192]{0}', space=vmem, size = 0x2000, scoped, tag = 'output window, operand 0, single buffered']
    #allocation3 [shape = 's32[1]{0}', space=sflag, size = 0x4, scoped, tag = 'scoped memory for transformer_forward.23']
    %10 = vsyncpa [#allocation3], 0
    // Predicated region
    $region2: #{transformer_forward.23} parent=1 // pred_check
      _
    $region3: #{transformer_forward.23} parent=1 // pred_check_branch
      %12 = sbr.rel (0) target = $region5
    $region4: #{transformer_forward.23} parent=1 // pred_region
      _
    $region5: #{transformer_forward.23} parent=1 // pred_fallthru
      _
    // Predicated region
    $region6: #{transformer_forward.23} parent=1 // pred_check
      _
    $region7: #{transformer_forward.23} parent=1 // pred_check_branch
      %14 = sbr.rel (0) target = $region9
    $region8: #{transformer_forward.23} parent=1 // pred_region
      _
    $region9: #{transformer_forward.23} parent=1 // pred_fallthru
      _
    // Predicated region
    $region10: #{transformer_forward.23} parent=1 // pred_check
      _
    $region11: #{transformer_forward.23} parent=1 // pred_check_branch
      %16 = sbr.rel (0) target = $region13
    $region12: #{transformer_forward.23} parent=1 // pred_region
      _
    $region13: #{transformer_forward.23} parent=1 // pred_fallthru
      _
    // Predicated region
    $region14: #{transformer_forward.23} parent=1 // pred_check
      _
    $region15: #{transformer_forward.23} parent=1 // pred_check_branch
      %18 = sbr.rel (0) target = $region17
    $region16: #{transformer_forward.23} parent=1 // pred_region
      _
    $region17: #{transformer_forward.23} parent=1 // pred_fallthru
      _
    // Predicated region
    $region18: #{transformer_forward.23} parent=1 // pred_check
      _
    $region19: #{transformer_forward.23} parent=1 // pred_check_branch
      %20 = sbr.rel (0) target = $region21
    $region20: #{transformer_forward.23} parent=1 // pred_region
      _
    $region21: #{transformer_forward.23} parent=1 // pred_fallthru
      _
    %v22 = vld [vmem:[%s0] sm:$0xff]
    %v23 = vld [vmem:[%s0 + $0x8] sm:$0xff]
    %v24 = vld [vmem:[%s1] sm:$0x1]
    %v25 = vld [vmem:[%s2] sm:$0x1]
    %vm26 = vcmask 261120
    %v27 = vsel %vm26, %v22, 0.0
    %28 = vadd.xlane.f32.xlu0 %v27
    %v29 = vpop.xlane.xlu0 %28
    %v30 = vsel %vm26, %v23, 0.0
    %31 = vadd.xlane.f32.xlu0 %v30
    %v32 = vpop.xlane.xlu0 %31
    %v33 = vrcp.pop 32.0
    %v34 = vmul.f32 32.0, %v33
    %v35 = vsub.f32 1.0, %v34
    %v36 = vmul.f32 %v33, %v35
    %v37 = vadd.f32 %v33, %v36
    %vm38 = vweird.f32 %v33
    %v39 = vsel %vm38, %v33, %v37
    %v40 = vmul.f32 %v29, %v39
    %v41 = vmul.f32 %v32, %v39
    %v42 = vsub.f32 %v22, %v40
    %v43 = vsub.f32 %v23, %v41
    %v44 = vmul.f32 %v42, %v42
    %v45 = vmul.f32 %v43, %v43
    %v46 = vsel %vm26, %v44, 0.0
    %47 = vadd.xlane.f32.xlu0 %v46
    %v48 = vpop.xlane.xlu0 %47
    %v49 = vsel %vm26, %v45, 0.0
    %50 = vadd.xlane.f32.xlu0 %v49
    %v51 = vpop.xlane.xlu0 %50
    %v52 = vmul.f32 %v48, %v39
    %v53 = vmul.f32 %v51, %v39
    %v54 = vadd.f32 %v52, 1e-05
    %v55 = vadd.f32 %v53, 1e-05
    %v56 = vrsqrt.pop %v54
    %v57 = vmul.f32 %v56, %v54
    %v58 = vmul.f32 %v57, %v56
    %v59 = vmul.f32 0.5, %v58
    %v60 = vsub.f32 1.5, %v59
    %v61 = vmul.f32 %v56, %v60
    %vm62 = vweird.f32 %v54
    %vm63 = vweird.f32 %v56
    %vm64 = vmor %vm62, %vm63
    %v65 = vsel %vm64, %v56, %v61
    %v66 = vrsqrt.pop %v55
    %v67 = vmul.f32 %v66, %v55
    %v68 = vmul.f32 %v67, %v66
    %v69 = vmul.f32 0.5, %v68
    %v70 = vsub.f32 1.5, %v69
    %v71 = vmul.f32 %v66, %v70
    %vm72 = vweird.f32 %v55
    %vm73 = vweird.f32 %v66
    %vm74 = vmor %vm72, %vm73
    %v75 = vsel %vm74, %v66, %v71
    %v76 = vmul.f32 %v42, %v65
    %v77 = vmul.f32 %v43, %v75
    %v79 = vperm.slane %v24, 0
    %v81 = vmul.f32 %v76, %v79
    %v82 = vmul.f32 %v77, %v79
    %v84 = vperm.slane %v25, 0
    %v86 = vadd.f32 %v81, %v84
    %v87 = vadd.f32 %v82, %v84
    %v88 = vpack.c.bf16 %v87, %v86
    %v89 = vld [vmem:[%s3] sm:$0xf]
    %v90 = vld [vmem:[%s3 + $0x4] sm:$0xf]
    %v91 = vld [vmem:[%s3 + $0x8] sm:$0xf]
    %v92 = vld [vmem:[%s3 + $0xc] sm:$0xf]
    %v93 = vld [vmem:[%s4] sm:$0x1]
    %v95 = vperm.slane %v93, 0
    %v101 = vunpack.c.l.b16 %v89
    %v102 = vunpack.c.l.b16 %v90
    %v103 = vunpack.c.l.b16 %v91
    %v104 = vunpack.c.l.b16 %v92
    %v105 = vpack.c.b16 %v102, %v101
    %v106 = vpack.c.b16 %v104, %v103
    %v110 = vsel %vm26, %v88, 0
    %112 = vmatpush.bf16.msra.mxu0 0
    %113 = vmatpush.bf16.msra.mxu0 0
    %114 = vmatpush.bf16.msra.mxu0 0
    %115 = vmatpush.bf16.msra.mxu0 0
    %116 = vmatpush.bf16.msra.mxu0 0
    %117 = vmatpush.bf16.msra.mxu0 0
    %118 = vmatpush.bf16.msra.mxu0 %v106
    %119 = vmatpush.bf16.msra.mxu0 %v105
    %120 = vmatmul.bf16.gmra.mxu0 %v110
    %v121 = vpop.f32.mrf.mxu0
    %v122 = vadd.f32 %v95, %v121
    %v123 = vpop.f32.mrf.mxu0
    %v124 = vadd.f32 %v95, %v123
    %125 = vdwg.mxu0
    %vm126 = vcmask 130048
    %127 = vst.msk [vmem:[#allocation2] sm:$0xff] %vm126, %v122
    %128 = vst.msk [vmem:[#allocation2 + $0x8] sm:$0xff] %vm126, %v124
    // Predicated region
    $region22: #{transformer_forward.23} parent=1 // pred_check
      _
    $region23: #{transformer_forward.23} parent=1 // pred_check_branch
      %130 = sbr.rel (0) target = $region25
    $region24: #{transformer_forward.23} parent=1 // pred_region
      %132 = vsyncadd [#allocation3], 0
      %s133 = sshll.u32 [#allocation2], 4
      %s134 = int_to_ptr.vmem [resolvable:$true] %s133
      %s135 = sshll.u32 %s5, 4
      %s136 = int_to_ptr.hbm [resolvable:$true] %s135
      %141 = dma.vmem_to_hbm [thread:$0]  %s134, 256, %s136, [#allocation3], 128, 128, 8
    $region25: #{transformer_forward.23} parent=1 // pred_fallthru
      _
    // Predicated region
    $region26: #{transformer_forward.23} parent=1 // pred_check
      _
    $region27: #{transformer_forward.23} parent=1 // pred_check_branch
      %143 = sbr.rel (0) target = $region29
    $region28: #{transformer_forward.23} parent=1 // pred_region
      %145 = dma.done [#allocation3], 256
    $region29: #{transformer_forward.23} parent=1 // pred_fallthru
      _
    %146 = vsyncpa [#allocation3], 1

</llo_original>
